<compile_context>
chip_gen: v7x
topology: tpu7x:2x2x1
jax: 0.10.0
libtpu: 0.0.40
codegen_flags: <defaults>
</compile_context>

<pallas_src>
import math
import numpy as np
import jax
import jax.numpy as jnp
from jax.experimental import pallas as pl
from jax.experimental.pallas import tpu as pltpu

# ---- "opt" / module hyper-parameters (small, consistent with __init__) ----
PAD = 0            # dictionary null token index
VOCAB = 50         # len(dictionary)
D = 32             # opt['embedding_size']
FFN = 64           # opt['ffn_size']
HEADS = 2          # opt['n_heads']
LAYERS = 2         # opt['n_layers']
SEQ = 8            # sequence length
NPOS = 64          # n_positions
LN_EPS = 1e-5      # nn.LayerNorm default eps
NEG_INF = -1e20    # ParlAI neginf(float32)
DH = D // HEADS    # dim per head
VEC_LANES = 128    # packed per-layer vector slab lane width


# ---------------------------------------------------------------------------
# Fused encoder kernel: one grid step == one encoder (context/memory OR cand),
# all of its sequences flattened to a (NR, D) 2-D slab (NR = bblk * S).
# ---------------------------------------------------------------------------
def fused_encoder_kernel(x_ref, mrow_ref, amask_ref, pool_ref,
                         wqkv_ref, wo_ref, w1_ref, w2_ref, vec_ref,
                         out_ref, attn_scr):
    mrow = mrow_ref[0]                       # (NR, 1)  1 inside sequence, 0 = pad
    amask = amask_ref[0]                     # (NR, NR) block-diag additive key mask
    h = x_ref[0] * mrow                      # tensor *= mask.unsqueeze(-1)

    for l in range(LAYERS):
        vec = vec_ref[0, l]                  # (8, 128) packed per-layer vectors
        bqkv = vec[0:1, :3 * D]
        bo = vec[1:2, :D]
        g1 = vec[2:3, :D]
        be1 = vec[3:4, :D]
        b1 = vec[4:5, :FFN]
        b2 = vec[5:6, :D]
        g2 = vec[6:7, :D]
        be2 = vec[7:8, :D]

        # Fused QKV projection; 1/sqrt(dim_per_head) already folded into Q cols.
        qkv = jnp.dot(h, wqkv_ref[0, l],
                      preferred_element_type=jnp.float32) + bqkv      # (NR, 3D)

        # Multi-head attention: one flattened matmul per head + block-diag mask
        # (replaces per-sequence batched 8x8 einsums).  Head outputs go into
        # static column slices of the VMEM scratch (no lane-axis concat).
        for hd in range(HEADS):
            lo = hd * DH
            qh = qkv[:, lo:lo + DH]
            kh = qkv[:, D + lo:D + lo + DH]
            vh = qkv[:, 2 * D + lo:2 * D + lo + DH]
            sc = jax.lax.dot_general(qh, kh, (((1,), (1,)), ((), ())),
                                     preferred_element_type=jnp.float32)  # (NR, NR)
            sc = sc + amask
            sc = sc - jnp.max(sc, axis=-1, keepdims=True)
            e = jnp.exp(sc)
            aw = e * pl.reciprocal(jnp.sum(e, axis=-1, keepdims=True), approx=True)
            attn_scr[:, lo:lo + DH] = jnp.dot(aw, vh,
                                              preferred_element_type=jnp.float32)

        attn = jnp.dot(attn_scr[...], wo_ref[0, l],
                       preferred_element_type=jnp.float32) + bo
        h = h + attn

        # LayerNorm 1
        mu = jnp.mean(h, axis=-1, keepdims=True)
        var = jnp.mean(jnp.square(h - mu), axis=-1, keepdims=True)
        h = (h - mu) * jax.lax.rsqrt(var + LN_EPS) * g1 + be1

        # FFN: relu(x @ W1 + b1) @ W2 + b2, residual
        f = jnp.maximum(
            jnp.dot(h, w1_ref[0, l], preferred_element_type=jnp.float32) + b1, 0.0)
        f = jnp.dot(f, w2_ref[0, l], preferred_element_type=jnp.float32) + b2
        h = h + f

        # LayerNorm 2
        mu = jnp.mean(h, axis=-1, keepdims=True)
        var = jnp.mean(jnp.square(h - mu), axis=-1, keepdims=True)
        h = (h - mu) * jax.lax.rsqrt(var + LN_EPS) * g2 + be2

        h = h * mrow                          # tensor *= mask.unsqueeze(-1)

    # reduction=True masked mean: mask and EXACT 1/divisor folded into pool_ref
    # host-side -> a single (bblk, NR) @ (NR, D) MXU push.
    out_ref[0] = jnp.dot(pool_ref[0], h, preferred_element_type=jnp.float32)


def run_fused_encoders(params, x, mrow, amask, pool):
    """x:(NE,NR,D) mrow:(NE,NR,1) amask:(NE,NR,NR) pool:(NE,bblk,NR) -> (NE,bblk,D)."""
    NE, NR, _ = x.shape
    bblk = pool.shape[1]
    wnames = ('wqkv', 'wo', 'w1', 'w2', 'vec')
    weights = [params[k] for k in wnames]

    def wspec(a):
        nd = a.ndim
        # index_map selects the per-encoder param slab along the leading axis.
        return pl.BlockSpec((1,) + tuple(a.shape[1:]),
                            lambda e, _n=nd: (e,) + (0,) * (_n - 1))

    return pl.pallas_call(
        fused_encoder_kernel,
        out_shape=jax.ShapeDtypeStruct((NE, bblk, D), jnp.float32),
        grid=(NE,),
        in_specs=[pl.BlockSpec((1, NR, D), lambda e: (e, 0, 0)),
                  pl.BlockSpec((1, NR, 1), lambda e: (e, 0, 0)),
                  pl.BlockSpec((1, NR, NR), lambda e: (e, 0, 0)),
                  pl.BlockSpec((1, bblk, NR), lambda e: (e, 0, 0))]
                 + [wspec(a) for a in weights],
        out_specs=pl.BlockSpec((1, bblk, D), lambda e: (e, 0, 0)),
        scratch_shapes=[pltpu.VMEM((NR, D), jnp.float32)],
        compiler_params=pltpu.CompilerParams(
            dimension_semantics=("parallel",)),
    )(x, mrow, amask, pool, *weights)


# ---------------------------------------------------------------------------
# JAX glue: embeddings, positional codes, mask-derived structures, forward
# ---------------------------------------------------------------------------
def sinusoid_position_codes(n_pos, dim):
    pos = np.arange(n_pos)[:, None].astype(np.float64)
    j = np.arange(dim // 2)[None, :].astype(np.float64)
    enc = pos / np.power(10000.0, 2.0 * j / dim)
    out = np.zeros((n_pos, dim), np.float32)
    out[:, 0::2] = np.sin(enc)
    out[:, 1::2] = np.cos(enc)
    return jnp.asarray(out)


def embed_tokens(tokens, emb_table, pos_table):
    mask = (tokens != PAD)
    positions = jnp.maximum(jnp.cumsum(mask.astype(jnp.int32), axis=1) - 1, 0)
    x = emb_table[tokens] + pos_table[positions]          # embeddings_scale=False
    return x.astype(jnp.float32), mask.astype(jnp.float32)


def transformer_memnet_forward(xs, mems, cands, model):
    emb, pos = model['emb'], model['pos']
    B, M, S = mems.shape
    Bc, C, Sc = cands.shape

    # encoder 0: context + memories (same params: memory_transformer == context_encoder)
    # encoder 1: candidates (cand_encoder, share_encoders=False)
    ctx_mem_tokens = jnp.concatenate([xs, mems.reshape(B * M, S)], axis=0)
    cand_tokens = cands.reshape(Bc * C, Sc)
    n0, n1 = ctx_mem_tokens.shape[0], cand_tokens.shape[0]
    bblk = max(n0, n1)

    def prep(tokens):
        n = tokens.shape[0]
        if n < bblk:      # pad with all-PAD sequences; their pooled rows are discarded
            pad = jnp.full((bblk - n, tokens.shape[1]), PAD, tokens.dtype)
            tokens = jnp.concatenate([tokens, pad], axis=0)
        return embed_tokens(tokens, emb, pos)

    (x0, m0), (x1, m1) = prep(ctx_mem_tokens), prep(cand_tokens)
    x = jnp.stack([x0, x1], axis=0).reshape(2, bblk * S, D)     # (2, NR, D)
    m = jnp.stack([m0, m1], axis=0)                             # (2, bblk, S)

    # mask-derived structures (host side, exact arithmetic; tiny for these shapes)
    nr = bblk * S
    mflat = m.reshape(2, nr)
    mrow = mflat[:, :, None]                                    # (2, NR, 1)
    seq_id = jnp.arange(nr, dtype=jnp.int32) // S
    same_seq = (seq_id[:, None] == seq_id[None, :]).astype(jnp.float32)
    amask = (1.0 - same_seq[None] * mflat[:, None, :]) * NEG_INF      # (2, NR, NR)
    denom = jnp.maximum(jnp.sum(m, axis=-1), 1e-7)                    # (2, bblk)
    onehot = (seq_id[None, :] ==
              jnp.arange(bblk, dtype=jnp.int32)[:, None]).astype(jnp.float32)
    pool = onehot[None] * mflat[:, None, :] / denom[:, :, None]       # (2, bblk, NR)

    pooled = run_fused_encoders(model['enc'], x, mrow, amask, pool)   # (2, bblk, D)

    context_h = pooled[0, :B]
    memories_h = pooled[0, B:n0].reshape(B, M, D)
    cands_h = pooled[1, :n1].reshape(Bc, C, D)

    # BasicAttention(dim=2, attn='sqrt'): a few hundred FLOPs -> plain jnp.
    l1 = jnp.einsum('bd,bmd->bm', context_h, memories_h) / math.sqrt(D)
    l2 = jax.nn.softmax(l1, axis=-1)
    context_h = jnp.einsum('bm,bmd->bd', l2, memories_h) + context_h

    # opt['normalize_sent_emb'] = False -> no L2 normalization
    return context_h, cands_h


# ---------------------------------------------------------------------------
# Deterministic parameter init (shapes per module __init__) + kernel layout prep
# ---------------------------------------------------------------------------
def init_encoder_params(key):
    ks = jax.random.split(key, 8)

    def n(k, shape, std):
        return std * jax.random.normal(k, shape, jnp.float32)

    return {
        'wq': n(ks[0], (LAYERS, D, D), D ** -0.5),
        'wk': n(ks[1], (LAYERS, D, D), D ** -0.5),
        'wv': n(ks[2], (LAYERS, D, D), D ** -0.5),
        'wo': n(ks[3], (LAYERS, D, D), D ** -0.5),
        'bq': jnp.zeros((LAYERS, 1, D), jnp.float32),
        'bk': jnp.zeros((LAYERS, 1, D), jnp.float32),
        'bv': jnp.zeros((LAYERS, 1, D), jnp.float32),
        'bo': jnp.zeros((LAYERS, 1, D), jnp.float32),
        'g1': jnp.ones((LAYERS, 1, D), jnp.float32),
        'be1': jnp.zeros((LAYERS, 1, D), jnp.float32),
        'w1': n(ks[4], (LAYERS, D, FFN), D ** -0.5),
        'b1': n(ks[5], (LAYERS, 1, FFN), 0.01),
        'w2': n(ks[6], (LAYERS, FFN, D), FFN ** -0.5),
        'b2': n(ks[7], (LAYERS, 1, D), 0.01),
        'g2': jnp.ones((LAYERS, 1, D), jnp.float32),
        'be2': jnp.zeros((LAYERS, 1, D), jnp.float32),
    }


def _pack_vec_slab(raw, q_scale):
    """Pack the 8 per-layer (1, W) vector params into one (L, 8, 128) slab."""
    def pad128(v):
        return jnp.pad(v, ((0, 0), (0, 0), (0, VEC_LANES - v.shape[-1])))
    bqkv = jnp.concatenate([raw['bq'] * q_scale, raw['bk'], raw['bv']], axis=-1)
    rows = [bqkv, raw['bo'], raw['g1'], raw['be1'],
            raw['b1'], raw['b2'], raw['g2'], raw['be2']]
    return jnp.concatenate([pad128(r) for r in rows], axis=1)       # (L, 8, 128)


def prep_fused_params(raw_ctx, raw_cand):
    """Fuse Q|K|V, fold 1/sqrt(dim_per_head) into Q, pack tiny vectors, and stack
    the two encoders' params along a leading axis of size 2."""
    inv_scale = 1.0 / math.sqrt(DH)

    def one(raw):
        wqkv = jnp.concatenate(
            [raw['wq'] * inv_scale, raw['wk'], raw['wv']], axis=-1)  # (L, D, 3D)
        return (wqkv, raw['wo'], raw['w1'], raw['w2'], _pack_vec_slab(raw, inv_scale))

    stacked = [jnp.stack(t, axis=0) for t in zip(one(raw_ctx), one(raw_cand))]
    return dict(zip(('wqkv', 'wo', 'w1', 'w2', 'vec'), stacked))


def init_embeddings(key):
    w = (D ** -0.5) * jax.random.normal(key, (VOCAB, D), jnp.float32)
    return w.at[PAD].set(0.0)


def make_tokens(key, shape, min_len):
    k1, k2 = jax.random.split(key)
    toks = jax.random.randint(k1, shape, 1, VOCAB, dtype=jnp.int32)
    lengths = jax.random.randint(k2, shape[:-1], min_len, shape[-1] + 1,
                                 dtype=jnp.int32)
    pos = jnp.arange(shape[-1], dtype=jnp.int32)
    valid = pos < lengths[..., None]
    return jnp.where(valid, toks, PAD)


if __name__ == "__main__":
    root = jax.random.PRNGKey(0)
    k_emb, k_ctx, k_cand, k_xs, k_mems, k_cands = jax.random.split(root, 6)

    model = {
        'emb': init_embeddings(k_emb),
        'pos': sinusoid_position_codes(NPOS, D),
        'enc': prep_fused_params(init_encoder_params(k_ctx),     # context/memory encoder
                                 init_encoder_params(k_cand)),   # candidate encoder
    }

    B, M, C = 2, 3, 4
    xs = make_tokens(k_xs, (B, SEQ), 3)            # context tokens   [B, S]
    mems = make_tokens(k_mems, (B, M, SEQ), 3)     # memory tokens    [B, M, S]
    cands = make_tokens(k_cands, (B, C, SEQ), 3)   # candidate tokens [B, C, S]

    fwd = jax.jit(transformer_memnet_forward)
    context_h, cands_h = fwd(xs, mems, cands, model)
    jax.block_until_ready((context_h, cands_h))

    assert context_h.shape == (B, D) and context_h.dtype == jnp.float32
    assert cands_h.shape == (B, C, D) and cands_h.dtype == jnp.float32
    assert bool(jnp.all(jnp.isfinite(context_h))) and bool(jnp.all(jnp.isfinite(cands_h)))
    print("KERNEL_OK")
</pallas_src>

<mosaic_0001>
module attributes {stable_mosaic.version = 11 : i64} {
  func.func @fused_encoder_kernel(%arg0: i32, %arg1: memref<1x64x32xf32, #tpu.memory_space<vmem>>, %arg2: memref<1x64x1xf32, #tpu.memory_space<vmem>>, %arg3: memref<1x64x64xf32, #tpu.memory_space<vmem>>, %arg4: memref<1x8x64xf32, #tpu.memory_space<vmem>>, %arg5: memref<1x2x32x96xf32, #tpu.memory_space<vmem>>, %arg6: memref<1x2x32x32xf32, #tpu.memory_space<vmem>>, %arg7: memref<1x2x32x64xf32, #tpu.memory_space<vmem>>, %arg8: memref<1x2x64x32xf32, #tpu.memory_space<vmem>>, %arg9: memref<1x2x8x128xf32, #tpu.memory_space<vmem>>, %arg10: memref<1x8x32xf32, #tpu.memory_space<vmem>>, %arg11: memref<64x32xf32, #tpu.memory_space<vmem>>) attributes {dimension_semantics = [#tpu.dimension_semantics<parallel>], iteration_bounds = array<i64: 2>, scalar_prefetch = 0 : i64, scratch_operands = 1 : i64, tpu.core_type = #tpu.core_type<tc>, window_params = [{transform_indices = @transform_0, window_bounds = array<i64: 1, 64, 32>}, {transform_indices = @transform_1, window_bounds = array<i64: 1, 64, 1>}, {transform_indices = @transform_2, window_bounds = array<i64: 1, 64, 64>}, {transform_indices = @transform_3, window_bounds = array<i64: 1, 8, 64>}, {transform_indices = @transform_4, window_bounds = array<i64: 1, 2, 32, 96>}, {transform_indices = @transform_5, window_bounds = array<i64: 1, 2, 32, 32>}, {transform_indices = @transform_6, window_bounds = array<i64: 1, 2, 32, 64>}, {transform_indices = @transform_7, window_bounds = array<i64: 1, 2, 64, 32>}, {transform_indices = @transform_8, window_bounds = array<i64: 1, 2, 8, 128>}, {transform_indices = @transform_9, window_bounds = array<i64: 1, 8, 32>}]} {
    %c0 = arith.constant 0 : index
    %c0_0 = arith.constant 0 : index
    %c0_1 = arith.constant 0 : index
    %0 = vector.load %arg2[%c0, %c0_0, %c0_1] : memref<1x64x1xf32, #tpu.memory_space<vmem>>, vector<1x64x1xf32>
    %1 = vector.shape_cast %0 : vector<1x64x1xf32> to vector<64x1xf32>
    %c0_2 = arith.constant 0 : index
    %c0_3 = arith.constant 0 : index
    %c0_4 = arith.constant 0 : index
    %2 = vector.load %arg3[%c0_2, %c0_3, %c0_4] : memref<1x64x64xf32, #tpu.memory_space<vmem>>, vector<1x64x64xf32>
    %3 = vector.shape_cast %2 : vector<1x64x64xf32> to vector<64x64xf32>
    %c0_5 = arith.constant 0 : index
    %c0_6 = arith.constant 0 : index
    %c0_7 = arith.constant 0 : index
    %4 = vector.load %arg1[%c0_5, %c0_6, %c0_7] : memref<1x64x32xf32, #tpu.memory_space<vmem>>, vector<1x64x32xf32>
    %5 = vector.shape_cast %4 : vector<1x64x32xf32> to vector<64x32xf32>
    %6 = vector.broadcast %1 : vector<64x1xf32> to vector<64x32xf32>
    %7 = arith.mulf %5, %6 : vector<64x32xf32>
    %c0_8 = arith.constant 0 : index
    %c0_9 = arith.constant 0 : index
    %c0_10 = arith.constant 0 : index
    %c0_11 = arith.constant 0 : index
    %8 = vector.load %arg9[%c0_8, %c0_9, %c0_10, %c0_11] : memref<1x2x8x128xf32, #tpu.memory_space<vmem>>, vector<1x1x8x128xf32>
    %9 = vector.shape_cast %8 : vector<1x1x8x128xf32> to vector<8x128xf32>
    %10 = vector.extract_strided_slice %9 {offsets = [0, 0], sizes = [1, 96], strides = [1, 1]} : vector<8x128xf32> to vector<1x96xf32>
    %11 = vector.extract_strided_slice %9 {offsets = [1, 0], sizes = [1, 32], strides = [1, 1]} : vector<8x128xf32> to vector<1x32xf32>
    %12 = vector.extract_strided_slice %9 {offsets = [2, 0], sizes = [1, 32], strides = [1, 1]} : vector<8x128xf32> to vector<1x32xf32>
    %13 = vector.extract_strided_slice %9 {offsets = [3, 0], sizes = [1, 32], strides = [1, 1]} : vector<8x128xf32> to vector<1x32xf32>
    %14 = vector.extract_strided_slice %9 {offsets = [4, 0], sizes = [1, 64], strides = [1, 1]} : vector<8x128xf32> to vector<1x64xf32>
    %15 = vector.extract_strided_slice %9 {offsets = [5, 0], sizes = [1, 32], strides = [1, 1]} : vector<8x128xf32> to vector<1x32xf32>
    %16 = vector.extract_strided_slice %9 {offsets = [6, 0], sizes = [1, 32], strides = [1, 1]} : vector<8x128xf32> to vector<1x32xf32>
    %17 = vector.extract_strided_slice %9 {offsets = [7, 0], sizes = [1, 32], strides = [1, 1]} : vector<8x128xf32> to vector<1x32xf32>
    %c0_12 = arith.constant 0 : index
    %c0_13 = arith.constant 0 : index
    %c0_14 = arith.constant 0 : index
    %c0_15 = arith.constant 0 : index
    %18 = vector.load %arg5[%c0_12, %c0_13, %c0_14, %c0_15] : memref<1x2x32x96xf32, #tpu.memory_space<vmem>>, vector<1x1x32x96xf32>
    %19 = vector.shape_cast %18 : vector<1x1x32x96xf32> to vector<32x96xf32>
    %cst = arith.constant dense<0.000000e+00> : vector<64x96xf32>
    %20 = tpu.matmul %7, %19, %cst {dimension_numbers = #tpu.dot_dimension_numbers<[1], [0], [0], [1], [0, 0, 1, 1], [], []>} : vector<64x32xf32>, vector<32x96xf32>, vector<64x96xf32> -> vector<64x96xf32>
    %21 = vector.broadcast %10 : vector<1x96xf32> to vector<64x96xf32>
    %22 = arith.addf %20, %21 : vector<64x96xf32>
    %23 = vector.extract_strided_slice %22 {offsets = [0, 0], sizes = [64, 16], strides = [1, 1]} : vector<64x96xf32> to vector<64x16xf32>
    %24 = vector.extract_strided_slice %22 {offsets = [0, 32], sizes = [64, 16], strides = [1, 1]} : vector<64x96xf32> to vector<64x16xf32>
    %25 = vector.extract_strided_slice %22 {offsets = [0, 64], sizes = [64, 16], strides = [1, 1]} : vector<64x96xf32> to vector<64x16xf32>
    %cst_16 = arith.constant dense<0.000000e+00> : vector<64x64xf32>
    %26 = tpu.matmul %23, %24, %cst_16 {dimension_numbers = #tpu.dot_dimension_numbers<[1], [1], [0], [0], [0, 0, 1, 0], [], []>} : vector<64x16xf32>, vector<64x16xf32>, vector<64x64xf32> -> vector<64x64xf32>
    %27 = arith.addf %26, %3 : vector<64x64xf32>
    %cst_17 = arith.constant dense<0xFF800000> : vector<64xf32>
    %28 = vector.multi_reduction <maximumf>, %27, %cst_17 [1] : vector<64x64xf32> to vector<64xf32>
    %29 = vector.shape_cast %28 : vector<64xf32> to vector<64x1xf32>
    %30 = vector.broadcast %29 : vector<64x1xf32> to vector<64x64xf32>
    %31 = arith.subf %27, %30 : vector<64x64xf32>
    %32 = math.exp %31 : vector<64x64xf32>
    %cst_18 = arith.constant dense<0.000000e+00> : vector<64xf32>
    %33 = vector.multi_reduction <add>, %32, %cst_18 [1] : vector<64x64xf32> to vector<64xf32>
    %34 = vector.shape_cast %33 : vector<64xf32> to vector<64x1xf32>
    %35 = tpu.reciprocal %34 {approx = true} : vector<64x1xf32> -> vector<64x1xf32>
    %36 = vector.broadcast %35 : vector<64x1xf32> to vector<64x64xf32>
    %37 = arith.mulf %32, %36 : vector<64x64xf32>
    %cst_19 = arith.constant dense<0.000000e+00> : vector<64x16xf32>
    %38 = tpu.matmul %37, %25, %cst_19 {dimension_numbers = #tpu.dot_dimension_numbers<[1], [0], [0], [1], [0, 0, 1, 1], [], []>} : vector<64x64xf32>, vector<64x16xf32>, vector<64x16xf32> -> vector<64x16xf32>
    %c0_20 = arith.constant 0 : index
    %c0_21 = arith.constant 0 : index
    %39 = vector.load %arg11[%c0_20, %c0_21] : memref<64x32xf32, #tpu.memory_space<vmem>>, vector<64x16xf32>
    tpu.vector_store %arg11[%c0_20, %c0_21], %38 {strides = array<i32>} : memref<64x32xf32, #tpu.memory_space<vmem>>, vector<64x16xf32>,
    %40 = vector.extract_strided_slice %22 {offsets = [0, 16], sizes = [64, 16], strides = [1, 1]} : vector<64x96xf32> to vector<64x16xf32>
    %41 = vector.extract_strided_slice %22 {offsets = [0, 48], sizes = [64, 16], strides = [1, 1]} : vector<64x96xf32> to vector<64x16xf32>
    %42 = vector.extract_strided_slice %22 {offsets = [0, 80], sizes = [64, 16], strides = [1, 1]} : vector<64x96xf32> to vector<64x16xf32>
    %cst_22 = arith.constant dense<0.000000e+00> : vector<64x64xf32>
    %43 = tpu.matmul %40, %41, %cst_22 {dimension_numbers = #tpu.dot_dimension_numbers<[1], [1], [0], [0], [0, 0, 1, 0], [], []>} : vector<64x16xf32>, vector<64x16xf32>, vector<64x64xf32> -> vector<64x64xf32>
    %44 = arith.addf %43, %3 : vector<64x64xf32>
    %cst_23 = arith.constant dense<0xFF800000> : vector<64xf32>
    %45 = vector.multi_reduction <maximumf>, %44, %cst_23 [1] : vector<64x64xf32> to vector<64xf32>
    %46 = vector.shape_cast %45 : vector<64xf32> to vector<64x1xf32>
    %47 = vector.broadcast %46 : vector<64x1xf32> to vector<64x64xf32>
    %48 = arith.subf %44, %47 : vector<64x64xf32>
    %49 = math.exp %48 : vector<64x64xf32>
    %cst_24 = arith.constant dense<0.000000e+00> : vector<64xf32>
    %50 = vector.multi_reduction <add>, %49, %cst_24 [1] : vector<64x64xf32> to vector<64xf32>
    %51 = vector.shape_cast %50 : vector<64xf32> to vector<64x1xf32>
    %52 = tpu.reciprocal %51 {approx = true} : vector<64x1xf32> -> vector<64x1xf32>
    %53 = vector.broadcast %52 : vector<64x1xf32> to vector<64x64xf32>
    %54 = arith.mulf %49, %53 : vector<64x64xf32>
    %cst_25 = arith.constant dense<0.000000e+00> : vector<64x16xf32>
    %55 = tpu.matmul %54, %42, %cst_25 {dimension_numbers = #tpu.dot_dimension_numbers<[1], [0], [0], [1], [0, 0, 1, 1], [], []>} : vector<64x64xf32>, vector<64x16xf32>, vector<64x16xf32> -> vector<64x16xf32>
    %c0_26 = arith.constant 0 : index
    %c16 = arith.constant 16 : index
    %56 = vector.load %arg11[%c0_26, %c16] : memref<64x32xf32, #tpu.memory_space<vmem>>, vector<64x16xf32>
    tpu.vector_store %arg11[%c0_26, %c16], %55 {strides = array<i32>} : memref<64x32xf32, #tpu.memory_space<vmem>>, vector<64x16xf32>,
    %c0_27 = arith.constant 0 : index
    %c0_28 = arith.constant 0 : index
    %57 = vector.load %arg11[%c0_27, %c0_28] : memref<64x32xf32, #tpu.memory_space<vmem>>, vector<64x32xf32>
    %c0_29 = arith.constant 0 : index
    %c0_30 = arith.constant 0 : index
    %c0_31 = arith.constant 0 : index
    %c0_32 = arith.constant 0 : index
    %58 = vector.load %arg6[%c0_29, %c0_30, %c0_31, %c0_32] : memref<1x2x32x32xf32, #tpu.memory_space<vmem>>, vector<1x1x32x32xf32>
    %59 = vector.shape_cast %58 : vector<1x1x32x32xf32> to vector<32x32xf32>
    %cst_33 = arith.constant dense<0.000000e+00> : vector<64x32xf32>
    %60 = tpu.matmul %57, %59, %cst_33 {dimension_numbers = #tpu.dot_dimension_numbers<[1], [0], [0], [1], [0, 0, 1, 1], [], []>} : vector<64x32xf32>, vector<32x32xf32>, vector<64x32xf32> -> vector<64x32xf32>
    %61 = vector.broadcast %11 : vector<1x32xf32> to vector<64x32xf32>
    %62 = arith.addf %60, %61 : vector<64x32xf32>
    %63 = arith.addf %7, %62 : vector<64x32xf32>
    %cst_34 = arith.constant dense<0.000000e+00> : vector<64xf32>
    %64 = vector.multi_reduction <add>, %63, %cst_34 [1] : vector<64x32xf32> to vector<64xf32>
    %65 = vector.shape_cast %64 : vector<64xf32> to vector<64x1xf32>
    %cst_35 = arith.constant 3.200000e+01 : f32
    %66 = vector.broadcast %cst_35 : f32 to vector<64x1xf32>
    %67 = arith.divf %65, %66 : vector<64x1xf32>
    %68 = vector.broadcast %67 : vector<64x1xf32> to vector<64x32xf32>
    %69 = arith.subf %63, %68 : vector<64x32xf32>
    %70 = arith.mulf %69, %69 : vector<64x32xf32>
    %cst_36 = arith.constant dense<0.000000e+00> : vector<64xf32>
    %71 = vector.multi_reduction <add>, %70, %cst_36 [1] : vector<64x32xf32> to vector<64xf32>
    %72 = vector.shape_cast %71 : vector<64xf32> to vector<64x1xf32>
    %cst_37 = arith.constant 3.200000e+01 : f32
    %73 = vector.broadcast %cst_37 : f32 to vector<64x1xf32>
    %74 = arith.divf %72, %73 : vector<64x1xf32>
    %75 = vector.broadcast %67 : vector<64x1xf32> to vector<64x32xf32>
    %76 = arith.subf %63, %75 : vector<64x32xf32>
    %cst_38 = arith.constant 9.99999974E-6 : f32
    %77 = vector.broadcast %cst_38 : f32 to vector<64x1xf32>
    %78 = arith.addf %74, %77 : vector<64x1xf32>
    %79 = math.rsqrt %78 : vector<64x1xf32>
    %80 = vector.broadcast %79 : vector<64x1xf32> to vector<64x32xf32>
    %81 = arith.mulf %76, %80 : vector<64x32xf32>
    %82 = vector.broadcast %12 : vector<1x32xf32> to vector<64x32xf32>
    %83 = arith.mulf %81, %82 : vector<64x32xf32>
    %84 = vector.broadcast %13 : vector<1x32xf32> to vector<64x32xf32>
    %85 = arith.addf %83, %84 : vector<64x32xf32>
    %c0_39 = arith.constant 0 : index
    %c0_40 = arith.constant 0 : index
    %c0_41 = arith.constant 0 : index
    %c0_42 = arith.constant 0 : index
    %86 = vector.load %arg7[%c0_39, %c0_40, %c0_41, %c0_42] : memref<1x2x32x64xf32, #tpu.memory_space<vmem>>, vector<1x1x32x64xf32>
    %87 = vector.shape_cast %86 : vector<1x1x32x64xf32> to vector<32x64xf32>
    %cst_43 = arith.constant dense<0.000000e+00> : vector<64x64xf32>
    %88 = tpu.matmul %85, %87, %cst_43 {dimension_numbers = #tpu.dot_dimension_numbers<[1], [0], [0], [1], [0, 0, 1, 1], [], []>} : vector<64x32xf32>, vector<32x64xf32>, vector<64x64xf32> -> vector<64x64xf32>
    %89 = vector.broadcast %14 : vector<1x64xf32> to vector<64x64xf32>
    %90 = arith.addf %88, %89 : vector<64x64xf32>
    %cst_44 = arith.constant 0.000000e+00 : f32
    %91 = vector.broadcast %cst_44 : f32 to vector<64x64xf32>
    %92 = arith.maximumf %90, %91 : vector<64x64xf32>
    %c0_45 = arith.constant 0 : index
    %c0_46 = arith.constant 0 : index
    %c0_47 = arith.constant 0 : index
    %c0_48 = arith.constant 0 : index
    %93 = vector.load %arg8[%c0_45, %c0_46, %c0_47, %c0_48] : memref<1x2x64x32xf32, #tpu.memory_space<vmem>>, vector<1x1x64x32xf32>
    %94 = vector.shape_cast %93 : vector<1x1x64x32xf32> to vector<64x32xf32>
    %cst_49 = arith.constant dense<0.000000e+00> : vector<64x32xf32>
    %95 = tpu.matmul %92, %94, %cst_49 {dimension_numbers = #tpu.dot_dimension_numbers<[1], [0], [0], [1], [0, 0, 1, 1], [], []>} : vector<64x64xf32>, vector<64x32xf32>, vector<64x32xf32> -> vector<64x32xf32>
    %96 = vector.broadcast %15 : vector<1x32xf32> to vector<64x32xf32>
    %97 = arith.addf %95, %96 : vector<64x32xf32>
    %98 = arith.addf %85, %97 : vector<64x32xf32>
    %cst_50 = arith.constant dense<0.000000e+00> : vector<64xf32>
    %99 = vector.multi_reduction <add>, %98, %cst_50 [1] : vector<64x32xf32> to vector<64xf32>
    %100 = vector.shape_cast %99 : vector<64xf32> to vector<64x1xf32>
    %cst_51 = arith.constant 3.200000e+01 : f32
    %101 = vector.broadcast %cst_51 : f32 to vector<64x1xf32>
    %102 = arith.divf %100, %101 : vector<64x1xf32>
    %103 = vector.broadcast %102 : vector<64x1xf32> to vector<64x32xf32>
    %104 = arith.subf %98, %103 : vector<64x32xf32>
    %105 = arith.mulf %104, %104 : vector<64x32xf32>
    %cst_52 = arith.constant dense<0.000000e+00> : vector<64xf32>
    %106 = vector.multi_reduction <add>, %105, %cst_52 [1] : vector<64x32xf32> to vector<64xf32>
    %107 = vector.shape_cast %106 : vector<64xf32> to vector<64x1xf32>
    %cst_53 = arith.constant 3.200000e+01 : f32
    %108 = vector.broadcast %cst_53 : f32 to vector<64x1xf32>
    %109 = arith.divf %107, %108 : vector<64x1xf32>
    %110 = vector.broadcast %102 : vector<64x1xf32> to vector<64x32xf32>
    %111 = arith.subf %98, %110 : vector<64x32xf32>
    %cst_54 = arith.constant 9.99999974E-6 : f32
    %112 = vector.broadcast %cst_54 : f32 to vector<64x1xf32>
    %113 = arith.addf %109, %112 : vector<64x1xf32>
    %114 = math.rsqrt %113 : vector<64x1xf32>
    %115 = vector.broadcast %114 : vector<64x1xf32> to vector<64x32xf32>
    %116 = arith.mulf %111, %115 : vector<64x32xf32>
    %117 = vector.broadcast %16 : vector<1x32xf32> to vector<64x32xf32>
    %118 = arith.mulf %116, %117 : vector<64x32xf32>
    %119 = vector.broadcast %17 : vector<1x32xf32> to vector<64x32xf32>
    %120 = arith.addf %118, %119 : vector<64x32xf32>
    %121 = vector.broadcast %1 : vector<64x1xf32> to vector<64x32xf32>
    %122 = arith.mulf %120, %121 : vector<64x32xf32>
    %c0_55 = arith.constant 0 : index
    %c1 = arith.constant 1 : index
    %c0_56 = arith.constant 0 : index
    %c0_57 = arith.constant 0 : index
    %123 = vector.load %arg9[%c0_55, %c1, %c0_56, %c0_57] : memref<1x2x8x128xf32, #tpu.memory_space<vmem>>, vector<1x1x8x128xf32>
    %124 = vector.shape_cast %123 : vector<1x1x8x128xf32> to vector<8x128xf32>
    %125 = vector.extract_strided_slice %124 {offsets = [0, 0], sizes = [1, 96], strides = [1, 1]} : vector<8x128xf32> to vector<1x96xf32>
    %126 = vector.extract_strided_slice %124 {offsets = [1, 0], sizes = [1, 32], strides = [1, 1]} : vector<8x128xf32> to vector<1x32xf32>
    %127 = vector.extract_strided_slice %124 {offsets = [2, 0], sizes = [1, 32], strides = [1, 1]} : vector<8x128xf32> to vector<1x32xf32>
    %128 = vector.extract_strided_slice %124 {offsets = [3, 0], sizes = [1, 32], strides = [1, 1]} : vector<8x128xf32> to vector<1x32xf32>
    %129 = vector.extract_strided_slice %124 {offsets = [4, 0], sizes = [1, 64], strides = [1, 1]} : vector<8x128xf32> to vector<1x64xf32>
    %130 = vector.extract_strided_slice %124 {offsets = [5, 0], sizes = [1, 32], strides = [1, 1]} : vector<8x128xf32> to vector<1x32xf32>
    %131 = vector.extract_strided_slice %124 {offsets = [6, 0], sizes = [1, 32], strides = [1, 1]} : vector<8x128xf32> to vector<1x32xf32>
    %132 = vector.extract_strided_slice %124 {offsets = [7, 0], sizes = [1, 32], strides = [1, 1]} : vector<8x128xf32> to vector<1x32xf32>
    %c0_58 = arith.constant 0 : index
    %c1_59 = arith.constant 1 : index
    %c0_60 = arith.constant 0 : index
    %c0_61 = arith.constant 0 : index
    %133 = vector.load %arg5[%c0_58, %c1_59, %c0_60, %c0_61] : memref<1x2x32x96xf32, #tpu.memory_space<vmem>>, vector<1x1x32x96xf32>
    %134 = vector.shape_cast %133 : vector<1x1x32x96xf32> to vector<32x96xf32>
    %cst_62 = arith.constant dense<0.000000e+00> : vector<64x96xf32>
    %135 = tpu.matmul %122, %134, %cst_62 {dimension_numbers = #tpu.dot_dimension_numbers<[1], [0], [0], [1], [0, 0, 1, 1], [], []>} : vector<64x32xf32>, vector<32x96xf32>, vector<64x96xf32> -> vector<64x96xf32>
    %136 = vector.broadcast %125 : vector<1x96xf32> to vector<64x96xf32>
    %137 = arith.addf %135, %136 : vector<64x96xf32>
    %138 = vector.extract_strided_slice %137 {offsets = [0, 0], sizes = [64, 16], strides = [1, 1]} : vector<64x96xf32> to vector<64x16xf32>
    %139 = vector.extract_strided_slice %137 {offsets = [0, 32], sizes = [64, 16], strides = [1, 1]} : vector<64x96xf32> to vector<64x16xf32>
    %140 = vector.extract_strided_slice %137 {offsets = [0, 64], sizes = [64, 16], strides = [1, 1]} : vector<64x96xf32> to vector<64x16xf32>
    %cst_63 = arith.constant dense<0.000000e+00> : vector<64x64xf32>
    %141 = tpu.matmul %138, %139, %cst_63 {dimension_numbers = #tpu.dot_dimension_numbers<[1], [1], [0], [0], [0, 0, 1, 0], [], []>} : vector<64x16xf32>, vector<64x16xf32>, vector<64x64xf32> -> vector<64x64xf32>
    %142 = arith.addf %141, %3 : vector<64x64xf32>
    %cst_64 = arith.constant dense<0xFF800000> : vector<64xf32>
    %143 = vector.multi_reduction <maximumf>, %142, %cst_64 [1] : vector<64x64xf32> to vector<64xf32>
    %144 = vector.shape_cast %143 : vector<64xf32> to vector<64x1xf32>
    %145 = vector.broadcast %144 : vector<64x1xf32> to vector<64x64xf32>
    %146 = arith.subf %142, %145 : vector<64x64xf32>
    %147 = math.exp %146 : vector<64x64xf32>
    %cst_65 = arith.constant dense<0.000000e+00> : vector<64xf32>
    %148 = vector.multi_reduction <add>, %147, %cst_65 [1] : vector<64x64xf32> to vector<64xf32>
    %149 = vector.shape_cast %148 : vector<64xf32> to vector<64x1xf32>
    %150 = tpu.reciprocal %149 {approx = true} : vector<64x1xf32> -> vector<64x1xf32>
    %151 = vector.broadcast %150 : vector<64x1xf32> to vector<64x64xf32>
    %152 = arith.mulf %147, %151 : vector<64x64xf32>
    %cst_66 = arith.constant dense<0.000000e+00> : vector<64x16xf32>
    %153 = tpu.matmul %152, %140, %cst_66 {dimension_numbers = #tpu.dot_dimension_numbers<[1], [0], [0], [1], [0, 0, 1, 1], [], []>} : vector<64x64xf32>, vector<64x16xf32>, vector<64x16xf32> -> vector<64x16xf32>
    %c0_67 = arith.constant 0 : index
    %c0_68 = arith.constant 0 : index
    %154 = vector.load %arg11[%c0_67, %c0_68] : memref<64x32xf32, #tpu.memory_space<vmem>>, vector<64x16xf32>
    tpu.vector_store %arg11[%c0_67, %c0_68], %153 {strides = array<i32>} : memref<64x32xf32, #tpu.memory_space<vmem>>, vector<64x16xf32>,
    %155 = vector.extract_strided_slice %137 {offsets = [0, 16], sizes = [64, 16], strides = [1, 1]} : vector<64x96xf32> to vector<64x16xf32>
    %156 = vector.extract_strided_slice %137 {offsets = [0, 48], sizes = [64, 16], strides = [1, 1]} : vector<64x96xf32> to vector<64x16xf32>
    %157 = vector.extract_strided_slice %137 {offsets = [0, 80], sizes = [64, 16], strides = [1, 1]} : vector<64x96xf32> to vector<64x16xf32>
    %cst_69 = arith.constant dense<0.000000e+00> : vector<64x64xf32>
    %158 = tpu.matmul %155, %156, %cst_69 {dimension_numbers = #tpu.dot_dimension_numbers<[1], [1], [0], [0], [0, 0, 1, 0], [], []>} : vector<64x16xf32>, vector<64x16xf32>, vector<64x64xf32> -> vector<64x64xf32>
    %159 = arith.addf %158, %3 : vector<64x64xf32>
    %cst_70 = arith.constant dense<0xFF800000> : vector<64xf32>
    %160 = vector.multi_reduction <maximumf>, %159, %cst_70 [1] : vector<64x64xf32> to vector<64xf32>
    %161 = vector.shape_cast %160 : vector<64xf32> to vector<64x1xf32>
    %162 = vector.broadcast %161 : vector<64x1xf32> to vector<64x64xf32>
    %163 = arith.subf %159, %162 : vector<64x64xf32>
    %164 = math.exp %163 : vector<64x64xf32>
    %cst_71 = arith.constant dense<0.000000e+00> : vector<64xf32>
    %165 = vector.multi_reduction <add>, %164, %cst_71 [1] : vector<64x64xf32> to vector<64xf32>
    %166 = vector.shape_cast %165 : vector<64xf32> to vector<64x1xf32>
    %167 = tpu.reciprocal %166 {approx = true} : vector<64x1xf32> -> vector<64x1xf32>
    %168 = vector.broadcast %167 : vector<64x1xf32> to vector<64x64xf32>
    %169 = arith.mulf %164, %168 : vector<64x64xf32>
    %cst_72 = arith.constant dense<0.000000e+00> : vector<64x16xf32>
    %170 = tpu.matmul %169, %157, %cst_72 {dimension_numbers = #tpu.dot_dimension_numbers<[1], [0], [0], [1], [0, 0, 1, 1], [], []>} : vector<64x64xf32>, vector<64x16xf32>, vector<64x16xf32> -> vector<64x16xf32>
    %c0_73 = arith.constant 0 : index
    %c16_74 = arith.constant 16 : index
    %171 = vector.load %arg11[%c0_73, %c16_74] : memref<64x32xf32, #tpu.memory_space<vmem>>, vector<64x16xf32>
    tpu.vector_store %arg11[%c0_73, %c16_74], %170 {strides = array<i32>} : memref<64x32xf32, #tpu.memory_space<vmem>>, vector<64x16xf32>,
    %c0_75 = arith.constant 0 : index
    %c0_76 = arith.constant 0 : index
    %172 = vector.load %arg11[%c0_75, %c0_76] : memref<64x32xf32, #tpu.memory_space<vmem>>, vector<64x32xf32>
    %c0_77 = arith.constant 0 : index
    %c1_78 = arith.constant 1 : index
    %c0_79 = arith.constant 0 : index
    %c0_80 = arith.constant 0 : index
    %173 = vector.load %arg6[%c0_77, %c1_78, %c0_79, %c0_80] : memref<1x2x32x32xf32, #tpu.memory_space<vmem>>, vector<1x1x32x32xf32>
    %174 = vector.shape_cast %173 : vector<1x1x32x32xf32> to vector<32x32xf32>
    %cst_81 = arith.constant dense<0.000000e+00> : vector<64x32xf32>
    %175 = tpu.matmul %172, %174, %cst_81 {dimension_numbers = #tpu.dot_dimension_numbers<[1], [0], [0], [1], [0, 0, 1, 1], [], []>} : vector<64x32xf32>, vector<32x32xf32>, vector<64x32xf32> -> vector<64x32xf32>
    %176 = vector.broadcast %126 : vector<1x32xf32> to vector<64x32xf32>
    %177 = arith.addf %175, %176 : vector<64x32xf32>
    %178 = arith.addf %122, %177 : vector<64x32xf32>
    %cst_82 = arith.constant dense<0.000000e+00> : vector<64xf32>
    %179 = vector.multi_reduction <add>, %178, %cst_82 [1] : vector<64x32xf32> to vector<64xf32>
    %180 = vector.shape_cast %179 : vector<64xf32> to vector<64x1xf32>
    %cst_83 = arith.constant 3.200000e+01 : f32
    %181 = vector.broadcast %cst_83 : f32 to vector<64x1xf32>
    %182 = arith.divf %180, %181 : vector<64x1xf32>
    %183 = vector.broadcast %182 : vector<64x1xf32> to vector<64x32xf32>
    %184 = arith.subf %178, %183 : vector<64x32xf32>
    %185 = arith.mulf %184, %184 : vector<64x32xf32>
    %cst_84 = arith.constant dense<0.000000e+00> : vector<64xf32>
    %186 = vector.multi_reduction <add>, %185, %cst_84 [1] : vector<64x32xf32> to vector<64xf32>
    %187 = vector.shape_cast %186 : vector<64xf32> to vector<64x1xf32>
    %cst_85 = arith.constant 3.200000e+01 : f32
    %188 = vector.broadcast %cst_85 : f32 to vector<64x1xf32>
    %189 = arith.divf %187, %188 : vector<64x1xf32>
    %190 = vector.broadcast %182 : vector<64x1xf32> to vector<64x32xf32>
    %191 = arith.subf %178, %190 : vector<64x32xf32>
    %cst_86 = arith.constant 9.99999974E-6 : f32
    %192 = vector.broadcast %cst_86 : f32 to vector<64x1xf32>
    %193 = arith.addf %189, %192 : vector<64x1xf32>
    %194 = math.rsqrt %193 : vector<64x1xf32>
    %195 = vector.broadcast %194 : vector<64x1xf32> to vector<64x32xf32>
    %196 = arith.mulf %191, %195 : vector<64x32xf32>
    %197 = vector.broadcast %127 : vector<1x32xf32> to vector<64x32xf32>
    %198 = arith.mulf %196, %197 : vector<64x32xf32>
    %199 = vector.broadcast %128 : vector<1x32xf32> to vector<64x32xf32>
    %200 = arith.addf %198, %199 : vector<64x32xf32>
    %c0_87 = arith.constant 0 : index
    %c1_88 = arith.constant 1 : index
    %c0_89 = arith.constant 0 : index
    %c0_90 = arith.constant 0 : index
    %201 = vector.load %arg7[%c0_87, %c1_88, %c0_89, %c0_90] : memref<1x2x32x64xf32, #tpu.memory_space<vmem>>, vector<1x1x32x64xf32>
    %202 = vector.shape_cast %201 : vector<1x1x32x64xf32> to vector<32x64xf32>
    %cst_91 = arith.constant dense<0.000000e+00> : vector<64x64xf32>
    %203 = tpu.matmul %200, %202, %cst_91 {dimension_numbers = #tpu.dot_dimension_numbers<[1], [0], [0], [1], [0, 0, 1, 1], [], []>} : vector<64x32xf32>, vector<32x64xf32>, vector<64x64xf32> -> vector<64x64xf32>
    %204 = vector.broadcast %129 : vector<1x64xf32> to vector<64x64xf32>
    %205 = arith.addf %203, %204 : vector<64x64xf32>
    %cst_92 = arith.constant 0.000000e+00 : f32
    %206 = vector.broadcast %cst_92 : f32 to vector<64x64xf32>
    %207 = arith.maximumf %205, %206 : vector<64x64xf32>
    %c0_93 = arith.constant 0 : index
    %c1_94 = arith.constant 1 : index
    %c0_95 = arith.constant 0 : index
    %c0_96 = arith.constant 0 : index
    %208 = vector.load %arg8[%c0_93, %c1_94, %c0_95, %c0_96] : memref<1x2x64x32xf32, #tpu.memory_space<vmem>>, vector<1x1x64x32xf32>
    %209 = vector.shape_cast %208 : vector<1x1x64x32xf32> to vector<64x32xf32>
    %cst_97 = arith.constant dense<0.000000e+00> : vector<64x32xf32>
    %210 = tpu.matmul %207, %209, %cst_97 {dimension_numbers = #tpu.dot_dimension_numbers<[1], [0], [0], [1], [0, 0, 1, 1], [], []>} : vector<64x64xf32>, vector<64x32xf32>, vector<64x32xf32> -> vector<64x32xf32>
    %211 = vector.broadcast %130 : vector<1x32xf32> to vector<64x32xf32>
    %212 = arith.addf %210, %211 : vector<64x32xf32>
    %213 = arith.addf %200, %212 : vector<64x32xf32>
    %cst_98 = arith.constant dense<0.000000e+00> : vector<64xf32>
    %214 = vector.multi_reduction <add>, %213, %cst_98 [1] : vector<64x32xf32> to vector<64xf32>
    %215 = vector.shape_cast %214 : vector<64xf32> to vector<64x1xf32>
    %cst_99 = arith.constant 3.200000e+01 : f32
    %216 = vector.broadcast %cst_99 : f32 to vector<64x1xf32>
    %217 = arith.divf %215, %216 : vector<64x1xf32>
    %218 = vector.broadcast %217 : vector<64x1xf32> to vector<64x32xf32>
    %219 = arith.subf %213, %218 : vector<64x32xf32>
    %220 = arith.mulf %219, %219 : vector<64x32xf32>
    %cst_100 = arith.constant dense<0.000000e+00> : vector<64xf32>
    %221 = vector.multi_reduction <add>, %220, %cst_100 [1] : vector<64x32xf32> to vector<64xf32>
    %222 = vector.shape_cast %221 : vector<64xf32> to vector<64x1xf32>
    %cst_101 = arith.constant 3.200000e+01 : f32
    %223 = vector.broadcast %cst_101 : f32 to vector<64x1xf32>
    %224 = arith.divf %222, %223 : vector<64x1xf32>
    %225 = vector.broadcast %217 : vector<64x1xf32> to vector<64x32xf32>
    %226 = arith.subf %213, %225 : vector<64x32xf32>
    %cst_102 = arith.constant 9.99999974E-6 : f32
    %227 = vector.broadcast %cst_102 : f32 to vector<64x1xf32>
    %228 = arith.addf %224, %227 : vector<64x1xf32>
    %229 = math.rsqrt %228 : vector<64x1xf32>
    %230 = vector.broadcast %229 : vector<64x1xf32> to vector<64x32xf32>
    %231 = arith.mulf %226, %230 : vector<64x32xf32>
    %232 = vector.broadcast %131 : vector<1x32xf32> to vector<64x32xf32>
    %233 = arith.mulf %231, %232 : vector<64x32xf32>
    %234 = vector.broadcast %132 : vector<1x32xf32> to vector<64x32xf32>
    %235 = arith.addf %233, %234 : vector<64x32xf32>
    %236 = vector.broadcast %1 : vector<64x1xf32> to vector<64x32xf32>
    %237 = arith.mulf %235, %236 : vector<64x32xf32>
    %c0_103 = arith.constant 0 : index
    %c0_104 = arith.constant 0 : index
    %c0_105 = arith.constant 0 : index
    %238 = vector.load %arg4[%c0_103, %c0_104, %c0_105] : memref<1x8x64xf32, #tpu.memory_space<vmem>>, vector<1x8x64xf32>
    %239 = vector.shape_cast %238 : vector<1x8x64xf32> to vector<8x64xf32>
    %cst_106 = arith.constant dense<0.000000e+00> : vector<8x32xf32>
    %240 = tpu.matmul %239, %237, %cst_106 {dimension_numbers = #tpu.dot_dimension_numbers<[1], [0], [0], [1], [0, 0, 1, 1], [], []>} : vector<8x64xf32>, vector<64x32xf32>, vector<8x32xf32> -> vector<8x32xf32>
    %c0_107 = arith.constant 0 : index
    %c0_108 = arith.constant 0 : index
    %c0_109 = arith.constant 0 : index
    %241 = vector.load %arg10[%c0_107, %c0_108, %c0_109] : memref<1x8x32xf32, #tpu.memory_space<vmem>>, vector<1x8x32xf32>
    %242 = vector.shape_cast %241 : vector<1x8x32xf32> to vector<8x32xf32>
    %243 = vector.shape_cast %240 : vector<8x32xf32> to vector<1x8x32xf32>
    tpu.vector_store %arg10[%c0_107, %c0_108, %c0_109], %243 {strides = array<i32>} : memref<1x8x32xf32, #tpu.memory_space<vmem>>, vector<1x8x32xf32>,
    return
  }
  func.func @transform_0(%arg0: i32) -> (i32, i32, i32) {
    %c0_i32 = arith.constant 0 : i32
    %c0_i32_0 = arith.constant 0 : i32
    %c0_i32_1 = arith.constant 0 : i32
    return %arg0, %c0_i32, %c0_i32_0 : i32, i32, i32
  }
  func.func @transform_1(%arg0: i32) -> (i32, i32, i32) {
    %c0_i32 = arith.constant 0 : i32
    %c0_i32_0 = arith.constant 0 : i32
    %c0_i32_1 = arith.constant 0 : i32
    return %arg0, %c0_i32, %c0_i32_0 : i32, i32, i32
  }
  func.func @transform_2(%arg0: i32) -> (i32, i32, i32) {
    %c0_i32 = arith.constant 0 : i32
    %c0_i32_0 = arith.constant 0 : i32
    %c0_i32_1 = arith.constant 0 : i32
    return %arg0, %c0_i32, %c0_i32_0 : i32, i32, i32
  }
  func.func @transform_3(%arg0: i32) -> (i32, i32, i32) {
    %c0_i32 = arith.constant 0 : i32
    %c0_i32_0 = arith.constant 0 : i32
    %c0_i32_1 = arith.constant 0 : i32
    return %arg0, %c0_i32, %c0_i32_0 : i32, i32, i32
  }
  func.func @transform_4(%arg0: i32) -> (i32, i32, i32, i32) {
    %c0_i32 = arith.constant 0 : i32
    %c0_i32_0 = arith.constant 0 : i32
    %c0_i32_1 = arith.constant 0 : i32
    %c0_i32_2 = arith.constant 0 : i32
    return %arg0, %c0_i32, %c0_i32_0, %c0_i32_1 : i32, i32, i32, i32
  }
  func.func @transform_5(%arg0: i32) -> (i32, i32, i32, i32) {
    %c0_i32 = arith.constant 0 : i32
    %c0_i32_0 = arith.constant 0 : i32
    %c0_i32_1 = arith.constant 0 : i32
    %c0_i32_2 = arith.constant 0 : i32
    return %arg0, %c0_i32, %c0_i32_0, %c0_i32_1 : i32, i32, i32, i32
  }
  func.func @transform_6(%arg0: i32) -> (i32, i32, i32, i32) {
    %c0_i32 = arith.constant 0 : i32
    %c0_i32_0 = arith.constant 0 : i32
    %c0_i32_1 = arith.constant 0 : i32
    %c0_i32_2 = arith.constant 0 : i32
    return %arg0, %c0_i32, %c0_i32_0, %c0_i32_1 : i32, i32, i32, i32
  }
  func.func @transform_7(%arg0: i32) -> (i32, i32, i32, i32) {
    %c0_i32 = arith.constant 0 : i32
    %c0_i32_0 = arith.constant 0 : i32
    %c0_i32_1 = arith.constant 0 : i32
    %c0_i32_2 = arith.constant 0 : i32
    return %arg0, %c0_i32, %c0_i32_0, %c0_i32_1 : i32, i32, i32, i32
  }
  func.func @transform_8(%arg0: i32) -> (i32, i32, i32, i32) {
    %c0_i32 = arith.constant 0 : i32
    %c0_i32_0 = arith.constant 0 : i32
    %c0_i32_1 = arith.constant 0 : i32
    %c0_i32_2 = arith.constant 0 : i32
    return %arg0, %c0_i32, %c0_i32_0, %c0_i32_1 : i32, i32, i32, i32
  }
  func.func @transform_9(%arg0: i32) -> (i32, i32, i32) {
    %c0_i32 = arith.constant 0 : i32
    %c0_i32_0 = arith.constant 0 : i32
    %c0_i32_1 = arith.constant 0 : i32
    return %arg0, %c0_i32, %c0_i32_0 : i32, i32, i32
  }
}

</mosaic_0001>

<llo_original>
// kernel: squeeze.4
$region0: #{squeeze.4}
  %s0 = inlined_call_operand.vmem [shape: f32[1,6,32], index: 0, kind: input, shape index: {}]
  %s1 = inlined_call_operand.vmem [shape: f32[2,3,32], index: 1, kind: output, shape index: {}]
  $region1: #{squeeze.4} parent=0
    #allocation0 [shape = 'u8[8192]{0}', space=vmem, size = 0x2000, scoped, tag = 'scoped mem for output reshape']
    %v2 = vld [vmem:[%s0] sm:$0x3f]
    %vm3 = vcmask 261120
    %4 = vst.msk [vmem:[#allocation0] sm:$0x7] %vm3, %v2
    %s5 = scalar_lea.vmem [#allocation0], 5
    %6 = vst.msk [vmem:[%s5] sm:$0x38] %vm3, %v2
    %s8 = sshllo.u32 0, 4
    %v10 = vld [vmem:[#allocation0] sm:%s8]
    %s11 = sshllo.u32 0, 4
    %12 = vst [vmem:[%s1] sm:%s11] %v10
    %s13 = scalar_lea.vmem [#allocation0], 8
    %v14 = vld [vmem:[%s13] sm:%s8]
    %s15 = sshllo.u32 0, 4
    %s16 = scalar_lea.vmem %s1, 4
    %17 = vst [vmem:[%s16] sm:%s15] %v14

// kernel: transformer_memnet_forward.1
$region0: #{transformer_memnet_forward.1}
  #allocation0 [shape = 'u32[]', space=smem, size = 0x4, offset = 0x4, fixed_abs, tag = 'smem constant byte address 0x4 - core index']
  #allocation1 [shape = 'u32[144,128]{1,0:T(1,128)}', space=vmem, size = 0x12000, scoped, tag = 'internal scratch']
  #allocation2 [shape = 'f32[64,32]{1,0:T(8,128)}', space=vmem, size = 0x8000, scoped, tag = 'scratch operand']
  %s0 = inlined_call_operand.vmem [shape: f32[2,64,32], index: 0, kind: input, shape index: {}]
  %s1 = inlined_call_operand.vmem [shape: f32[2,64,1], index: 1, kind: input, shape index: {}]
  %s2 = inlined_call_operand.vmem [shape: f32[2,64,64], index: 2, kind: input, shape index: {}]
  %s3 = inlined_call_operand.vmem [shape: f32[2,8,64], index: 3, kind: input, shape index: {}]
  %s4 = inlined_call_operand.vmem [shape: f32[2,2,32,96], index: 4, kind: input, shape index: {}]
  %s5 = inlined_call_operand.vmem [shape: f32[2,2,32,32], index: 5, kind: input, shape index: {}]
  %s6 = inlined_call_operand.vmem [shape: f32[2,2,32,64], index: 6, kind: input, shape index: {}]
  %s7 = inlined_call_operand.vmem [shape: f32[2,2,64,32], index: 7, kind: input, shape index: {}]
  %s8 = inlined_call_operand.vmem [shape: f32[2,2,8,128], index: 8, kind: input, shape index: {}]
  %s9 = inlined_call_operand.vmem [shape: f32[2,8,32], index: 9, kind: output, shape index: {}]
  %s10 = sld [smem:[#allocation0]]
  $region69: #{transformer_memnet_forward.1} parent=0
    _
  %s12 = ssub.s32 1, %s10
  %s13 = scalar_select 0, %s12, %s10
  loop: start=0, step=1, limit=4
  $region2: #{transformer_memnet_forward.1} parent=0 // loop_pre_header
    _
  $region3: #{transformer_memnet_forward.1} parent=0 // loop_header
    %s15 = sphi 0, %s19
    %p16 = scmp.ge.s32.totalorder %s15, 4
    %s25 = sphi 0, %s27
    %s28 = sphi 0, %s25
    %s29 = sphi 0, %s28
    %s45 = sphi 0, %s29
    %s51 = sphi 0, %s53
    %s54 = sphi 0, %s51
    %s55 = sphi 0, %s54
    %s71 = sphi 0, %s55
    %s77 = sphi 0, %s79
    %s80 = sphi 0, %s77
    %s81 = sphi 0, %s80
    %s97 = sphi 0, %s81
    %s103 = sphi 0, %s105
    %s106 = sphi 0, %s103
    %s107 = sphi 0, %s106
    %s123 = sphi 0, %s107
    %s129 = sphi 0, %s131
    %s132 = sphi 0, %s129
    %s133 = sphi 0, %s132
    %s149 = sphi 0, %s133
    %s155 = sphi 0, %s157
    %s158 = sphi 0, %s155
    %s159 = sphi 0, %s158
    %s175 = sphi 0, %s159
    %s181 = sphi 0, %s183
    %s184 = sphi 0, %s181
    %s185 = sphi 0, %s184
    %s201 = sphi 0, %s185
    %s207 = sphi 0, %s209
    %s210 = sphi 0, %s207
    %s211 = sphi 0, %s210
    %s227 = sphi 0, %s211
    %s233 = sphi 0, %s235
    %s236 = sphi 0, %s233
    %s237 = sphi 0, %s236
    %s253 = sphi 0, %s237
    %s259 = sphi 0, %s261
    %s262 = sphi 0, %s259
    %s263 = sphi 0, %s262
    %s279 = sphi 0, %s263
  $region4: #{transformer_memnet_forward.1} parent=0 // loop_header_branch
    %18 = sbr.rel (%p16) target = $region8
  $region5: #{transformer_memnet_forward.1} parent=0 // loop_body
    %s20 = ssub.s32 %s15, 1
    %s21 = ssub.s32 %s15, 2
    %s22 = sadd.s32 %s15, 1
    %s23 = ssub.s32 %s15, %s22
    %p24 = scmp.eq.s32.totalorder %s23, 0
    %s26 = sadd.s32 %s25, 1
    %s27 = scalar_select %p24, %s25, %s26
    %p30 = pneg %p24
    %p31 = scmp.eq.s32.totalorder %s15, 1
    %p32 = por %p30, %p31
    %p33 = scmp.ne.s32.totalorder %s25, %s28
    %p34 = scmp.eq.s32.totalorder %s15, 0
    %p35 = por %p33, %p34
    %p36 = scmp.ne.s32.totalorder %s25, %s28
    %p37 = scmp.eq.s32.totalorder %s20, 1
    %p38 = por %p36, %p37
    %p39 = scmp.ne.s32.totalorder %s28, %s29
    %p40 = scmp.eq.s32.totalorder %s20, 0
    %p41 = por %p39, %p40
    %p42 = scmp.ne.s32.totalorder %s28, %s29
    %p43 = scmp.eq.s32.totalorder %s21, 1
    %p44 = por %p42, %p43
    %p46 = scmp.ne.s32.totalorder %s29, %s45
    %p47 = scmp.eq.s32.totalorder %s21, 0
    %p48 = por %p46, %p47
    %s49 = ssub.s32 %s15, %s22
    %p50 = scmp.eq.s32.totalorder %s49, 0
    %s52 = sadd.s32 %s51, 1
    %s53 = scalar_select %p50, %s51, %s52
    %p56 = pneg %p50
    %p57 = scmp.eq.s32.totalorder %s15, 1
    %p58 = por %p56, %p57
    %p59 = scmp.ne.s32.totalorder %s51, %s54
    %p60 = scmp.eq.s32.totalorder %s15, 0
    %p61 = por %p59, %p60
    %p62 = scmp.ne.s32.totalorder %s51, %s54
    %p63 = scmp.eq.s32.totalorder %s20, 1
    %p64 = por %p62, %p63
    %p65 = scmp.ne.s32.totalorder %s54, %s55
    %p66 = scmp.eq.s32.totalorder %s20, 0
    %p67 = por %p65, %p66
    %p68 = scmp.ne.s32.totalorder %s54, %s55
    %p69 = scmp.eq.s32.totalorder %s21, 1
    %p70 = por %p68, %p69
    %p72 = scmp.ne.s32.totalorder %s55, %s71
    %p73 = scmp.eq.s32.totalorder %s21, 0
    %p74 = por %p72, %p73
    %s75 = ssub.s32 %s15, %s22
    %p76 = scmp.eq.s32.totalorder %s75, 0
    %s78 = sadd.s32 %s77, 1
    %s79 = scalar_select %p76, %s77, %s78
    %p82 = pneg %p76
    %p83 = scmp.eq.s32.totalorder %s15, 1
    %p84 = por %p82, %p83
    %p85 = scmp.ne.s32.totalorder %s77, %s80
    %p86 = scmp.eq.s32.totalorder %s15, 0
    %p87 = por %p85, %p86
    %p88 = scmp.ne.s32.totalorder %s77, %s80
    %p89 = scmp.eq.s32.totalorder %s20, 1
    %p90 = por %p88, %p89
    %p91 = scmp.ne.s32.totalorder %s80, %s81
    %p92 = scmp.eq.s32.totalorder %s20, 0
    %p93 = por %p91, %p92
    %p94 = scmp.ne.s32.totalorder %s80, %s81
    %p95 = scmp.eq.s32.totalorder %s21, 1
    %p96 = por %p94, %p95
    %p98 = scmp.ne.s32.totalorder %s81, %s97
    %p99 = scmp.eq.s32.totalorder %s21, 0
    %p100 = por %p98, %p99
    %s101 = ssub.s32 %s15, %s22
    %p102 = scmp.eq.s32.totalorder %s101, 0
    %s104 = sadd.s32 %s103, 1
    %s105 = scalar_select %p102, %s103, %s104
    %p108 = pneg %p102
    %p109 = scmp.eq.s32.totalorder %s15, 1
    %p110 = por %p108, %p109
    %p111 = scmp.ne.s32.totalorder %s103, %s106
    %p112 = scmp.eq.s32.totalorder %s15, 0
    %p113 = por %p111, %p112
    %p114 = scmp.ne.s32.totalorder %s103, %s106
    %p115 = scmp.eq.s32.totalorder %s20, 1
    %p116 = por %p114, %p115
    %p117 = scmp.ne.s32.totalorder %s106, %s107
    %p118 = scmp.eq.s32.totalorder %s20, 0
    %p119 = por %p117, %p118
    %p120 = scmp.ne.s32.totalorder %s106, %s107
    %p121 = scmp.eq.s32.totalorder %s21, 1
    %p122 = por %p120, %p121
    %p124 = scmp.ne.s32.totalorder %s107, %s123
    %p125 = scmp.eq.s32.totalorder %s21, 0
    %p126 = por %p124, %p125
    %s127 = ssub.s32 %s15, %s22
    %p128 = scmp.eq.s32.totalorder %s127, 0
    %s130 = sadd.s32 %s129, 1
    %s131 = scalar_select %p128, %s129, %s130
    %p134 = pneg %p128
    %p135 = scmp.eq.s32.totalorder %s15, 1
    %p136 = por %p134, %p135
    %p137 = scmp.ne.s32.totalorder %s129, %s132
    %p138 = scmp.eq.s32.totalorder %s15, 0
    %p139 = por %p137, %p138
    %p140 = scmp.ne.s32.totalorder %s129, %s132
    %p141 = scmp.eq.s32.totalorder %s20, 1
    %p142 = por %p140, %p141
    %p143 = scmp.ne.s32.totalorder %s132, %s133
    %p144 = scmp.eq.s32.totalorder %s20, 0
    %p145 = por %p143, %p144
    %p146 = scmp.ne.s32.totalorder %s132, %s133
    %p147 = scmp.eq.s32.totalorder %s21, 1
    %p148 = por %p146, %p147
    %p150 = scmp.ne.s32.totalorder %s133, %s149
    %p151 = scmp.eq.s32.totalorder %s21, 0
    %p152 = por %p150, %p151
    %s153 = ssub.s32 %s15, %s22
    %p154 = scmp.eq.s32.totalorder %s153, 0
    %s156 = sadd.s32 %s155, 1
    %s157 = scalar_select %p154, %s155, %s156
    %p160 = pneg %p154
    %p161 = scmp.eq.s32.totalorder %s15, 1
    %p162 = por %p160, %p161
    %p163 = scmp.ne.s32.totalorder %s155, %s158
    %p164 = scmp.eq.s32.totalorder %s15, 0
    %p165 = por %p163, %p164
    %p166 = scmp.ne.s32.totalorder %s155, %s158
    %p167 = scmp.eq.s32.totalorder %s20, 1
    %p168 = por %p166, %p167
    %p169 = scmp.ne.s32.totalorder %s158, %s159
    %p170 = scmp.eq.s32.totalorder %s20, 0
    %p171 = por %p169, %p170
    %p172 = scmp.ne.s32.totalorder %s158, %s159
    %p173 = scmp.eq.s32.totalorder %s21, 1
    %p174 = por %p172, %p173
    %p176 = scmp.ne.s32.totalorder %s159, %s175
    %p177 = scmp.eq.s32.totalorder %s21, 0
    %p178 = por %p176, %p177
    %s179 = ssub.s32 %s15, %s22
    %p180 = scmp.eq.s32.totalorder %s179, 0
    %s182 = sadd.s32 %s181, 1
    %s183 = scalar_select %p180, %s181, %s182
    %p186 = pneg %p180
    %p187 = scmp.eq.s32.totalorder %s15, 1
    %p188 = por %p186, %p187
    %p189 = scmp.ne.s32.totalorder %s181, %s184
    %p190 = scmp.eq.s32.totalorder %s15, 0
    %p191 = por %p189, %p190
    %p192 = scmp.ne.s32.totalorder %s181, %s184
    %p193 = scmp.eq.s32.totalorder %s20, 1
    %p194 = por %p192, %p193
    %p195 = scmp.ne.s32.totalorder %s184, %s185
    %p196 = scmp.eq.s32.totalorder %s20, 0
    %p197 = por %p195, %p196
    %p198 = scmp.ne.s32.totalorder %s184, %s185
    %p199 = scmp.eq.s32.totalorder %s21, 1
    %p200 = por %p198, %p199
    %p202 = scmp.ne.s32.totalorder %s185, %s201
    %p203 = scmp.eq.s32.totalorder %s21, 0
    %p204 = por %p202, %p203
    %s205 = ssub.s32 %s15, %s22
    %p206 = scmp.eq.s32.totalorder %s205, 0
    %s208 = sadd.s32 %s207, 1
    %s209 = scalar_select %p206, %s207, %s208
    %p212 = pneg %p206
    %p213 = scmp.eq.s32.totalorder %s15, 1
    %p214 = por %p212, %p213
    %p215 = scmp.ne.s32.totalorder %s207, %s210
    %p216 = scmp.eq.s32.totalorder %s15, 0
    %p217 = por %p215, %p216
    %p218 = scmp.ne.s32.totalorder %s207, %s210
    %p219 = scmp.eq.s32.totalorder %s20, 1
    %p220 = por %p218, %p219
    %p221 = scmp.ne.s32.totalorder %s210, %s211
    %p222 = scmp.eq.s32.totalorder %s20, 0
    %p223 = por %p221, %p222
    %p224 = scmp.ne.s32.totalorder %s210, %s211
    %p225 = scmp.eq.s32.totalorder %s21, 1
    %p226 = por %p224, %p225
    %p228 = scmp.ne.s32.totalorder %s211, %s227
    %p229 = scmp.eq.s32.totalorder %s21, 0
    %p230 = por %p228, %p229
    %s231 = ssub.s32 %s15, %s22
    %p232 = scmp.eq.s32.totalorder %s231, 0
    %s234 = sadd.s32 %s233, 1
    %s235 = scalar_select %p232, %s233, %s234
    %p238 = pneg %p232
    %p239 = scmp.eq.s32.totalorder %s15, 1
    %p240 = por %p238, %p239
    %p241 = scmp.ne.s32.totalorder %s233, %s236
    %p242 = scmp.eq.s32.totalorder %s15, 0
    %p243 = por %p241, %p242
    %p244 = scmp.ne.s32.totalorder %s233, %s236
    %p245 = scmp.eq.s32.totalorder %s20, 1
    %p246 = por %p244, %p245
    %p247 = scmp.ne.s32.totalorder %s236, %s237
    %p248 = scmp.eq.s32.totalorder %s20, 0
    %p249 = por %p247, %p248
    %p250 = scmp.ne.s32.totalorder %s236, %s237
    %p251 = scmp.eq.s32.totalorder %s21, 1
    %p252 = por %p250, %p251
    %p254 = scmp.ne.s32.totalorder %s237, %s253
    %p255 = scmp.eq.s32.totalorder %s21, 0
    %p256 = por %p254, %p255
    %s257 = ssub.s32 %s15, %s22
    %p258 = scmp.eq.s32.totalorder %s257, 0
    %s260 = sadd.s32 %s259, 1
    %s261 = scalar_select %p258, %s259, %s260
    %p264 = pneg %p258
    %p265 = scmp.eq.s32.totalorder %s15, 1
    %p266 = por %p264, %p265
    %p267 = scmp.ne.s32.totalorder %s259, %s262
    %p268 = scmp.eq.s32.totalorder %s15, 0
    %p269 = por %p267, %p268
    %p270 = scmp.ne.s32.totalorder %s259, %s262
    %p271 = scmp.eq.s32.totalorder %s20, 1
    %p272 = por %p270, %p271
    %p273 = scmp.ne.s32.totalorder %s262, %s263
    %p274 = scmp.eq.s32.totalorder %s20, 0
    %p275 = por %p273, %p274
    %p276 = scmp.ne.s32.totalorder %s262, %s263
    %p277 = scmp.eq.s32.totalorder %s21, 1
    %p278 = por %p276, %p277
    %p280 = scmp.ne.s32.totalorder %s263, %s279
    %p281 = scmp.eq.s32.totalorder %s21, 0
    %p282 = por %p280, %p281
    %p283 = scmp.le.s32.totalorder 1, %s15
    %p284 = scmp.lt.s32.totalorder %s15, 3
    %p285 = pnand %p283, %p284
    %p286 = pneg %p285
    // Predicated region
    $region9: #{transformer_memnet_forward.1} parent=5 // pred_check
      _
    $region10: #{transformer_memnet_forward.1} parent=5 // pred_check_branch
      %288 = sbr.rel (%p285) target = $region12
    $region11: #{transformer_memnet_forward.1} parent=5 // pred_region
      %s289 = ssub.s32 %s15, 1
    $region12: #{transformer_memnet_forward.1} parent=5 // pred_fallthru
      _
    %p290 = scmp.lt.s32.totalorder %s15, 2
    // Predicated region
    $region13: #{transformer_memnet_forward.1} parent=5 // pred_check
      %p291 = pneg %p290
    $region14: #{transformer_memnet_forward.1} parent=5 // pred_check_branch
      %293 = sbr.rel (%p291) target = $region16
    $region15: #{transformer_memnet_forward.1} parent=5 // pred_region
      // Predicated region
      $region17: #{transformer_memnet_forward.1} parent=15 // pred_check
        %p294 = pneg %p35
      $region18: #{transformer_memnet_forward.1} parent=15 // pred_check_branch
        %296 = sbr.rel (%p294) target = $region20
      $region19: #{transformer_memnet_forward.1} parent=15 // pred_region
        %p297 = scmp.lt.s32.totalorder %s15, 1
        %s298 = scalar_select %p297, %s15, 1
        %s299 = smul.addr %s298, 8
        %s300 = smul.addr %s299, 8
        %s301 = scalar_lea.vmem %s0, %s300
      $region20: #{transformer_memnet_forward.1} parent=15 // pred_fallthru
        _
      // Predicated region
      $region21: #{transformer_memnet_forward.1} parent=15 // pred_check
        %p302 = pneg %p61
      $region22: #{transformer_memnet_forward.1} parent=15 // pred_check_branch
        %304 = sbr.rel (%p302) target = $region24
      $region23: #{transformer_memnet_forward.1} parent=15 // pred_region
        %p305 = scmp.lt.s32.totalorder %s15, 1
        %s306 = scalar_select %p305, %s15, 1
        %s307 = smul.addr %s306, 8
        %s308 = smul.addr %s307, 8
        %s309 = scalar_lea.vmem %s1, %s308
      $region24: #{transformer_memnet_forward.1} parent=15 // pred_fallthru
        _
      // Predicated region
      $region25: #{transformer_memnet_forward.1} parent=15 // pred_check
        %p310 = pneg %p87
      $region26: #{transformer_memnet_forward.1} parent=15 // pred_check_branch
        %312 = sbr.rel (%p310) target = $region28
      $region27: #{transformer_memnet_forward.1} parent=15 // pred_region
        %p313 = scmp.lt.s32.totalorder %s15, 1
        %s314 = scalar_select %p313, %s15, 1
        %s315 = smul.addr %s314, 8
        %s316 = smul.addr %s315, 8
        %s317 = scalar_lea.vmem %s2, %s316
      $region28: #{transformer_memnet_forward.1} parent=15 // pred_fallthru
        _
      // Predicated region
      $region29: #{transformer_memnet_forward.1} parent=15 // pred_check
        %p318 = pneg %p113
      $region30: #{transformer_memnet_forward.1} parent=15 // pred_check_branch
        %320 = sbr.rel (%p318) target = $region32
      $region31: #{transformer_memnet_forward.1} parent=15 // pred_region
        %p321 = scmp.lt.s32.totalorder %s15, 1
        %s322 = scalar_select %p321, %s15, 1
        %s323 = smul.addr %s322, 8
        %s324 = scalar_lea.vmem %s3, %s323
      $region32: #{transformer_memnet_forward.1} parent=15 // pred_fallthru
        _
      // Predicated region
      $region33: #{transformer_memnet_forward.1} parent=15 // pred_check
        %p325 = pneg %p139
      $region34: #{transformer_memnet_forward.1} parent=15 // pred_check_branch
        %327 = sbr.rel (%p325) target = $region36
      $region35: #{transformer_memnet_forward.1} parent=15 // pred_region
        %p328 = scmp.lt.s32.totalorder %s15, 1
        %s329 = scalar_select %p328, %s15, 1
        %s330 = smul.addr %s329, 8
        %s331 = smul.addr %s330, 8
        %s332 = scalar_lea.vmem %s4, %s331
      $region36: #{transformer_memnet_forward.1} parent=15 // pred_fallthru
        _
      // Predicated region
      $region37: #{transformer_memnet_forward.1} parent=15 // pred_check
        %p333 = pneg %p165
      $region38: #{transformer_memnet_forward.1} parent=15 // pred_check_branch
        %335 = sbr.rel (%p333) target = $region40
      $region39: #{transformer_memnet_forward.1} parent=15 // pred_region
        %p336 = scmp.lt.s32.totalorder %s15, 1
        %s337 = scalar_select %p336, %s15, 1
        %s338 = smul.addr %s337, 8
        %s339 = smul.addr %s338, 8
        %s340 = scalar_lea.vmem %s5, %s339
      $region40: #{transformer_memnet_forward.1} parent=15 // pred_fallthru
        _
      // Predicated region
      $region41: #{transformer_memnet_forward.1} parent=15 // pred_check
        %p341 = pneg %p191
      $region42: #{transformer_memnet_forward.1} parent=15 // pred_check_branch
        %343 = sbr.rel (%p341) target = $region44
      $region43: #{transformer_memnet_forward.1} parent=15 // pred_region
        %p344 = scmp.lt.s32.totalorder %s15, 1
        %s345 = scalar_select %p344, %s15, 1
        %s346 = smul.addr %s345, 8
        %s347 = smul.addr %s346, 8
        %s348 = scalar_lea.vmem %s6, %s347
      $region44: #{transformer_memnet_forward.1} parent=15 // pred_fallthru
        _
      // Predicated region
      $region45: #{transformer_memnet_forward.1} parent=15 // pred_check
        %p349 = pneg %p217
      $region46: #{transformer_memnet_forward.1} parent=15 // pred_check_branch
        %351 = sbr.rel (%p349) target = $region48
      $region47: #{transformer_memnet_forward.1} parent=15 // pred_region
        %p352 = scmp.lt.s32.totalorder %s15, 1
        %s353 = scalar_select %p352, %s15, 1
        %s354 = smul.addr %s353, 16
        %s355 = smul.addr %s354, 8
        %s356 = scalar_lea.vmem %s7, %s355
      $region48: #{transformer_memnet_forward.1} parent=15 // pred_fallthru
        _
      // Predicated region
      $region49: #{transformer_memnet_forward.1} parent=15 // pred_check
        %p357 = pneg %p243
      $region50: #{transformer_memnet_forward.1} parent=15 // pred_check_branch
        %359 = sbr.rel (%p357) target = $region52
      $region51: #{transformer_memnet_forward.1} parent=15 // pred_region
        %p360 = scmp.lt.s32.totalorder %s15, 1
        %s361 = scalar_select %p360, %s15, 1
        %s362 = smul.addr %s361, 2
        %s363 = smul.addr %s362, 8
        %s364 = scalar_lea.vmem %s8, %s363
      $region52: #{transformer_memnet_forward.1} parent=15 // pred_fallthru
        _
    $region16: #{transformer_memnet_forward.1} parent=5 // pred_fallthru
      _
    %p365 = scmp.le.s32.totalorder 1, %s15
    %p366 = scmp.lt.s32.totalorder %s15, 3
    %p367 = pnand %p365, %p366
    %p368 = pneg %p367
    // Predicated region
    $region53: #{transformer_memnet_forward.1} parent=5 // pred_check
      _
    $region54: #{transformer_memnet_forward.1} parent=5 // pred_check_branch
      %370 = sbr.rel (%p367) target = $region56
    $region55: #{transformer_memnet_forward.1} parent=5 // pred_region
      %s371 = ssub.s32 %s15, 1
      %p372 = scmp.lt.s32.totalorder %s20, 1
      %s373 = scalar_select %p372, %s20, 1
      %s374 = smul.addr %s373, 8
      %s375 = smul.addr %s374, 8
      %s376 = scalar_lea.vmem %s0, %s375
      %p377 = pneg %p41
      %p378 = pneg %p38
      %p379 = scmp.lt.s32.totalorder %s20, 1
      %s380 = scalar_select %p379, %s20, 1
      %s381 = smul.addr %s380, 8
      %s382 = smul.addr %s381, 8
      %s383 = scalar_lea.vmem %s1, %s382
      %p384 = pneg %p67
      %p385 = pneg %p64
      %p386 = scmp.lt.s32.totalorder %s20, 1
      %s387 = scalar_select %p386, %s20, 1
      %s388 = smul.addr %s387, 8
      %s389 = smul.addr %s388, 8
      %s390 = scalar_lea.vmem %s2, %s389
      %p391 = pneg %p93
      %p392 = pneg %p90
      %p393 = scmp.lt.s32.totalorder %s20, 1
      %s394 = scalar_select %p393, %s20, 1
      %s395 = smul.addr %s394, 8
      %s396 = scalar_lea.vmem %s3, %s395
      %p397 = pneg %p119
      %p398 = pneg %p116
      %p399 = scmp.lt.s32.totalorder %s20, 1
      %s400 = scalar_select %p399, %s20, 1
      %s401 = smul.addr %s400, 8
      %s402 = smul.addr %s401, 8
      %s403 = scalar_lea.vmem %s4, %s402
      %p404 = pneg %p145
      %p405 = pneg %p142
      %p406 = scmp.lt.s32.totalorder %s20, 1
      %s407 = scalar_select %p406, %s20, 1
      %s408 = smul.addr %s407, 8
      %s409 = smul.addr %s408, 8
      %s410 = scalar_lea.vmem %s5, %s409
      %p411 = pneg %p171
      %p412 = pneg %p168
      %p413 = scmp.lt.s32.totalorder %s20, 1
      %s414 = scalar_select %p413, %s20, 1
      %s415 = smul.addr %s414, 8
      %s416 = smul.addr %s415, 8
      %s417 = scalar_lea.vmem %s6, %s416
      %p418 = pneg %p197
      %p419 = pneg %p194
      %p420 = scmp.lt.s32.totalorder %s20, 1
      %s421 = scalar_select %p420, %s20, 1
      %s422 = smul.addr %s421, 16
      %s423 = smul.addr %s422, 8
      %s424 = scalar_lea.vmem %s7, %s423
      %p425 = pneg %p223
      %p426 = pneg %p220
      %p427 = scmp.lt.s32.totalorder %s20, 1
      %s428 = scalar_select %p427, %s20, 1
      %s429 = smul.addr %s428, 2
      %s430 = smul.addr %s429, 8
      %s431 = scalar_lea.vmem %s8, %s430
      %p432 = pneg %p249
      %p433 = pneg %p246
      %p434 = pneg %p275
      %p435 = pneg %p272
      %p436 = scmp.lt.s32.totalorder %s20, 1
      %s437 = scalar_select %p436, %s20, 1
      %s438 = smul.addr %s437, 8
      %s439 = scalar_lea.vmem %s9, %s438
      %p440 = scmp.lt.s32.totalorder %s20, 1
      %s441 = scalar_select %p440, %s20, 1
      %s442 = smul.addr %s441, 8
      %s443 = smul.addr %s442, 8
      %s444 = scalar_lea.vmem %s0, %s443
      %p445 = scmp.lt.s32.totalorder %s20, 1
      %s446 = scalar_select %p445, %s20, 1
      %s447 = smul.addr %s446, 8
      %s448 = smul.addr %s447, 8
      %s449 = scalar_lea.vmem %s1, %s448
      %p450 = scmp.lt.s32.totalorder %s20, 1
      %s451 = scalar_select %p450, %s20, 1
      %s452 = smul.addr %s451, 8
      %s453 = smul.addr %s452, 8
      %s454 = scalar_lea.vmem %s2, %s453
      %p455 = scmp.lt.s32.totalorder %s20, 1
      %s456 = scalar_select %p455, %s20, 1
      %s457 = smul.addr %s456, 8
      %s458 = scalar_lea.vmem %s3, %s457
      %p459 = scmp.lt.s32.totalorder %s20, 1
      %s460 = scalar_select %p459, %s20, 1
      %s461 = smul.addr %s460, 8
      %s462 = smul.addr %s461, 8
      %s463 = scalar_lea.vmem %s4, %s462
      %p464 = scmp.lt.s32.totalorder %s20, 1
      %s465 = scalar_select %p464, %s20, 1
      %s466 = smul.addr %s465, 8
      %s467 = smul.addr %s466, 8
      %s468 = scalar_lea.vmem %s5, %s467
      %p469 = scmp.lt.s32.totalorder %s20, 1
      %s470 = scalar_select %p469, %s20, 1
      %s471 = smul.addr %s470, 8
      %s472 = smul.addr %s471, 8
      %s473 = scalar_lea.vmem %s6, %s472
      %p474 = scmp.lt.s32.totalorder %s20, 1
      %s475 = scalar_select %p474, %s20, 1
      %s476 = smul.addr %s475, 16
      %s477 = smul.addr %s476, 8
      %s478 = scalar_lea.vmem %s7, %s477
      %p479 = scmp.lt.s32.totalorder %s20, 1
      %s480 = scalar_select %p479, %s20, 1
      %s481 = smul.addr %s480, 2
      %s482 = smul.addr %s481, 8
      %s483 = scalar_lea.vmem %s8, %s482
      %p484 = scmp.lt.s32.totalorder %s20, 1
      %s485 = scalar_select %p484, %s20, 1
      %s486 = smul.addr %s485, 8
      %s487 = scalar_lea.vmem %s9, %s486
      %v488 = vld [vmem:[%s449] sm:$0xff]
      %v489 = vld [vmem:[%s449 + $0x8] sm:$0xff]
      %v490 = vld [vmem:[%s449 + $0x10] sm:$0xff]
      %v491 = vld [vmem:[%s449 + $0x18] sm:$0xff]
      %v492 = vld [vmem:[%s449 + $0x20] sm:$0xff]
      %v493 = vld [vmem:[%s449 + $0x28] sm:$0xff]
      %v494 = vld [vmem:[%s449 + $0x30] sm:$0xff]
      %v495 = vld [vmem:[%s449 + $0x38] sm:$0xff]
      %v496 = vld [vmem:[%s454] sm:$0xff]
      %v497 = vld [vmem:[%s454 + $0x8] sm:$0xff]
      %v498 = vld [vmem:[%s454 + $0x10] sm:$0xff]
      %v499 = vld [vmem:[%s454 + $0x18] sm:$0xff]
      %v500 = vld [vmem:[%s454 + $0x20] sm:$0xff]
      %v501 = vld [vmem:[%s454 + $0x28] sm:$0xff]
      %v502 = vld [vmem:[%s454 + $0x30] sm:$0xff]
      %v503 = vld [vmem:[%s454 + $0x38] sm:$0xff]
      %v504 = vld [vmem:[%s444] sm:$0xff]
      %v505 = vld [vmem:[%s444 + $0x8] sm:$0xff]
      %v506 = vld [vmem:[%s444 + $0x10] sm:$0xff]
      %v507 = vld [vmem:[%s444 + $0x18] sm:$0xff]
      %v508 = vld [vmem:[%s444 + $0x20] sm:$0xff]
      %v509 = vld [vmem:[%s444 + $0x28] sm:$0xff]
      %v510 = vld [vmem:[%s444 + $0x30] sm:$0xff]
      %v511 = vld [vmem:[%s444 + $0x38] sm:$0xff]
      %513 = vset.pattern.permute.xlu0 0
      %514 = vperm.xlu0 %513, %v488
      %v515 = vpop.permute.xlu0 %514
      %518 = vset.pattern.permute.xlu0 0
      %519 = vperm.xlu0 %518, %v489
      %v520 = vpop.permute.xlu0 %519
      %523 = vset.pattern.permute.xlu0 0
      %524 = vperm.xlu0 %523, %v490
      %v525 = vpop.permute.xlu0 %524
      %528 = vset.pattern.permute.xlu0 0
      %529 = vperm.xlu0 %528, %v491
      %v530 = vpop.permute.xlu0 %529
      %533 = vset.pattern.permute.xlu0 0
      %534 = vperm.xlu0 %533, %v492
      %v535 = vpop.permute.xlu0 %534
      %538 = vset.pattern.permute.xlu0 0
      %539 = vperm.xlu0 %538, %v493
      %v540 = vpop.permute.xlu0 %539
      %543 = vset.pattern.permute.xlu0 0
      %544 = vperm.xlu0 %543, %v494
      %v545 = vpop.permute.xlu0 %544
      %548 = vset.pattern.permute.xlu0 0
      %549 = vperm.xlu0 %548, %v495
      %v550 = vpop.permute.xlu0 %549
      %v552 = vmul.f32 %v504, %v515
      %v553 = vmul.f32 %v505, %v520
      %v554 = vmul.f32 %v506, %v525
      %v555 = vmul.f32 %v507, %v530
      %v556 = vmul.f32 %v508, %v535
      %v557 = vmul.f32 %v509, %v540
      %v558 = vmul.f32 %v510, %v545
      %v559 = vmul.f32 %v511, %v550
      %v560 = vld [vmem:[%s483] sm:$0xff]
      %v561 = vld [vmem:[%s463] sm:$0xff]
      %v562 = vld [vmem:[%s463 + $0x8] sm:$0xff]
      %v563 = vld [vmem:[%s463 + $0x10] sm:$0xff]
      %v564 = vld [vmem:[%s463 + $0x18] sm:$0xff]
      %v565 = vlaneseq
      %v566 = vshrl.u32 %v565, 7
      %v567 = vsub.s32 0, %v566
      %v568 = vrot.slane %v560, %v567
      %vm569 = vcmask 261120
      %v571 = vsel %vm569, %v552, 0
      %v574 = vsel %vm569, %v553, 0
      %v577 = vsel %vm569, %v554, 0
      %v580 = vsel %vm569, %v555, 0
      %v583 = vsel %vm569, %v556, 0
      %v586 = vsel %vm569, %v557, 0
      %v589 = vsel %vm569, %v558, 0
      %v592 = vsel %vm569, %v559, 0
      %594 = vmatprep.subr.mxu0 0.0
      %595 = vmatpush1.msra.mxu0 %v561
      %596 = vmatprep.subr.mxu0 0.0
      %597 = vmatpush1.msra.mxu0 %v562
      %598 = vmatprep.subr.mxu0 0.0
      %599 = vmatpush1.msra.mxu0 %v563
      %600 = vmatprep.subr.mxu0 0.0
      %601 = vmatpush1.msra.mxu0 %v564
      %602 = vmatprep.subr.mxu0 0.0
      %603 = vmatpush1.msra.mxu0 0.0
      %604 = vmatprep.subr.mxu0 0.0
      %605 = vmatpush1.msra.mxu0 0.0
      %606 = vmatprep.subr.mxu0 0.0
      %607 = vmatpush1.msra.mxu0 0.0
      %608 = vmatprep.subr.mxu0 0.0
      %609 = vmatpush1.msra.mxu0 0.0
      %610 = vmatprep.subr.mxu0 0.0
      %611 = vmatpush1.msra.mxu0 0.0
      %612 = vmatprep.subr.mxu0 0.0
      %613 = vmatpush1.msra.mxu0 0.0
      %614 = vmatprep.subr.mxu0 0.0
      %615 = vmatpush1.msra.mxu0 0.0
      %616 = vmatprep.subr.mxu0 0.0
      %617 = vmatpush1.msra.mxu0 0.0
      %618 = vmatprep.subr.mxu0 0.0
      %619 = vmatpush1.msra.mxu0 0.0
      %620 = vmatprep.subr.mxu0 0.0
      %621 = vmatpush1.msra.mxu0 0.0
      %622 = vmatprep.subr.mxu0 0.0
      %623 = vmatpush1.msra.mxu0 0.0
      %624 = vmatprep.subr.mxu0 0.0
      %625 = vmatpush1.msra.mxu0 0.0
      %626 = vmatprep.subr.mxu0 0.0
      %627 = vmatpush1.msra.mxu0 0.0
      %628 = vmatprep.subr.mxu0 0.0
      %629 = vmatpush1.msra.mxu0 0.0
      %630 = vmatprep.subr.mxu0 0.0
      %631 = vmatpush1.msra.mxu0 0.0
      %632 = vmatprep.subr.mxu0 0.0
      %633 = vmatpush1.msra.mxu0 0.0
      %634 = vmatprep.subr.mxu0 0.0
      %635 = vmatpush1.msra.mxu0 0.0
      %636 = vmatprep.subr.mxu0 0.0
      %637 = vmatpush1.msra.mxu0 0.0
      %638 = vmatprep.subr.mxu0 0.0
      %639 = vmatpush1.msra.mxu0 0.0
      %640 = vmatprep.subr.mxu0 0.0
      %641 = vmatpush1.msra.mxu0 0.0
      %642 = vmatprep.subr.mxu0 0.0
      %643 = vmatpush1.msra.mxu0 0.0
      %644 = vmatprep.subr.mxu0 0.0
      %645 = vmatpush1.msra.mxu0 0.0
      %646 = vmatprep.subr.mxu0 0.0
      %647 = vmatpush1.msra.mxu0 0.0
      %648 = vmatprep.subr.mxu0 0.0
      %649 = vmatpush1.msra.mxu0 0.0
      %650 = vmatprep.subr.mxu0 0.0
      %651 = vmatpush1.msra.mxu0 0.0
      %652 = vmatprep.subr.mxu0 0.0
      %653 = vmatpush1.msra.mxu0 0.0
      %654 = vmatprep.subr.mxu0 0.0
      %655 = vmatpush1.msra.mxu0 0.0
      %656 = vmatprep.subr.mxu0 0.0
      %657 = vmatpush1.msra.mxu0 0.0
      %658 = vmatprep.mubr.f32.mxu0 0.0
      %659 = vmatmul.mubr.f32.gmra.mrb[0].mxu0 %v571
      %v660 = vpop.f32.mrb[0].mxu0
      %v661 = vadd.f32 %v568, %v660
      %v662 = vpop.f32.mrb[0].mxu0
      %663 = vmatprep.mubr.f32.mxu0 0.0
      %664 = vmatmul.mubr.f32.gmra.mrb[0].mxu0 %v574
      %v665 = vpop.f32.mrb[0].mxu0
      %v666 = vadd.f32 %v568, %v665
      %v667 = vpop.f32.mrb[0].mxu0
      %668 = vmatprep.mubr.f32.mxu0 0.0
      %669 = vmatmul.mubr.f32.gmra.mrb[0].mxu0 %v577
      %v670 = vpop.f32.mrb[0].mxu0
      %v671 = vadd.f32 %v568, %v670
      %v672 = vpop.f32.mrb[0].mxu0
      %673 = vmatprep.mubr.f32.mxu0 0.0
      %674 = vmatmul.mubr.f32.gmra.mrb[0].mxu0 %v580
      %v675 = vpop.f32.mrb[0].mxu0
      %v676 = vadd.f32 %v568, %v675
      %v677 = vpop.f32.mrb[0].mxu0
      %678 = vmatprep.mubr.f32.mxu0 0.0
      %679 = vmatmul.mubr.f32.gmra.mrb[0].mxu0 %v583
      %v680 = vpop.f32.mrb[0].mxu0
      %v681 = vadd.f32 %v568, %v680
      %v682 = vpop.f32.mrb[0].mxu0
      %683 = vmatprep.mubr.f32.mxu0 0.0
      %684 = vmatmul.mubr.f32.gmra.mrb[0].mxu0 %v586
      %v685 = vpop.f32.mrb[0].mxu0
      %v686 = vadd.f32 %v568, %v685
      %v687 = vpop.f32.mrb[0].mxu0
      %688 = vmatprep.mubr.f32.mxu0 0.0
      %689 = vmatmul.mubr.f32.gmra.mrb[0].mxu0 %v589
      %v690 = vpop.f32.mrb[0].mxu0
      %v691 = vadd.f32 %v568, %v690
      %v692 = vpop.f32.mrb[0].mxu0
      %693 = vmatprep.mubr.f32.mxu0 0.0
      %694 = vmatmul.mubr.f32.gmra.mrb[0].mxu0 %v592
      %v695 = vpop.f32.mrb[0].mxu0
      %v696 = vadd.f32 %v568, %v695
      %v697 = vpop.f32.mrb[0].mxu0
      %698 = vdwg.mxu0
      %707 = vrot.lane.b32.xlu0 %v661, 96
      %v708 = vpop.permute.xlu0 %707
      %709 = vrot.lane.b32.xlu0 %v666, 96
      %v710 = vpop.permute.xlu0 %709
      %711 = vrot.lane.b32.xlu0 %v671, 96
      %v712 = vpop.permute.xlu0 %711
      %713 = vrot.lane.b32.xlu0 %v676, 96
      %v714 = vpop.permute.xlu0 %713
      %715 = vrot.lane.b32.xlu0 %v681, 96
      %v716 = vpop.permute.xlu0 %715
      %717 = vrot.lane.b32.xlu0 %v686, 96
      %v718 = vpop.permute.xlu0 %717
      %719 = vrot.lane.b32.xlu0 %v691, 96
      %v720 = vpop.permute.xlu0 %719
      %721 = vrot.lane.b32.xlu0 %v696, 96
      %v722 = vpop.permute.xlu0 %721
      %vm723 = vcmask 130048
      %v724 = vsel %vm723, %v661, 0
      %v726 = vsel %vm723, %v666, 0
      %v728 = vsel %vm723, %v671, 0
      %v730 = vsel %vm723, %v676, 0
      %v732 = vsel %vm723, %v681, 0
      %v734 = vsel %vm723, %v686, 0
      %v736 = vsel %vm723, %v691, 0
      %v738 = vsel %vm723, %v696, 0
      %v740 = vsel %vm723, %v708, 0
      %v742 = vsel %vm723, %v710, 0
      %v744 = vsel %vm723, %v712, 0
      %v746 = vsel %vm723, %v714, 0
      %v748 = vsel %vm723, %v716, 0
      %v750 = vsel %vm723, %v718, 0
      %v752 = vsel %vm723, %v720, 0
      %v754 = vsel %vm723, %v722, 0
      %756 = vmatprep.subr.mxu0 0.0
      %757 = vmatpush1.xpose.msra.mxu0 %v740
      %758 = vmatprep.subr.mxu0 0.0
      %759 = vmatpush1.xpose.msra.mxu0 %v742
      %760 = vmatprep.subr.mxu0 0.0
      %761 = vmatpush1.xpose.msra.mxu0 %v744
      %762 = vmatprep.subr.mxu0 0.0
      %763 = vmatpush1.xpose.msra.mxu0 %v746
      %764 = vmatprep.subr.mxu0 0.0
      %765 = vmatpush1.xpose.msra.mxu0 %v748
      %766 = vmatprep.subr.mxu0 0.0
      %767 = vmatpush1.xpose.msra.mxu0 %v750
      %768 = vmatprep.subr.mxu0 0.0
      %769 = vmatpush1.xpose.msra.mxu0 %v752
      %770 = vmatprep.subr.mxu0 0.0
      %771 = vmatpush1.xpose.msra.mxu0 %v754
      %772 = vmatprep.subr.mxu0 0.0
      %773 = vmatpush1.xpose.msra.mxu0 0.0
      %774 = vmatprep.subr.mxu0 0.0
      %775 = vmatpush1.xpose.msra.mxu0 0.0
      %776 = vmatprep.subr.mxu0 0.0
      %777 = vmatpush1.xpose.msra.mxu0 0.0
      %778 = vmatprep.subr.mxu0 0.0
      %779 = vmatpush1.xpose.msra.mxu0 0.0
      %780 = vmatprep.subr.mxu0 0.0
      %781 = vmatpush1.xpose.msra.mxu0 0.0
      %782 = vmatprep.subr.mxu0 0.0
      %783 = vmatpush1.xpose.msra.mxu0 0.0
      %784 = vmatprep.subr.mxu0 0.0
      %785 = vmatpush1.xpose.msra.mxu0 0.0
      %786 = vmatprep.subr.mxu0 0.0
      %787 = vmatpush1.xpose.msra.mxu0 0.0
      %788 = vmatprep.subr.mxu0 0.0
      %789 = vmatpush1.xpose.msra.mxu0 0.0
      %790 = vmatprep.subr.mxu0 0.0
      %791 = vmatpush1.xpose.msra.mxu0 0.0
      %792 = vmatprep.subr.mxu0 0.0
      %793 = vmatpush1.xpose.msra.mxu0 0.0
      %794 = vmatprep.subr.mxu0 0.0
      %795 = vmatpush1.xpose.msra.mxu0 0.0
      %796 = vmatprep.subr.mxu0 0.0
      %797 = vmatpush1.xpose.msra.mxu0 0.0
      %798 = vmatprep.subr.mxu0 0.0
      %799 = vmatpush1.xpose.msra.mxu0 0.0
      %800 = vmatprep.subr.mxu0 0.0
      %801 = vmatpush1.xpose.msra.mxu0 0.0
      %802 = vmatprep.subr.mxu0 0.0
      %803 = vmatpush1.xpose.msra.mxu0 0.0
      %804 = vmatprep.subr.mxu0 0.0
      %805 = vmatpush1.xpose.msra.mxu0 0.0
      %806 = vmatprep.subr.mxu0 0.0
      %807 = vmatpush1.xpose.msra.mxu0 0.0
      %808 = vmatprep.subr.mxu0 0.0
      %809 = vmatpush1.xpose.msra.mxu0 0.0
      %810 = vmatprep.subr.mxu0 0.0
      %811 = vmatpush1.xpose.msra.mxu0 0.0
      %812 = vmatprep.subr.mxu0 0.0
      %813 = vmatpush1.xpose.msra.mxu0 0.0
      %814 = vmatprep.subr.mxu0 0.0
      %815 = vmatpush1.xpose.msra.mxu0 0.0
      %816 = vmatprep.subr.mxu0 0.0
      %817 = vmatpush1.xpose.msra.mxu0 0.0
      %818 = vmatprep.subr.mxu0 0.0
      %819 = vmatpush1.xpose.msra.mxu0 0.0
      %820 = vmatprep.mubr.f32.mxu0 0.0
      %821 = vmatmul.mubr.f32.gmra.mrb[0].mxu0 %v724
      %v822 = vpop.f32.mrb[0].mxu0
      %v823 = vadd.f32 %v496, %v822
      %v824 = vpop.f32.mrb[0].mxu0
      %825 = vmatprep.mubr.f32.mxu0 0.0
      %826 = vmatmul.mubr.f32.gmra.mrb[0].mxu0 %v726
      %v827 = vpop.f32.mrb[0].mxu0
      %v828 = vadd.f32 %v497, %v827
      %v829 = vpop.f32.mrb[0].mxu0
      %830 = vmatprep.mubr.f32.mxu0 0.0
      %831 = vmatmul.mubr.f32.gmra.mrb[0].mxu0 %v728
      %v832 = vpop.f32.mrb[0].mxu0
      %v833 = vadd.f32 %v498, %v832
      %v834 = vpop.f32.mrb[0].mxu0
      %835 = vmatprep.mubr.f32.mxu0 0.0
      %836 = vmatmul.mubr.f32.gmra.mrb[0].mxu0 %v730
      %v837 = vpop.f32.mrb[0].mxu0
      %v838 = vadd.f32 %v499, %v837
      %v839 = vpop.f32.mrb[0].mxu0
      %840 = vmatprep.mubr.f32.mxu0 0.0
      %841 = vmatmul.mubr.f32.gmra.mrb[0].mxu0 %v732
      %v842 = vpop.f32.mrb[0].mxu0
      %v843 = vadd.f32 %v500, %v842
      %v844 = vpop.f32.mrb[0].mxu0
      %845 = vmatprep.mubr.f32.mxu0 0.0
      %846 = vmatmul.mubr.f32.gmra.mrb[0].mxu0 %v734
      %v847 = vpop.f32.mrb[0].mxu0
      %v848 = vadd.f32 %v501, %v847
      %v849 = vpop.f32.mrb[0].mxu0
      %850 = vmatprep.mubr.f32.mxu0 0.0
      %851 = vmatmul.mubr.f32.gmra.mrb[0].mxu0 %v736
      %v852 = vpop.f32.mrb[0].mxu0
      %v853 = vadd.f32 %v502, %v852
      %v854 = vpop.f32.mrb[0].mxu0
      %855 = vmatprep.mubr.f32.mxu0 0.0
      %856 = vmatmul.mubr.f32.gmra.mrb[0].mxu0 %v738
      %v857 = vpop.f32.mrb[0].mxu0
      %v858 = vadd.f32 %v503, %v857
      %v859 = vpop.f32.mrb[0].mxu0
      %860 = vdwg.mxu0
      %vm861 = vcmask 523264
      %v862 = vsel %vm861, %v823, -inf
      %863 = vmax.xlane.f32.xlu0 %v862
      %v864 = vpop.xlane.xlu0 %863
      %v865 = vsel %vm861, %v828, -inf
      %866 = vmax.xlane.f32.xlu0 %v865
      %v867 = vpop.xlane.xlu0 %866
      %v868 = vsel %vm861, %v833, -inf
      %869 = vmax.xlane.f32.xlu0 %v868
      %v870 = vpop.xlane.xlu0 %869
      %v871 = vsel %vm861, %v838, -inf
      %872 = vmax.xlane.f32.xlu0 %v871
      %v873 = vpop.xlane.xlu0 %872
      %v874 = vsel %vm861, %v843, -inf
      %875 = vmax.xlane.f32.xlu0 %v874
      %v876 = vpop.xlane.xlu0 %875
      %v877 = vsel %vm861, %v848, -inf
      %878 = vmax.xlane.f32.xlu0 %v877
      %v879 = vpop.xlane.xlu0 %878
      %v880 = vsel %vm861, %v853, -inf
      %881 = vmax.xlane.f32.xlu0 %v880
      %v882 = vpop.xlane.xlu0 %881
      %v883 = vsel %vm861, %v858, -inf
      %884 = vmax.xlane.f32.xlu0 %v883
      %v885 = vpop.xlane.xlu0 %884
      %v886 = vsub.f32 %v823, %v864
      %v887 = vsub.f32 %v828, %v867
      %v888 = vsub.f32 %v833, %v870
      %v889 = vsub.f32 %v838, %v873
      %v890 = vsub.f32 %v843, %v876
      %v891 = vsub.f32 %v848, %v879
      %v892 = vsub.f32 %v853, %v882
      %v893 = vsub.f32 %v858, %v885
      %v894 = vmul.f32 %v886, 1.442695
      %v895 = vpow.pop %v894
      %v896 = vmul.f32 %v887, 1.442695
      %v897 = vpow.pop %v896
      %v898 = vmul.f32 %v888, 1.442695
      %v899 = vpow.pop %v898
      %v900 = vmul.f32 %v889, 1.442695
      %v901 = vpow.pop %v900
      %v902 = vmul.f32 %v890, 1.442695
      %v903 = vpow.pop %v902
      %v904 = vmul.f32 %v891, 1.442695
      %v905 = vpow.pop %v904
      %v906 = vmul.f32 %v892, 1.442695
      %v907 = vpow.pop %v906
      %v908 = vmul.f32 %v893, 1.442695
      %v909 = vpow.pop %v908
      %v910 = vsel %vm861, %v895, 0.0
      %911 = vadd.xlane.f32.xlu0 %v910
      %v912 = vpop.xlane.xlu0 %911
      %v913 = vsel %vm861, %v897, 0.0
      %914 = vadd.xlane.f32.xlu0 %v913
      %v915 = vpop.xlane.xlu0 %914
      %v916 = vsel %vm861, %v899, 0.0
      %917 = vadd.xlane.f32.xlu0 %v916
      %v918 = vpop.xlane.xlu0 %917
      %v919 = vsel %vm861, %v901, 0.0
      %920 = vadd.xlane.f32.xlu0 %v919
      %v921 = vpop.xlane.xlu0 %920
      %v922 = vsel %vm861, %v903, 0.0
      %923 = vadd.xlane.f32.xlu0 %v922
      %v924 = vpop.xlane.xlu0 %923
      %v925 = vsel %vm861, %v905, 0.0
      %926 = vadd.xlane.f32.xlu0 %v925
      %v927 = vpop.xlane.xlu0 %926
      %v928 = vsel %vm861, %v907, 0.0
      %929 = vadd.xlane.f32.xlu0 %v928
      %v930 = vpop.xlane.xlu0 %929
      %v931 = vsel %vm861, %v909, 0.0
      %932 = vadd.xlane.f32.xlu0 %v931
      %v933 = vpop.xlane.xlu0 %932
      %v934 = vrcp.pop %v912
      %v935 = vrcp.pop %v915
      %v936 = vrcp.pop %v918
      %v937 = vrcp.pop %v921
      %v938 = vrcp.pop %v924
      %v939 = vrcp.pop %v927
      %v940 = vrcp.pop %v930
      %v941 = vrcp.pop %v933
      %v942 = vmul.f32 %v895, %v934
      %v943 = vmul.f32 %v897, %v935
      %v944 = vmul.f32 %v899, %v936
      %v945 = vmul.f32 %v901, %v937
      %v946 = vmul.f32 %v903, %v938
      %v947 = vmul.f32 %v905, %v939
      %v948 = vmul.f32 %v907, %v940
      %v949 = vmul.f32 %v909, %v941
      %950 = vrot.lane.b32.xlu0 %v661, 64
      %v951 = vpop.permute.xlu0 %950
      %952 = vrot.lane.b32.xlu0 %v666, 64
      %v953 = vpop.permute.xlu0 %952
      %954 = vrot.lane.b32.xlu0 %v671, 64
      %v955 = vpop.permute.xlu0 %954
      %956 = vrot.lane.b32.xlu0 %v676, 64
      %v957 = vpop.permute.xlu0 %956
      %958 = vrot.lane.b32.xlu0 %v681, 64
      %v959 = vpop.permute.xlu0 %958
      %960 = vrot.lane.b32.xlu0 %v686, 64
      %v961 = vpop.permute.xlu0 %960
      %962 = vrot.lane.b32.xlu0 %v691, 64
      %v963 = vpop.permute.xlu0 %962
      %964 = vrot.lane.b32.xlu0 %v696, 64
      %v965 = vpop.permute.xlu0 %964
      %v975 = vsel %vm861, %v942, 0
      %v978 = vsel %vm861, %v943, 0
      %v981 = vsel %vm861, %v944, 0
      %v984 = vsel %vm861, %v945, 0
      %v987 = vsel %vm861, %v946, 0
      %v990 = vsel %vm861, %v947, 0
      %v993 = vsel %vm861, %v948, 0
      %v996 = vsel %vm861, %v949, 0
      %998 = vmatprep.subr.mxu0 0.0
      %999 = vmatpush1.msra.mxu0 %v951
      %1000 = vmatprep.subr.mxu0 0.0
      %1001 = vmatpush1.msra.mxu0 %v953
      %1002 = vmatprep.subr.mxu0 0.0
      %1003 = vmatpush1.msra.mxu0 %v955
      %1004 = vmatprep.subr.mxu0 0.0
      %1005 = vmatpush1.msra.mxu0 %v957
      %1006 = vmatprep.subr.mxu0 0.0
      %1007 = vmatpush1.msra.mxu0 %v959
      %1008 = vmatprep.subr.mxu0 0.0
      %1009 = vmatpush1.msra.mxu0 %v961
      %1010 = vmatprep.subr.mxu0 0.0
      %1011 = vmatpush1.msra.mxu0 %v963
      %1012 = vmatprep.subr.mxu0 0.0
      %1013 = vmatpush1.msra.mxu0 %v965
      %1014 = vmatprep.subr.mxu0 0.0
      %1015 = vmatpush1.msra.mxu0 0.0
      %1016 = vmatprep.subr.mxu0 0.0
      %1017 = vmatpush1.msra.mxu0 0.0
      %1018 = vmatprep.subr.mxu0 0.0
      %1019 = vmatpush1.msra.mxu0 0.0
      %1020 = vmatprep.subr.mxu0 0.0
      %1021 = vmatpush1.msra.mxu0 0.0
      %1022 = vmatprep.subr.mxu0 0.0
      %1023 = vmatpush1.msra.mxu0 0.0
      %1024 = vmatprep.subr.mxu0 0.0
      %1025 = vmatpush1.msra.mxu0 0.0
      %1026 = vmatprep.subr.mxu0 0.0
      %1027 = vmatpush1.msra.mxu0 0.0
      %1028 = vmatprep.subr.mxu0 0.0
      %1029 = vmatpush1.msra.mxu0 0.0
      %1030 = vmatprep.subr.mxu0 0.0
      %1031 = vmatpush1.msra.mxu0 0.0
      %1032 = vmatprep.subr.mxu0 0.0
      %1033 = vmatpush1.msra.mxu0 0.0
      %1034 = vmatprep.subr.mxu0 0.0
      %1035 = vmatpush1.msra.mxu0 0.0
      %1036 = vmatprep.subr.mxu0 0.0
      %1037 = vmatpush1.msra.mxu0 0.0
      %1038 = vmatprep.subr.mxu0 0.0
      %1039 = vmatpush1.msra.mxu0 0.0
      %1040 = vmatprep.subr.mxu0 0.0
      %1041 = vmatpush1.msra.mxu0 0.0
      %1042 = vmatprep.subr.mxu0 0.0
      %1043 = vmatpush1.msra.mxu0 0.0
      %1044 = vmatprep.subr.mxu0 0.0
      %1045 = vmatpush1.msra.mxu0 0.0
      %1046 = vmatprep.subr.mxu0 0.0
      %1047 = vmatpush1.msra.mxu0 0.0
      %1048 = vmatprep.subr.mxu0 0.0
      %1049 = vmatpush1.msra.mxu0 0.0
      %1050 = vmatprep.subr.mxu0 0.0
      %1051 = vmatpush1.msra.mxu0 0.0
      %1052 = vmatprep.subr.mxu0 0.0
      %1053 = vmatpush1.msra.mxu0 0.0
      %1054 = vmatprep.subr.mxu0 0.0
      %1055 = vmatpush1.msra.mxu0 0.0
      %1056 = vmatprep.subr.mxu0 0.0
      %1057 = vmatpush1.msra.mxu0 0.0
      %1058 = vmatprep.subr.mxu0 0.0
      %1059 = vmatpush1.msra.mxu0 0.0
      %1060 = vmatprep.subr.mxu0 0.0
      %1061 = vmatpush1.msra.mxu0 0.0
      %1062 = vmatprep.mubr.f32.mxu0 0.0
      %1063 = vmatmul.mubr.f32.gmra.mrb[0].mxu0 %v975
      %v1064 = vpop.f32.mrb[0].mxu0
      %v1065 = vadd.f32 0.0, %v1064
      %v1066 = vpop.f32.mrb[0].mxu0
      %1067 = vmatprep.mubr.f32.mxu0 0.0
      %1068 = vmatmul.mubr.f32.gmra.mrb[0].mxu0 %v978
      %v1069 = vpop.f32.mrb[0].mxu0
      %v1070 = vadd.f32 0.0, %v1069
      %v1071 = vpop.f32.mrb[0].mxu0
      %1072 = vmatprep.mubr.f32.mxu0 0.0
      %1073 = vmatmul.mubr.f32.gmra.mrb[0].mxu0 %v981
      %v1074 = vpop.f32.mrb[0].mxu0
      %v1075 = vadd.f32 0.0, %v1074
      %v1076 = vpop.f32.mrb[0].mxu0
      %1077 = vmatprep.mubr.f32.mxu0 0.0
      %1078 = vmatmul.mubr.f32.gmra.mrb[0].mxu0 %v984
      %v1079 = vpop.f32.mrb[0].mxu0
      %v1080 = vadd.f32 0.0, %v1079
      %v1081 = vpop.f32.mrb[0].mxu0
      %1082 = vmatprep.mubr.f32.mxu0 0.0
      %1083 = vmatmul.mubr.f32.gmra.mrb[0].mxu0 %v987
      %v1084 = vpop.f32.mrb[0].mxu0
      %v1085 = vadd.f32 0.0, %v1084
      %v1086 = vpop.f32.mrb[0].mxu0
      %1087 = vmatprep.mubr.f32.mxu0 0.0
      %1088 = vmatmul.mubr.f32.gmra.mrb[0].mxu0 %v990
      %v1089 = vpop.f32.mrb[0].mxu0
      %v1090 = vadd.f32 0.0, %v1089
      %v1091 = vpop.f32.mrb[0].mxu0
      %1092 = vmatprep.mubr.f32.mxu0 0.0
      %1093 = vmatmul.mubr.f32.gmra.mrb[0].mxu0 %v993
      %v1094 = vpop.f32.mrb[0].mxu0
      %v1095 = vadd.f32 0.0, %v1094
      %v1096 = vpop.f32.mrb[0].mxu0
      %1097 = vmatprep.mubr.f32.mxu0 0.0
      %1098 = vmatmul.mubr.f32.gmra.mrb[0].mxu0 %v996
      %v1099 = vpop.f32.mrb[0].mxu0
      %v1100 = vadd.f32 0.0, %v1099
      %v1101 = vpop.f32.mrb[0].mxu0
      %1102 = vdwg.mxu0
      %1103 = vst.msk [vmem:[#allocation2] sm:$0xff] %vm723, %v1065
      %1104 = vst.msk [vmem:[#allocation2 + $0x8] sm:$0xff] %vm723, %v1070
      %1105 = vst.msk [vmem:[#allocation2 + $0x10] sm:$0xff] %vm723, %v1075
      %1106 = vst.msk [vmem:[#allocation2 + $0x18] sm:$0xff] %vm723, %v1080
      %1107 = vst.msk [vmem:[#allocation2 + $0x20] sm:$0xff] %vm723, %v1085
      %1108 = vst.msk [vmem:[#allocation2 + $0x28] sm:$0xff] %vm723, %v1090
      %1109 = vst.msk [vmem:[#allocation2 + $0x30] sm:$0xff] %vm723, %v1095
      %1110 = vst.msk [vmem:[#allocation2 + $0x38] sm:$0xff] %vm723, %v1100
      %1111 = vrot.lane.b32.xlu0 %v661, 112
      %v1112 = vpop.permute.xlu0 %1111
      %1113 = vrot.lane.b32.xlu0 %v666, 112
      %v1114 = vpop.permute.xlu0 %1113
      %1115 = vrot.lane.b32.xlu0 %v671, 112
      %v1116 = vpop.permute.xlu0 %1115
      %1117 = vrot.lane.b32.xlu0 %v676, 112
      %v1118 = vpop.permute.xlu0 %1117
      %1119 = vrot.lane.b32.xlu0 %v681, 112
      %v1120 = vpop.permute.xlu0 %1119
      %1121 = vrot.lane.b32.xlu0 %v686, 112
      %v1122 = vpop.permute.xlu0 %1121
      %1123 = vrot.lane.b32.xlu0 %v691, 112
      %v1124 = vpop.permute.xlu0 %1123
      %1125 = vrot.lane.b32.xlu0 %v696, 112
      %v1126 = vpop.permute.xlu0 %1125
      %1127 = vrot.lane.b32.xlu0 %v661, 80
      %v1128 = vpop.permute.xlu0 %1127
      %1129 = vrot.lane.b32.xlu0 %v666, 80
      %v1130 = vpop.permute.xlu0 %1129
      %1131 = vrot.lane.b32.xlu0 %v671, 80
      %v1132 = vpop.permute.xlu0 %1131
      %1133 = vrot.lane.b32.xlu0 %v676, 80
      %v1134 = vpop.permute.xlu0 %1133
      %1135 = vrot.lane.b32.xlu0 %v681, 80
      %v1136 = vpop.permute.xlu0 %1135
      %1137 = vrot.lane.b32.xlu0 %v686, 80
      %v1138 = vpop.permute.xlu0 %1137
      %1139 = vrot.lane.b32.xlu0 %v691, 80
      %v1140 = vpop.permute.xlu0 %1139
      %1141 = vrot.lane.b32.xlu0 %v696, 80
      %v1142 = vpop.permute.xlu0 %1141
      %v1143 = vsel %vm723, %v1112, 0
      %v1145 = vsel %vm723, %v1114, 0
      %v1147 = vsel %vm723, %v1116, 0
      %v1149 = vsel %vm723, %v1118, 0
      %v1151 = vsel %vm723, %v1120, 0
      %v1153 = vsel %vm723, %v1122, 0
      %v1155 = vsel %vm723, %v1124, 0
      %v1157 = vsel %vm723, %v1126, 0
      %v1159 = vsel %vm723, %v1128, 0
      %v1161 = vsel %vm723, %v1130, 0
      %v1163 = vsel %vm723, %v1132, 0
      %v1165 = vsel %vm723, %v1134, 0
      %v1167 = vsel %vm723, %v1136, 0
      %v1169 = vsel %vm723, %v1138, 0
      %v1171 = vsel %vm723, %v1140, 0
      %v1173 = vsel %vm723, %v1142, 0
      %1175 = vmatprep.subr.mxu0 0.0
      %1176 = vmatpush1.xpose.msra.mxu0 %v1159
      %1177 = vmatprep.subr.mxu0 0.0
      %1178 = vmatpush1.xpose.msra.mxu0 %v1161
      %1179 = vmatprep.subr.mxu0 0.0
      %1180 = vmatpush1.xpose.msra.mxu0 %v1163
      %1181 = vmatprep.subr.mxu0 0.0
      %1182 = vmatpush1.xpose.msra.mxu0 %v1165
      %1183 = vmatprep.subr.mxu0 0.0
      %1184 = vmatpush1.xpose.msra.mxu0 %v1167
      %1185 = vmatprep.subr.mxu0 0.0
      %1186 = vmatpush1.xpose.msra.mxu0 %v1169
      %1187 = vmatprep.subr.mxu0 0.0
      %1188 = vmatpush1.xpose.msra.mxu0 %v1171
      %1189 = vmatprep.subr.mxu0 0.0
      %1190 = vmatpush1.xpose.msra.mxu0 %v1173
      %1191 = vmatprep.subr.mxu0 0.0
      %1192 = vmatpush1.xpose.msra.mxu0 0.0
      %1193 = vmatprep.subr.mxu0 0.0
      %1194 = vmatpush1.xpose.msra.mxu0 0.0
      %1195 = vmatprep.subr.mxu0 0.0
      %1196 = vmatpush1.xpose.msra.mxu0 0.0
      %1197 = vmatprep.subr.mxu0 0.0
      %1198 = vmatpush1.xpose.msra.mxu0 0.0
      %1199 = vmatprep.subr.mxu0 0.0
      %1200 = vmatpush1.xpose.msra.mxu0 0.0
      %1201 = vmatprep.subr.mxu0 0.0
      %1202 = vmatpush1.xpose.msra.mxu0 0.0
      %1203 = vmatprep.subr.mxu0 0.0
      %1204 = vmatpush1.xpose.msra.mxu0 0.0
      %1205 = vmatprep.subr.mxu0 0.0
      %1206 = vmatpush1.xpose.msra.mxu0 0.0
      %1207 = vmatprep.subr.mxu0 0.0
      %1208 = vmatpush1.xpose.msra.mxu0 0.0
      %1209 = vmatprep.subr.mxu0 0.0
      %1210 = vmatpush1.xpose.msra.mxu0 0.0
      %1211 = vmatprep.subr.mxu0 0.0
      %1212 = vmatpush1.xpose.msra.mxu0 0.0
      %1213 = vmatprep.subr.mxu0 0.0
      %1214 = vmatpush1.xpose.msra.mxu0 0.0
      %1215 = vmatprep.subr.mxu0 0.0
      %1216 = vmatpush1.xpose.msra.mxu0 0.0
      %1217 = vmatprep.subr.mxu0 0.0
      %1218 = vmatpush1.xpose.msra.mxu0 0.0
      %1219 = vmatprep.subr.mxu0 0.0
      %1220 = vmatpush1.xpose.msra.mxu0 0.0
      %1221 = vmatprep.subr.mxu0 0.0
      %1222 = vmatpush1.xpose.msra.mxu0 0.0
      %1223 = vmatprep.subr.mxu0 0.0
      %1224 = vmatpush1.xpose.msra.mxu0 0.0
      %1225 = vmatprep.subr.mxu0 0.0
      %1226 = vmatpush1.xpose.msra.mxu0 0.0
      %1227 = vmatprep.subr.mxu0 0.0
      %1228 = vmatpush1.xpose.msra.mxu0 0.0
      %1229 = vmatprep.subr.mxu0 0.0
      %1230 = vmatpush1.xpose.msra.mxu0 0.0
      %1231 = vmatprep.subr.mxu0 0.0
      %1232 = vmatpush1.xpose.msra.mxu0 0.0
      %1233 = vmatprep.subr.mxu0 0.0
      %1234 = vmatpush1.xpose.msra.mxu0 0.0
      %1235 = vmatprep.subr.mxu0 0.0
      %1236 = vmatpush1.xpose.msra.mxu0 0.0
      %1237 = vmatprep.subr.mxu0 0.0
      %1238 = vmatpush1.xpose.msra.mxu0 0.0
      %1239 = vmatprep.mubr.f32.mxu0 0.0
      %1240 = vmatmul.mubr.f32.gmra.mrb[0].mxu0 %v1143
      %v1241 = vpop.f32.mrb[0].mxu0
      %v1242 = vadd.f32 %v496, %v1241
      %v1243 = vpop.f32.mrb[0].mxu0
      %1244 = vmatprep.mubr.f32.mxu0 0.0
      %1245 = vmatmul.mubr.f32.gmra.mrb[0].mxu0 %v1145
      %v1246 = vpop.f32.mrb[0].mxu0
      %v1247 = vadd.f32 %v497, %v1246
      %v1248 = vpop.f32.mrb[0].mxu0
      %1249 = vmatprep.mubr.f32.mxu0 0.0
      %1250 = vmatmul.mubr.f32.gmra.mrb[0].mxu0 %v1147
      %v1251 = vpop.f32.mrb[0].mxu0
      %v1252 = vadd.f32 %v498, %v1251
      %v1253 = vpop.f32.mrb[0].mxu0
      %1254 = vmatprep.mubr.f32.mxu0 0.0
      %1255 = vmatmul.mubr.f32.gmra.mrb[0].mxu0 %v1149
      %v1256 = vpop.f32.mrb[0].mxu0
      %v1257 = vadd.f32 %v499, %v1256
      %v1258 = vpop.f32.mrb[0].mxu0
      %1259 = vmatprep.mubr.f32.mxu0 0.0
      %1260 = vmatmul.mubr.f32.gmra.mrb[0].mxu0 %v1151
      %v1261 = vpop.f32.mrb[0].mxu0
      %v1262 = vadd.f32 %v500, %v1261
      %v1263 = vpop.f32.mrb[0].mxu0
      %1264 = vmatprep.mubr.f32.mxu0 0.0
      %1265 = vmatmul.mubr.f32.gmra.mrb[0].mxu0 %v1153
      %v1266 = vpop.f32.mrb[0].mxu0
      %v1267 = vadd.f32 %v501, %v1266
      %v1268 = vpop.f32.mrb[0].mxu0
      %1269 = vmatprep.mubr.f32.mxu0 0.0
      %1270 = vmatmul.mubr.f32.gmra.mrb[0].mxu0 %v1155
      %v1271 = vpop.f32.mrb[0].mxu0
      %v1272 = vadd.f32 %v502, %v1271
      %v1273 = vpop.f32.mrb[0].mxu0
      %1274 = vmatprep.mubr.f32.mxu0 0.0
      %1275 = vmatmul.mubr.f32.gmra.mrb[0].mxu0 %v1157
      %v1276 = vpop.f32.mrb[0].mxu0
      %v1277 = vadd.f32 %v503, %v1276
      %v1278 = vpop.f32.mrb[0].mxu0
      %1279 = vdwg.mxu0
      %v1280 = vsel %vm861, %v1242, -inf
      %1281 = vmax.xlane.f32.xlu0 %v1280
      %v1282 = vpop.xlane.xlu0 %1281
      %v1283 = vsel %vm861, %v1247, -inf
      %1284 = vmax.xlane.f32.xlu0 %v1283
      %v1285 = vpop.xlane.xlu0 %1284
      %v1286 = vsel %vm861, %v1252, -inf
      %1287 = vmax.xlane.f32.xlu0 %v1286
      %v1288 = vpop.xlane.xlu0 %1287
      %v1289 = vsel %vm861, %v1257, -inf
      %1290 = vmax.xlane.f32.xlu0 %v1289
      %v1291 = vpop.xlane.xlu0 %1290
      %v1292 = vsel %vm861, %v1262, -inf
      %1293 = vmax.xlane.f32.xlu0 %v1292
      %v1294 = vpop.xlane.xlu0 %1293
      %v1295 = vsel %vm861, %v1267, -inf
      %1296 = vmax.xlane.f32.xlu0 %v1295
      %v1297 = vpop.xlane.xlu0 %1296
      %v1298 = vsel %vm861, %v1272, -inf
      %1299 = vmax.xlane.f32.xlu0 %v1298
      %v1300 = vpop.xlane.xlu0 %1299
      %v1301 = vsel %vm861, %v1277, -inf
      %1302 = vmax.xlane.f32.xlu0 %v1301
      %v1303 = vpop.xlane.xlu0 %1302
      %v1304 = vsub.f32 %v1242, %v1282
      %v1305 = vsub.f32 %v1247, %v1285
      %v1306 = vsub.f32 %v1252, %v1288
      %v1307 = vsub.f32 %v1257, %v1291
      %v1308 = vsub.f32 %v1262, %v1294
      %v1309 = vsub.f32 %v1267, %v1297
      %v1310 = vsub.f32 %v1272, %v1300
      %v1311 = vsub.f32 %v1277, %v1303
      %v1312 = vmul.f32 %v1304, 1.442695
      %v1313 = vpow.pop %v1312
      %v1314 = vmul.f32 %v1305, 1.442695
      %v1315 = vpow.pop %v1314
      %v1316 = vmul.f32 %v1306, 1.442695
      %v1317 = vpow.pop %v1316
      %v1318 = vmul.f32 %v1307, 1.442695
      %v1319 = vpow.pop %v1318
      %v1320 = vmul.f32 %v1308, 1.442695
      %v1321 = vpow.pop %v1320
      %v1322 = vmul.f32 %v1309, 1.442695
      %v1323 = vpow.pop %v1322
      %v1324 = vmul.f32 %v1310, 1.442695
      %v1325 = vpow.pop %v1324
      %v1326 = vmul.f32 %v1311, 1.442695
      %v1327 = vpow.pop %v1326
      %v1328 = vsel %vm861, %v1313, 0.0
      %1329 = vadd.xlane.f32.xlu0 %v1328
      %v1330 = vpop.xlane.xlu0 %1329
      %v1331 = vsel %vm861, %v1315, 0.0
      %1332 = vadd.xlane.f32.xlu0 %v1331
      %v1333 = vpop.xlane.xlu0 %1332
      %v1334 = vsel %vm861, %v1317, 0.0
      %1335 = vadd.xlane.f32.xlu0 %v1334
      %v1336 = vpop.xlane.xlu0 %1335
      %v1337 = vsel %vm861, %v1319, 0.0
      %1338 = vadd.xlane.f32.xlu0 %v1337
      %v1339 = vpop.xlane.xlu0 %1338
      %v1340 = vsel %vm861, %v1321, 0.0
      %1341 = vadd.xlane.f32.xlu0 %v1340
      %v1342 = vpop.xlane.xlu0 %1341
      %v1343 = vsel %vm861, %v1323, 0.0
      %1344 = vadd.xlane.f32.xlu0 %v1343
      %v1345 = vpop.xlane.xlu0 %1344
      %v1346 = vsel %vm861, %v1325, 0.0
      %1347 = vadd.xlane.f32.xlu0 %v1346
      %v1348 = vpop.xlane.xlu0 %1347
      %v1349 = vsel %vm861, %v1327, 0.0
      %1350 = vadd.xlane.f32.xlu0 %v1349
      %v1351 = vpop.xlane.xlu0 %1350
      %v1352 = vrcp.pop %v1330
      %v1353 = vrcp.pop %v1333
      %v1354 = vrcp.pop %v1336
      %v1355 = vrcp.pop %v1339
      %v1356 = vrcp.pop %v1342
      %v1357 = vrcp.pop %v1345
      %v1358 = vrcp.pop %v1348
      %v1359 = vrcp.pop %v1351
      %v1360 = vmul.f32 %v1313, %v1352
      %v1361 = vmul.f32 %v1315, %v1353
      %v1362 = vmul.f32 %v1317, %v1354
      %v1363 = vmul.f32 %v1319, %v1355
      %v1364 = vmul.f32 %v1321, %v1356
      %v1365 = vmul.f32 %v1323, %v1357
      %v1366 = vmul.f32 %v1325, %v1358
      %v1367 = vmul.f32 %v1327, %v1359
      %1368 = vrot.lane.b32.xlu0 %v661, 48
      %v1369 = vpop.permute.xlu0 %1368
      %1370 = vrot.lane.b32.xlu0 %v666, 48
      %v1371 = vpop.permute.xlu0 %1370
      %1372 = vrot.lane.b32.xlu0 %v671, 48
      %v1373 = vpop.permute.xlu0 %1372
      %1374 = vrot.lane.b32.xlu0 %v676, 48
      %v1375 = vpop.permute.xlu0 %1374
      %1376 = vrot.lane.b32.xlu0 %v681, 48
      %v1377 = vpop.permute.xlu0 %1376
      %1378 = vrot.lane.b32.xlu0 %v686, 48
      %v1379 = vpop.permute.xlu0 %1378
      %1380 = vrot.lane.b32.xlu0 %v691, 48
      %v1381 = vpop.permute.xlu0 %1380
      %1382 = vrot.lane.b32.xlu0 %v696, 48
      %v1383 = vpop.permute.xlu0 %1382
      %v1393 = vsel %vm861, %v1360, 0
      %v1396 = vsel %vm861, %v1361, 0
      %v1399 = vsel %vm861, %v1362, 0
      %v1402 = vsel %vm861, %v1363, 0
      %v1405 = vsel %vm861, %v1364, 0
      %v1408 = vsel %vm861, %v1365, 0
      %v1411 = vsel %vm861, %v1366, 0
      %v1414 = vsel %vm861, %v1367, 0
      %1416 = vmatprep.subr.mxu0 0.0
      %1417 = vmatpush1.msra.mxu0 %v1369
      %1418 = vmatprep.subr.mxu0 0.0
      %1419 = vmatpush1.msra.mxu0 %v1371
      %1420 = vmatprep.subr.mxu0 0.0
      %1421 = vmatpush1.msra.mxu0 %v1373
      %1422 = vmatprep.subr.mxu0 0.0
      %1423 = vmatpush1.msra.mxu0 %v1375
      %1424 = vmatprep.subr.mxu0 0.0
      %1425 = vmatpush1.msra.mxu0 %v1377
      %1426 = vmatprep.subr.mxu0 0.0
      %1427 = vmatpush1.msra.mxu0 %v1379
      %1428 = vmatprep.subr.mxu0 0.0
      %1429 = vmatpush1.msra.mxu0 %v1381
      %1430 = vmatprep.subr.mxu0 0.0
      %1431 = vmatpush1.msra.mxu0 %v1383
      %1432 = vmatprep.subr.mxu0 0.0
      %1433 = vmatpush1.msra.mxu0 0.0
      %1434 = vmatprep.subr.mxu0 0.0
      %1435 = vmatpush1.msra.mxu0 0.0
      %1436 = vmatprep.subr.mxu0 0.0
      %1437 = vmatpush1.msra.mxu0 0.0
      %1438 = vmatprep.subr.mxu0 0.0
      %1439 = vmatpush1.msra.mxu0 0.0
      %1440 = vmatprep.subr.mxu0 0.0
      %1441 = vmatpush1.msra.mxu0 0.0
      %1442 = vmatprep.subr.mxu0 0.0
      %1443 = vmatpush1.msra.mxu0 0.0
      %1444 = vmatprep.subr.mxu0 0.0
      %1445 = vmatpush1.msra.mxu0 0.0
      %1446 = vmatprep.subr.mxu0 0.0
      %1447 = vmatpush1.msra.mxu0 0.0
      %1448 = vmatprep.subr.mxu0 0.0
      %1449 = vmatpush1.msra.mxu0 0.0
      %1450 = vmatprep.subr.mxu0 0.0
      %1451 = vmatpush1.msra.mxu0 0.0
      %1452 = vmatprep.subr.mxu0 0.0
      %1453 = vmatpush1.msra.mxu0 0.0
      %1454 = vmatprep.subr.mxu0 0.0
      %1455 = vmatpush1.msra.mxu0 0.0
      %1456 = vmatprep.subr.mxu0 0.0
      %1457 = vmatpush1.msra.mxu0 0.0
      %1458 = vmatprep.subr.mxu0 0.0
      %1459 = vmatpush1.msra.mxu0 0.0
      %1460 = vmatprep.subr.mxu0 0.0
      %1461 = vmatpush1.msra.mxu0 0.0
      %1462 = vmatprep.subr.mxu0 0.0
      %1463 = vmatpush1.msra.mxu0 0.0
      %1464 = vmatprep.subr.mxu0 0.0
      %1465 = vmatpush1.msra.mxu0 0.0
      %1466 = vmatprep.subr.mxu0 0.0
      %1467 = vmatpush1.msra.mxu0 0.0
      %1468 = vmatprep.subr.mxu0 0.0
      %1469 = vmatpush1.msra.mxu0 0.0
      %1470 = vmatprep.subr.mxu0 0.0
      %1471 = vmatpush1.msra.mxu0 0.0
      %1472 = vmatprep.subr.mxu0 0.0
      %1473 = vmatpush1.msra.mxu0 0.0
      %1474 = vmatprep.subr.mxu0 0.0
      %1475 = vmatpush1.msra.mxu0 0.0
      %1476 = vmatprep.subr.mxu0 0.0
      %1477 = vmatpush1.msra.mxu0 0.0
      %1478 = vmatprep.subr.mxu0 0.0
      %1479 = vmatpush1.msra.mxu0 0.0
      %1480 = vmatprep.mubr.f32.mxu0 0.0
      %1481 = vmatmul.mubr.f32.gmra.mrb[0].mxu0 %v1393
      %v1482 = vpop.f32.mrb[0].mxu0
      %v1483 = vadd.f32 0.0, %v1482
      %v1484 = vpop.f32.mrb[0].mxu0
      %1485 = vmatprep.mubr.f32.mxu0 0.0
      %1486 = vmatmul.mubr.f32.gmra.mrb[0].mxu0 %v1396
      %v1487 = vpop.f32.mrb[0].mxu0
      %v1488 = vadd.f32 0.0, %v1487
      %v1489 = vpop.f32.mrb[0].mxu0
      %1490 = vmatprep.mubr.f32.mxu0 0.0
      %1491 = vmatmul.mubr.f32.gmra.mrb[0].mxu0 %v1399
      %v1492 = vpop.f32.mrb[0].mxu0
      %v1493 = vadd.f32 0.0, %v1492
      %v1494 = vpop.f32.mrb[0].mxu0
      %1495 = vmatprep.mubr.f32.mxu0 0.0
      %1496 = vmatmul.mubr.f32.gmra.mrb[0].mxu0 %v1402
      %v1497 = vpop.f32.mrb[0].mxu0
      %v1498 = vadd.f32 0.0, %v1497
      %v1499 = vpop.f32.mrb[0].mxu0
      %1500 = vmatprep.mubr.f32.mxu0 0.0
      %1501 = vmatmul.mubr.f32.gmra.mrb[0].mxu0 %v1405
      %v1502 = vpop.f32.mrb[0].mxu0
      %v1503 = vadd.f32 0.0, %v1502
      %v1504 = vpop.f32.mrb[0].mxu0
      %1505 = vmatprep.mubr.f32.mxu0 0.0
      %1506 = vmatmul.mubr.f32.gmra.mrb[0].mxu0 %v1408
      %v1507 = vpop.f32.mrb[0].mxu0
      %v1508 = vadd.f32 0.0, %v1507
      %v1509 = vpop.f32.mrb[0].mxu0
      %1510 = vmatprep.mubr.f32.mxu0 0.0
      %1511 = vmatmul.mubr.f32.gmra.mrb[0].mxu0 %v1411
      %v1512 = vpop.f32.mrb[0].mxu0
      %v1513 = vadd.f32 0.0, %v1512
      %v1514 = vpop.f32.mrb[0].mxu0
      %1515 = vmatprep.mubr.f32.mxu0 0.0
      %1516 = vmatmul.mubr.f32.gmra.mrb[0].mxu0 %v1414
      %v1517 = vpop.f32.mrb[0].mxu0
      %v1518 = vadd.f32 0.0, %v1517
      %v1519 = vpop.f32.mrb[0].mxu0
      %1520 = vdwg.mxu0
      %1529 = vrot.lane.b32.xlu0 %v1483, 16
      %v1530 = vpop.permute.xlu0 %1529
      %1531 = vrot.lane.b32.xlu0 %v1488, 16
      %v1532 = vpop.permute.xlu0 %1531
      %1533 = vrot.lane.b32.xlu0 %v1493, 16
      %v1534 = vpop.permute.xlu0 %1533
      %1535 = vrot.lane.b32.xlu0 %v1498, 16
      %v1536 = vpop.permute.xlu0 %1535
      %1537 = vrot.lane.b32.xlu0 %v1503, 16
      %v1538 = vpop.permute.xlu0 %1537
      %1539 = vrot.lane.b32.xlu0 %v1508, 16
      %v1540 = vpop.permute.xlu0 %1539
      %1541 = vrot.lane.b32.xlu0 %v1513, 16
      %v1542 = vpop.permute.xlu0 %1541
      %1543 = vrot.lane.b32.xlu0 %v1518, 16
      %v1544 = vpop.permute.xlu0 %1543
      %vm1553 = vcmask 261248
      %1554 = vst.msk [vmem:[#allocation2] sm:$0xff] %vm1553, %v1530
      %1555 = vst.msk [vmem:[#allocation2 + $0x8] sm:$0xff] %vm1553, %v1532
      %1556 = vst.msk [vmem:[#allocation2 + $0x10] sm:$0xff] %vm1553, %v1534
      %1557 = vst.msk [vmem:[#allocation2 + $0x18] sm:$0xff] %vm1553, %v1536
      %1558 = vst.msk [vmem:[#allocation2 + $0x20] sm:$0xff] %vm1553, %v1538
      %1559 = vst.msk [vmem:[#allocation2 + $0x28] sm:$0xff] %vm1553, %v1540
      %1560 = vst.msk [vmem:[#allocation2 + $0x30] sm:$0xff] %vm1553, %v1542
      %1561 = vst.msk [vmem:[#allocation2 + $0x38] sm:$0xff] %vm1553, %v1544
      %v1562 = vld [vmem:[#allocation2] sm:$0xff]
      %v1563 = vld [vmem:[#allocation2 + $0x8] sm:$0xff]
      %v1564 = vld [vmem:[#allocation2 + $0x10] sm:$0xff]
      %v1565 = vld [vmem:[#allocation2 + $0x18] sm:$0xff]
      %v1566 = vld [vmem:[#allocation2 + $0x20] sm:$0xff]
      %v1567 = vld [vmem:[#allocation2 + $0x28] sm:$0xff]
      %v1568 = vld [vmem:[#allocation2 + $0x30] sm:$0xff]
      %v1569 = vld [vmem:[#allocation2 + $0x38] sm:$0xff]
      %v1570 = vld [vmem:[%s468] sm:$0xff]
      %v1571 = vld [vmem:[%s468 + $0x8] sm:$0xff]
      %v1572 = vld [vmem:[%s468 + $0x10] sm:$0xff]
      %v1573 = vld [vmem:[%s468 + $0x18] sm:$0xff]
      %v1574 = vlaneseq
      %v1575 = vshrl.u32 %v1574, 7
      %v1576 = vsub.s32 1, %v1575
      %v1577 = vrot.slane %v560, %v1576
      %v1579 = vsel %vm569, %v1562, 0
      %v1582 = vsel %vm569, %v1563, 0
      %v1585 = vsel %vm569, %v1564, 0
      %v1588 = vsel %vm569, %v1565, 0
      %v1591 = vsel %vm569, %v1566, 0
      %v1594 = vsel %vm569, %v1567, 0
      %v1597 = vsel %vm569, %v1568, 0
      %v1600 = vsel %vm569, %v1569, 0
      %1602 = vmatprep.subr.mxu0 0.0
      %1603 = vmatpush1.msra.mxu0 %v1570
      %1604 = vmatprep.subr.mxu0 0.0
      %1605 = vmatpush1.msra.mxu0 %v1571
      %1606 = vmatprep.subr.mxu0 0.0
      %1607 = vmatpush1.msra.mxu0 %v1572
      %1608 = vmatprep.subr.mxu0 0.0
      %1609 = vmatpush1.msra.mxu0 %v1573
      %1610 = vmatprep.subr.mxu0 0.0
      %1611 = vmatpush1.msra.mxu0 0.0
      %1612 = vmatprep.subr.mxu0 0.0
      %1613 = vmatpush1.msra.mxu0 0.0
      %1614 = vmatprep.subr.mxu0 0.0
      %1615 = vmatpush1.msra.mxu0 0.0
      %1616 = vmatprep.subr.mxu0 0.0
      %1617 = vmatpush1.msra.mxu0 0.0
      %1618 = vmatprep.subr.mxu0 0.0
      %1619 = vmatpush1.msra.mxu0 0.0
      %1620 = vmatprep.subr.mxu0 0.0
      %1621 = vmatpush1.msra.mxu0 0.0
      %1622 = vmatprep.subr.mxu0 0.0
      %1623 = vmatpush1.msra.mxu0 0.0
      %1624 = vmatprep.subr.mxu0 0.0
      %1625 = vmatpush1.msra.mxu0 0.0
      %1626 = vmatprep.subr.mxu0 0.0
      %1627 = vmatpush1.msra.mxu0 0.0
      %1628 = vmatprep.subr.mxu0 0.0
      %1629 = vmatpush1.msra.mxu0 0.0
      %1630 = vmatprep.subr.mxu0 0.0
      %1631 = vmatpush1.msra.mxu0 0.0
      %1632 = vmatprep.subr.mxu0 0.0
      %1633 = vmatpush1.msra.mxu0 0.0
      %1634 = vmatprep.subr.mxu0 0.0
      %1635 = vmatpush1.msra.mxu0 0.0
      %1636 = vmatprep.subr.mxu0 0.0
      %1637 = vmatpush1.msra.mxu0 0.0
      %1638 = vmatprep.subr.mxu0 0.0
      %1639 = vmatpush1.msra.mxu0 0.0
      %1640 = vmatprep.subr.mxu0 0.0
      %1641 = vmatpush1.msra.mxu0 0.0
      %1642 = vmatprep.subr.mxu0 0.0
      %1643 = vmatpush1.msra.mxu0 0.0
      %1644 = vmatprep.subr.mxu0 0.0
      %1645 = vmatpush1.msra.mxu0 0.0
      %1646 = vmatprep.subr.mxu0 0.0
      %1647 = vmatpush1.msra.mxu0 0.0
      %1648 = vmatprep.subr.mxu0 0.0
      %1649 = vmatpush1.msra.mxu0 0.0
      %1650 = vmatprep.subr.mxu0 0.0
      %1651 = vmatpush1.msra.mxu0 0.0
      %1652 = vmatprep.subr.mxu0 0.0
      %1653 = vmatpush1.msra.mxu0 0.0
      %1654 = vmatprep.subr.mxu0 0.0
      %1655 = vmatpush1.msra.mxu0 0.0
      %1656 = vmatprep.subr.mxu0 0.0
      %1657 = vmatpush1.msra.mxu0 0.0
      %1658 = vmatprep.subr.mxu0 0.0
      %1659 = vmatpush1.msra.mxu0 0.0
      %1660 = vmatprep.subr.mxu0 0.0
      %1661 = vmatpush1.msra.mxu0 0.0
      %1662 = vmatprep.subr.mxu0 0.0
      %1663 = vmatpush1.msra.mxu0 0.0
      %1664 = vmatprep.subr.mxu0 0.0
      %1665 = vmatpush1.msra.mxu0 0.0
      %1666 = vmatprep.mubr.f32.mxu0 0.0
      %1667 = vmatmul.mubr.f32.gmra.mrb[0].mxu0 %v1579
      %v1668 = vpop.f32.mrb[0].mxu0
      %v1669 = vadd.f32 %v1577, %v1668
      %v1670 = vpop.f32.mrb[0].mxu0
      %1671 = vmatprep.mubr.f32.mxu0 0.0
      %1672 = vmatmul.mubr.f32.gmra.mrb[0].mxu0 %v1582
      %v1673 = vpop.f32.mrb[0].mxu0
      %v1674 = vadd.f32 %v1577, %v1673
      %v1675 = vpop.f32.mrb[0].mxu0
      %1676 = vmatprep.mubr.f32.mxu0 0.0
      %1677 = vmatmul.mubr.f32.gmra.mrb[0].mxu0 %v1585
      %v1678 = vpop.f32.mrb[0].mxu0
      %v1679 = vadd.f32 %v1577, %v1678
      %v1680 = vpop.f32.mrb[0].mxu0
      %1681 = vmatprep.mubr.f32.mxu0 0.0
      %1682 = vmatmul.mubr.f32.gmra.mrb[0].mxu0 %v1588
      %v1683 = vpop.f32.mrb[0].mxu0
      %v1684 = vadd.f32 %v1577, %v1683
      %v1685 = vpop.f32.mrb[0].mxu0
      %1686 = vmatprep.mubr.f32.mxu0 0.0
      %1687 = vmatmul.mubr.f32.gmra.mrb[0].mxu0 %v1591
      %v1688 = vpop.f32.mrb[0].mxu0
      %v1689 = vadd.f32 %v1577, %v1688
      %v1690 = vpop.f32.mrb[0].mxu0
      %1691 = vmatprep.mubr.f32.mxu0 0.0
      %1692 = vmatmul.mubr.f32.gmra.mrb[0].mxu0 %v1594
      %v1693 = vpop.f32.mrb[0].mxu0
      %v1694 = vadd.f32 %v1577, %v1693
      %v1695 = vpop.f32.mrb[0].mxu0
      %1696 = vmatprep.mubr.f32.mxu0 0.0
      %1697 = vmatmul.mubr.f32.gmra.mrb[0].mxu0 %v1597
      %v1698 = vpop.f32.mrb[0].mxu0
      %v1699 = vadd.f32 %v1577, %v1698
      %v1700 = vpop.f32.mrb[0].mxu0
      %1701 = vmatprep.mubr.f32.mxu0 0.0
      %1702 = vmatmul.mubr.f32.gmra.mrb[0].mxu0 %v1600
      %v1703 = vpop.f32.mrb[0].mxu0
      %v1704 = vadd.f32 %v1577, %v1703
      %v1705 = vpop.f32.mrb[0].mxu0
      %1706 = vdwg.mxu0
      %v1707 = vadd.f32 %v552, %v1669
      %v1708 = vadd.f32 %v553, %v1674
      %v1709 = vadd.f32 %v554, %v1679
      %v1710 = vadd.f32 %v555, %v1684
      %v1711 = vadd.f32 %v556, %v1689
      %v1712 = vadd.f32 %v557, %v1694
      %v1713 = vadd.f32 %v558, %v1699
      %v1714 = vadd.f32 %v559, %v1704
      %v1715 = vsel %vm569, %v1707, 0.0
      %1716 = vadd.xlane.f32.xlu0 %v1715
      %v1717 = vpop.xlane.xlu0 %1716
      %v1718 = vsel %vm569, %v1708, 0.0
      %1719 = vadd.xlane.f32.xlu0 %v1718
      %v1720 = vpop.xlane.xlu0 %1719
      %v1721 = vsel %vm569, %v1709, 0.0
      %1722 = vadd.xlane.f32.xlu0 %v1721
      %v1723 = vpop.xlane.xlu0 %1722
      %v1724 = vsel %vm569, %v1710, 0.0
      %1725 = vadd.xlane.f32.xlu0 %v1724
      %v1726 = vpop.xlane.xlu0 %1725
      %v1727 = vsel %vm569, %v1711, 0.0
      %1728 = vadd.xlane.f32.xlu0 %v1727
      %v1729 = vpop.xlane.xlu0 %1728
      %v1730 = vsel %vm569, %v1712, 0.0
      %1731 = vadd.xlane.f32.xlu0 %v1730
      %v1732 = vpop.xlane.xlu0 %1731
      %v1733 = vsel %vm569, %v1713, 0.0
      %1734 = vadd.xlane.f32.xlu0 %v1733
      %v1735 = vpop.xlane.xlu0 %1734
      %v1736 = vsel %vm569, %v1714, 0.0
      %1737 = vadd.xlane.f32.xlu0 %v1736
      %v1738 = vpop.xlane.xlu0 %1737
      %v1739 = vrcp.pop 32.0
      %v1740 = vmul.f32 %v1717, %v1739
      %v1741 = vmul.f32 %v1720, %v1739
      %v1742 = vmul.f32 %v1723, %v1739
      %v1743 = vmul.f32 %v1726, %v1739
      %v1744 = vmul.f32 %v1729, %v1739
      %v1745 = vmul.f32 %v1732, %v1739
      %v1746 = vmul.f32 %v1735, %v1739
      %v1747 = vmul.f32 %v1738, %v1739
      %v1748 = vsub.f32 %v1707, %v1740
      %v1749 = vsub.f32 %v1708, %v1741
      %v1750 = vsub.f32 %v1709, %v1742
      %v1751 = vsub.f32 %v1710, %v1743
      %v1752 = vsub.f32 %v1711, %v1744
      %v1753 = vsub.f32 %v1712, %v1745
      %v1754 = vsub.f32 %v1713, %v1746
      %v1755 = vsub.f32 %v1714, %v1747
      %v1756 = vmul.f32 %v1748, %v1748
      %v1757 = vmul.f32 %v1749, %v1749
      %v1758 = vmul.f32 %v1750, %v1750
      %v1759 = vmul.f32 %v1751, %v1751
      %v1760 = vmul.f32 %v1752, %v1752
      %v1761 = vmul.f32 %v1753, %v1753
      %v1762 = vmul.f32 %v1754, %v1754
      %v1763 = vmul.f32 %v1755, %v1755
      %v1764 = vsel %vm569, %v1756, 0.0
      %1765 = vadd.xlane.f32.xlu0 %v1764
      %v1766 = vpop.xlane.xlu0 %1765
      %v1767 = vsel %vm569, %v1757, 0.0
      %1768 = vadd.xlane.f32.xlu0 %v1767
      %v1769 = vpop.xlane.xlu0 %1768
      %v1770 = vsel %vm569, %v1758, 0.0
      %1771 = vadd.xlane.f32.xlu0 %v1770
      %v1772 = vpop.xlane.xlu0 %1771
      %v1773 = vsel %vm569, %v1759, 0.0
      %1774 = vadd.xlane.f32.xlu0 %v1773
      %v1775 = vpop.xlane.xlu0 %1774
      %v1776 = vsel %vm569, %v1760, 0.0
      %1777 = vadd.xlane.f32.xlu0 %v1776
      %v1778 = vpop.xlane.xlu0 %1777
      %v1779 = vsel %vm569, %v1761, 0.0
      %1780 = vadd.xlane.f32.xlu0 %v1779
      %v1781 = vpop.xlane.xlu0 %1780
      %v1782 = vsel %vm569, %v1762, 0.0
      %1783 = vadd.xlane.f32.xlu0 %v1782
      %v1784 = vpop.xlane.xlu0 %1783
      %v1785 = vsel %vm569, %v1763, 0.0
      %1786 = vadd.xlane.f32.xlu0 %v1785
      %v1787 = vpop.xlane.xlu0 %1786
      %v1788 = vmul.f32 %v1766, %v1739
      %v1789 = vmul.f32 %v1769, %v1739
      %v1790 = vmul.f32 %v1772, %v1739
      %v1791 = vmul.f32 %v1775, %v1739
      %v1792 = vmul.f32 %v1778, %v1739
      %v1793 = vmul.f32 %v1781, %v1739
      %v1794 = vmul.f32 %v1784, %v1739
      %v1795 = vmul.f32 %v1787, %v1739
      %v1796 = vadd.f32 %v1788, 1e-05
      %v1797 = vadd.f32 %v1789, 1e-05
      %v1798 = vadd.f32 %v1790, 1e-05
      %v1799 = vadd.f32 %v1791, 1e-05
      %v1800 = vadd.f32 %v1792, 1e-05
      %v1801 = vadd.f32 %v1793, 1e-05
      %v1802 = vadd.f32 %v1794, 1e-05
      %v1803 = vadd.f32 %v1795, 1e-05
      %v1804 = vrsqrt.pop %v1796
      %v1805 = vrsqrt.pop %v1797
      %v1806 = vrsqrt.pop %v1798
      %v1807 = vrsqrt.pop %v1799
      %v1808 = vrsqrt.pop %v1800
      %v1809 = vrsqrt.pop %v1801
      %v1810 = vrsqrt.pop %v1802
      %v1811 = vrsqrt.pop %v1803
      %v1812 = vmul.f32 %v1748, %v1804
      %v1813 = vmul.f32 %v1749, %v1805
      %v1814 = vmul.f32 %v1750, %v1806
      %v1815 = vmul.f32 %v1751, %v1807
      %v1816 = vmul.f32 %v1752, %v1808
      %v1817 = vmul.f32 %v1753, %v1809
      %v1818 = vmul.f32 %v1754, %v1810
      %v1819 = vmul.f32 %v1755, %v1811
      %v1820 = vlaneseq
      %v1821 = vshrl.u32 %v1820, 7
      %v1822 = vsub.s32 2, %v1821
      %v1823 = vrot.slane %v560, %v1822
      %v1824 = vmul.f32 %v1812, %v1823
      %v1825 = vmul.f32 %v1813, %v1823
      %v1826 = vmul.f32 %v1814, %v1823
      %v1827 = vmul.f32 %v1815, %v1823
      %v1828 = vmul.f32 %v1816, %v1823
      %v1829 = vmul.f32 %v1817, %v1823
      %v1830 = vmul.f32 %v1818, %v1823
      %v1831 = vmul.f32 %v1819, %v1823
      %v1832 = vlaneseq
      %v1833 = vshrl.u32 %v1832, 7
      %v1834 = vsub.s32 3, %v1833
      %v1835 = vrot.slane %v560, %v1834
      %v1836 = vadd.f32 %v1824, %v1835
      %v1837 = vadd.f32 %v1825, %v1835
      %v1838 = vadd.f32 %v1826, %v1835
      %v1839 = vadd.f32 %v1827, %v1835
      %v1840 = vadd.f32 %v1828, %v1835
      %v1841 = vadd.f32 %v1829, %v1835
      %v1842 = vadd.f32 %v1830, %v1835
      %v1843 = vadd.f32 %v1831, %v1835
      %v1844 = vld [vmem:[%s473] sm:$0xff]
      %v1845 = vld [vmem:[%s473 + $0x8] sm:$0xff]
      %v1846 = vld [vmem:[%s473 + $0x10] sm:$0xff]
      %v1847 = vld [vmem:[%s473 + $0x18] sm:$0xff]
      %v1848 = vlaneseq
      %v1849 = vshrl.u32 %v1848, 7
      %v1850 = vsub.s32 4, %v1849
      %v1851 = vrot.slane %v560, %v1850
      %v1853 = vsel %vm569, %v1836, 0
      %v1856 = vsel %vm569, %v1837, 0
      %v1859 = vsel %vm569, %v1838, 0
      %v1862 = vsel %vm569, %v1839, 0
      %v1865 = vsel %vm569, %v1840, 0
      %v1868 = vsel %vm569, %v1841, 0
      %v1871 = vsel %vm569, %v1842, 0
      %v1874 = vsel %vm569, %v1843, 0
      %1876 = vmatprep.subr.mxu0 0.0
      %1877 = vmatpush1.msra.mxu0 %v1844
      %1878 = vmatprep.subr.mxu0 0.0
      %1879 = vmatpush1.msra.mxu0 %v1845
      %1880 = vmatprep.subr.mxu0 0.0
      %1881 = vmatpush1.msra.mxu0 %v1846
      %1882 = vmatprep.subr.mxu0 0.0
      %1883 = vmatpush1.msra.mxu0 %v1847
      %1884 = vmatprep.subr.mxu0 0.0
      %1885 = vmatpush1.msra.mxu0 0.0
      %1886 = vmatprep.subr.mxu0 0.0
      %1887 = vmatpush1.msra.mxu0 0.0
      %1888 = vmatprep.subr.mxu0 0.0
      %1889 = vmatpush1.msra.mxu0 0.0
      %1890 = vmatprep.subr.mxu0 0.0
      %1891 = vmatpush1.msra.mxu0 0.0
      %1892 = vmatprep.subr.mxu0 0.0
      %1893 = vmatpush1.msra.mxu0 0.0
      %1894 = vmatprep.subr.mxu0 0.0
      %1895 = vmatpush1.msra.mxu0 0.0
      %1896 = vmatprep.subr.mxu0 0.0
      %1897 = vmatpush1.msra.mxu0 0.0
      %1898 = vmatprep.subr.mxu0 0.0
      %1899 = vmatpush1.msra.mxu0 0.0
      %1900 = vmatprep.subr.mxu0 0.0
      %1901 = vmatpush1.msra.mxu0 0.0
      %1902 = vmatprep.subr.mxu0 0.0
      %1903 = vmatpush1.msra.mxu0 0.0
      %1904 = vmatprep.subr.mxu0 0.0
      %1905 = vmatpush1.msra.mxu0 0.0
      %1906 = vmatprep.subr.mxu0 0.0
      %1907 = vmatpush1.msra.mxu0 0.0
      %1908 = vmatprep.subr.mxu0 0.0
      %1909 = vmatpush1.msra.mxu0 0.0
      %1910 = vmatprep.subr.mxu0 0.0
      %1911 = vmatpush1.msra.mxu0 0.0
      %1912 = vmatprep.subr.mxu0 0.0
      %1913 = vmatpush1.msra.mxu0 0.0
      %1914 = vmatprep.subr.mxu0 0.0
      %1915 = vmatpush1.msra.mxu0 0.0
      %1916 = vmatprep.subr.mxu0 0.0
      %1917 = vmatpush1.msra.mxu0 0.0
      %1918 = vmatprep.subr.mxu0 0.0
      %1919 = vmatpush1.msra.mxu0 0.0
      %1920 = vmatprep.subr.mxu0 0.0
      %1921 = vmatpush1.msra.mxu0 0.0
      %1922 = vmatprep.subr.mxu0 0.0
      %1923 = vmatpush1.msra.mxu0 0.0
      %1924 = vmatprep.subr.mxu0 0.0
      %1925 = vmatpush1.msra.mxu0 0.0
      %1926 = vmatprep.subr.mxu0 0.0
      %1927 = vmatpush1.msra.mxu0 0.0
      %1928 = vmatprep.subr.mxu0 0.0
      %1929 = vmatpush1.msra.mxu0 0.0
      %1930 = vmatprep.subr.mxu0 0.0
      %1931 = vmatpush1.msra.mxu0 0.0
      %1932 = vmatprep.subr.mxu0 0.0
      %1933 = vmatpush1.msra.mxu0 0.0
      %1934 = vmatprep.subr.mxu0 0.0
      %1935 = vmatpush1.msra.mxu0 0.0
      %1936 = vmatprep.subr.mxu0 0.0
      %1937 = vmatpush1.msra.mxu0 0.0
      %1938 = vmatprep.subr.mxu0 0.0
      %1939 = vmatpush1.msra.mxu0 0.0
      %1940 = vmatprep.mubr.f32.mxu0 0.0
      %1941 = vmatmul.mubr.f32.gmra.mrb[0].mxu0 %v1853
      %v1942 = vpop.f32.mrb[0].mxu0
      %v1943 = vadd.f32 %v1851, %v1942
      %v1944 = vpop.f32.mrb[0].mxu0
      %1945 = vmatprep.mubr.f32.mxu0 0.0
      %1946 = vmatmul.mubr.f32.gmra.mrb[0].mxu0 %v1856
      %v1947 = vpop.f32.mrb[0].mxu0
      %v1948 = vadd.f32 %v1851, %v1947
      %v1949 = vpop.f32.mrb[0].mxu0
      %1950 = vmatprep.mubr.f32.mxu0 0.0
      %1951 = vmatmul.mubr.f32.gmra.mrb[0].mxu0 %v1859
      %v1952 = vpop.f32.mrb[0].mxu0
      %v1953 = vadd.f32 %v1851, %v1952
      %v1954 = vpop.f32.mrb[0].mxu0
      %1955 = vmatprep.mubr.f32.mxu0 0.0
      %1956 = vmatmul.mubr.f32.gmra.mrb[0].mxu0 %v1862
      %v1957 = vpop.f32.mrb[0].mxu0
      %v1958 = vadd.f32 %v1851, %v1957
      %v1959 = vpop.f32.mrb[0].mxu0
      %1960 = vmatprep.mubr.f32.mxu0 0.0
      %1961 = vmatmul.mubr.f32.gmra.mrb[0].mxu0 %v1865
      %v1962 = vpop.f32.mrb[0].mxu0
      %v1963 = vadd.f32 %v1851, %v1962
      %v1964 = vpop.f32.mrb[0].mxu0
      %1965 = vmatprep.mubr.f32.mxu0 0.0
      %1966 = vmatmul.mubr.f32.gmra.mrb[0].mxu0 %v1868
      %v1967 = vpop.f32.mrb[0].mxu0
      %v1968 = vadd.f32 %v1851, %v1967
      %v1969 = vpop.f32.mrb[0].mxu0
      %1970 = vmatprep.mubr.f32.mxu0 0.0
      %1971 = vmatmul.mubr.f32.gmra.mrb[0].mxu0 %v1871
      %v1972 = vpop.f32.mrb[0].mxu0
      %v1973 = vadd.f32 %v1851, %v1972
      %v1974 = vpop.f32.mrb[0].mxu0
      %1975 = vmatprep.mubr.f32.mxu0 0.0
      %1976 = vmatmul.mubr.f32.gmra.mrb[0].mxu0 %v1874
      %v1977 = vpop.f32.mrb[0].mxu0
      %v1978 = vadd.f32 %v1851, %v1977
      %v1979 = vpop.f32.mrb[0].mxu0
      %1980 = vdwg.mxu0
      %v1981 = vmax.f32 %v1943, 0.0
      %v1982 = vmax.f32 %v1948, 0.0
      %v1983 = vmax.f32 %v1953, 0.0
      %v1984 = vmax.f32 %v1958, 0.0
      %v1985 = vmax.f32 %v1963, 0.0
      %v1986 = vmax.f32 %v1968, 0.0
      %v1987 = vmax.f32 %v1973, 0.0
      %v1988 = vmax.f32 %v1978, 0.0
      %v1989 = vld [vmem:[%s478] sm:$0xff]
      %v1990 = vld [vmem:[%s478 + $0x8] sm:$0xff]
      %v1991 = vld [vmem:[%s478 + $0x10] sm:$0xff]
      %v1992 = vld [vmem:[%s478 + $0x18] sm:$0xff]
      %v1993 = vld [vmem:[%s478 + $0x20] sm:$0xff]
      %v1994 = vld [vmem:[%s478 + $0x28] sm:$0xff]
      %v1995 = vld [vmem:[%s478 + $0x30] sm:$0xff]
      %v1996 = vld [vmem:[%s478 + $0x38] sm:$0xff]
      %v1997 = vlaneseq
      %v1998 = vshrl.u32 %v1997, 7
      %v1999 = vsub.s32 5, %v1998
      %v2000 = vrot.slane %v560, %v1999
      %v2002 = vsel %vm861, %v1981, 0
      %v2005 = vsel %vm861, %v1982, 0
      %v2008 = vsel %vm861, %v1983, 0
      %v2011 = vsel %vm861, %v1984, 0
      %v2014 = vsel %vm861, %v1985, 0
      %v2017 = vsel %vm861, %v1986, 0
      %v2020 = vsel %vm861, %v1987, 0
      %v2023 = vsel %vm861, %v1988, 0
      %2025 = vmatprep.subr.mxu0 0.0
      %2026 = vmatpush1.msra.mxu0 %v1989
      %2027 = vmatprep.subr.mxu0 0.0
      %2028 = vmatpush1.msra.mxu0 %v1990
      %2029 = vmatprep.subr.mxu0 0.0
      %2030 = vmatpush1.msra.mxu0 %v1991
      %2031 = vmatprep.subr.mxu0 0.0
      %2032 = vmatpush1.msra.mxu0 %v1992
      %2033 = vmatprep.subr.mxu0 0.0
      %2034 = vmatpush1.msra.mxu0 %v1993
      %2035 = vmatprep.subr.mxu0 0.0
      %2036 = vmatpush1.msra.mxu0 %v1994
      %2037 = vmatprep.subr.mxu0 0.0
      %2038 = vmatpush1.msra.mxu0 %v1995
      %2039 = vmatprep.subr.mxu0 0.0
      %2040 = vmatpush1.msra.mxu0 %v1996
      %2041 = vmatprep.subr.mxu0 0.0
      %2042 = vmatpush1.msra.mxu0 0.0
      %2043 = vmatprep.subr.mxu0 0.0
      %2044 = vmatpush1.msra.mxu0 0.0
      %2045 = vmatprep.subr.mxu0 0.0
      %2046 = vmatpush1.msra.mxu0 0.0
      %2047 = vmatprep.subr.mxu0 0.0
      %2048 = vmatpush1.msra.mxu0 0.0
      %2049 = vmatprep.subr.mxu0 0.0
      %2050 = vmatpush1.msra.mxu0 0.0
      %2051 = vmatprep.subr.mxu0 0.0
      %2052 = vmatpush1.msra.mxu0 0.0
      %2053 = vmatprep.subr.mxu0 0.0
      %2054 = vmatpush1.msra.mxu0 0.0
      %2055 = vmatprep.subr.mxu0 0.0
      %2056 = vmatpush1.msra.mxu0 0.0
      %2057 = vmatprep.subr.mxu0 0.0
      %2058 = vmatpush1.msra.mxu0 0.0
      %2059 = vmatprep.subr.mxu0 0.0
      %2060 = vmatpush1.msra.mxu0 0.0
      %2061 = vmatprep.subr.mxu0 0.0
      %2062 = vmatpush1.msra.mxu0 0.0
      %2063 = vmatprep.subr.mxu0 0.0
      %2064 = vmatpush1.msra.mxu0 0.0
      %2065 = vmatprep.subr.mxu0 0.0
      %2066 = vmatpush1.msra.mxu0 0.0
      %2067 = vmatprep.subr.mxu0 0.0
      %2068 = vmatpush1.msra.mxu0 0.0
      %2069 = vmatprep.subr.mxu0 0.0
      %2070 = vmatpush1.msra.mxu0 0.0
      %2071 = vmatprep.subr.mxu0 0.0
      %2072 = vmatpush1.msra.mxu0 0.0
      %2073 = vmatprep.subr.mxu0 0.0
      %2074 = vmatpush1.msra.mxu0 0.0
      %2075 = vmatprep.subr.mxu0 0.0
      %2076 = vmatpush1.msra.mxu0 0.0
      %2077 = vmatprep.subr.mxu0 0.0
      %2078 = vmatpush1.msra.mxu0 0.0
      %2079 = vmatprep.subr.mxu0 0.0
      %2080 = vmatpush1.msra.mxu0 0.0
      %2081 = vmatprep.subr.mxu0 0.0
      %2082 = vmatpush1.msra.mxu0 0.0
      %2083 = vmatprep.subr.mxu0 0.0
      %2084 = vmatpush1.msra.mxu0 0.0
      %2085 = vmatprep.subr.mxu0 0.0
      %2086 = vmatpush1.msra.mxu0 0.0
      %2087 = vmatprep.subr.mxu0 0.0
      %2088 = vmatpush1.msra.mxu0 0.0
      %2089 = vmatprep.mubr.f32.mxu0 0.0
      %2090 = vmatmul.mubr.f32.gmra.mrb[0].mxu0 %v2002
      %v2091 = vpop.f32.mrb[0].mxu0
      %v2092 = vadd.f32 %v2000, %v2091
      %v2093 = vpop.f32.mrb[0].mxu0
      %2094 = vmatprep.mubr.f32.mxu0 0.0
      %2095 = vmatmul.mubr.f32.gmra.mrb[0].mxu0 %v2005
      %v2096 = vpop.f32.mrb[0].mxu0
      %v2097 = vadd.f32 %v2000, %v2096
      %v2098 = vpop.f32.mrb[0].mxu0
      %2099 = vmatprep.mubr.f32.mxu0 0.0
      %2100 = vmatmul.mubr.f32.gmra.mrb[0].mxu0 %v2008
      %v2101 = vpop.f32.mrb[0].mxu0
      %v2102 = vadd.f32 %v2000, %v2101
      %v2103 = vpop.f32.mrb[0].mxu0
      %2104 = vmatprep.mubr.f32.mxu0 0.0
      %2105 = vmatmul.mubr.f32.gmra.mrb[0].mxu0 %v2011
      %v2106 = vpop.f32.mrb[0].mxu0
      %v2107 = vadd.f32 %v2000, %v2106
      %v2108 = vpop.f32.mrb[0].mxu0
      %2109 = vmatprep.mubr.f32.mxu0 0.0
      %2110 = vmatmul.mubr.f32.gmra.mrb[0].mxu0 %v2014
      %v2111 = vpop.f32.mrb[0].mxu0
      %v2112 = vadd.f32 %v2000, %v2111
      %v2113 = vpop.f32.mrb[0].mxu0
      %2114 = vmatprep.mubr.f32.mxu0 0.0
      %2115 = vmatmul.mubr.f32.gmra.mrb[0].mxu0 %v2017
      %v2116 = vpop.f32.mrb[0].mxu0
      %v2117 = vadd.f32 %v2000, %v2116
      %v2118 = vpop.f32.mrb[0].mxu0
      %2119 = vmatprep.mubr.f32.mxu0 0.0
      %2120 = vmatmul.mubr.f32.gmra.mrb[0].mxu0 %v2020
      %v2121 = vpop.f32.mrb[0].mxu0
      %v2122 = vadd.f32 %v2000, %v2121
      %v2123 = vpop.f32.mrb[0].mxu0
      %2124 = vmatprep.mubr.f32.mxu0 0.0
      %2125 = vmatmul.mubr.f32.gmra.mrb[0].mxu0 %v2023
      %v2126 = vpop.f32.mrb[0].mxu0
      %v2127 = vadd.f32 %v2000, %v2126
      %v2128 = vpop.f32.mrb[0].mxu0
      %2129 = vdwg.mxu0
      %v2130 = vadd.f32 %v1836, %v2092
      %v2131 = vadd.f32 %v1837, %v2097
      %v2132 = vadd.f32 %v1838, %v2102
      %v2133 = vadd.f32 %v1839, %v2107
      %v2134 = vadd.f32 %v1840, %v2112
      %v2135 = vadd.f32 %v1841, %v2117
      %v2136 = vadd.f32 %v1842, %v2122
      %v2137 = vadd.f32 %v1843, %v2127
      %v2138 = vsel %vm569, %v2130, 0.0
      %2139 = vadd.xlane.f32.xlu0 %v2138
      %v2140 = vpop.xlane.xlu0 %2139
      %v2141 = vsel %vm569, %v2131, 0.0
      %2142 = vadd.xlane.f32.xlu0 %v2141
      %v2143 = vpop.xlane.xlu0 %2142
      %v2144 = vsel %vm569, %v2132, 0.0
      %2145 = vadd.xlane.f32.xlu0 %v2144
      %v2146 = vpop.xlane.xlu0 %2145
      %v2147 = vsel %vm569, %v2133, 0.0
      %2148 = vadd.xlane.f32.xlu0 %v2147
      %v2149 = vpop.xlane.xlu0 %2148
      %v2150 = vsel %vm569, %v2134, 0.0
      %2151 = vadd.xlane.f32.xlu0 %v2150
      %v2152 = vpop.xlane.xlu0 %2151
      %v2153 = vsel %vm569, %v2135, 0.0
      %2154 = vadd.xlane.f32.xlu0 %v2153
      %v2155 = vpop.xlane.xlu0 %2154
      %v2156 = vsel %vm569, %v2136, 0.0
      %2157 = vadd.xlane.f32.xlu0 %v2156
      %v2158 = vpop.xlane.xlu0 %2157
      %v2159 = vsel %vm569, %v2137, 0.0
      %2160 = vadd.xlane.f32.xlu0 %v2159
      %v2161 = vpop.xlane.xlu0 %2160
      %v2162 = vmul.f32 %v2140, %v1739
      %v2163 = vmul.f32 %v2143, %v1739
      %v2164 = vmul.f32 %v2146, %v1739
      %v2165 = vmul.f32 %v2149, %v1739
      %v2166 = vmul.f32 %v2152, %v1739
      %v2167 = vmul.f32 %v2155, %v1739
      %v2168 = vmul.f32 %v2158, %v1739
      %v2169 = vmul.f32 %v2161, %v1739
      %v2170 = vsub.f32 %v2130, %v2162
      %v2171 = vsub.f32 %v2131, %v2163
      %v2172 = vsub.f32 %v2132, %v2164
      %v2173 = vsub.f32 %v2133, %v2165
      %v2174 = vsub.f32 %v2134, %v2166
      %v2175 = vsub.f32 %v2135, %v2167
      %v2176 = vsub.f32 %v2136, %v2168
      %v2177 = vsub.f32 %v2137, %v2169
      %v2178 = vmul.f32 %v2170, %v2170
      %v2179 = vmul.f32 %v2171, %v2171
      %v2180 = vmul.f32 %v2172, %v2172
      %v2181 = vmul.f32 %v2173, %v2173
      %v2182 = vmul.f32 %v2174, %v2174
      %v2183 = vmul.f32 %v2175, %v2175
      %v2184 = vmul.f32 %v2176, %v2176
      %v2185 = vmul.f32 %v2177, %v2177
      %v2186 = vsel %vm569, %v2178, 0.0
      %2187 = vadd.xlane.f32.xlu0 %v2186
      %v2188 = vpop.xlane.xlu0 %2187
      %v2189 = vsel %vm569, %v2179, 0.0
      %2190 = vadd.xlane.f32.xlu0 %v2189
      %v2191 = vpop.xlane.xlu0 %2190
      %v2192 = vsel %vm569, %v2180, 0.0
      %2193 = vadd.xlane.f32.xlu0 %v2192
      %v2194 = vpop.xlane.xlu0 %2193
      %v2195 = vsel %vm569, %v2181, 0.0
      %2196 = vadd.xlane.f32.xlu0 %v2195
      %v2197 = vpop.xlane.xlu0 %2196
      %v2198 = vsel %vm569, %v2182, 0.0
      %2199 = vadd.xlane.f32.xlu0 %v2198
      %v2200 = vpop.xlane.xlu0 %2199
      %v2201 = vsel %vm569, %v2183, 0.0
      %2202 = vadd.xlane.f32.xlu0 %v2201
      %v2203 = vpop.xlane.xlu0 %2202
      %v2204 = vsel %vm569, %v2184, 0.0
      %2205 = vadd.xlane.f32.xlu0 %v2204
      %v2206 = vpop.xlane.xlu0 %2205
      %v2207 = vsel %vm569, %v2185, 0.0
      %2208 = vadd.xlane.f32.xlu0 %v2207
      %v2209 = vpop.xlane.xlu0 %2208
      %v2210 = vmul.f32 %v2188, %v1739
      %v2211 = vmul.f32 %v2191, %v1739
      %v2212 = vmul.f32 %v2194, %v1739
      %v2213 = vmul.f32 %v2197, %v1739
      %v2214 = vmul.f32 %v2200, %v1739
      %v2215 = vmul.f32 %v2203, %v1739
      %v2216 = vmul.f32 %v2206, %v1739
      %v2217 = vmul.f32 %v2209, %v1739
      %v2218 = vadd.f32 %v2210, 1e-05
      %v2219 = vadd.f32 %v2211, 1e-05
      %v2220 = vadd.f32 %v2212, 1e-05
      %v2221 = vadd.f32 %v2213, 1e-05
      %v2222 = vadd.f32 %v2214, 1e-05
      %v2223 = vadd.f32 %v2215, 1e-05
      %v2224 = vadd.f32 %v2216, 1e-05
      %v2225 = vadd.f32 %v2217, 1e-05
      %v2226 = vrsqrt.pop %v2218
      %v2227 = vrsqrt.pop %v2219
      %v2228 = vrsqrt.pop %v2220
      %v2229 = vrsqrt.pop %v2221
      %v2230 = vrsqrt.pop %v2222
      %v2231 = vrsqrt.pop %v2223
      %v2232 = vrsqrt.pop %v2224
      %v2233 = vrsqrt.pop %v2225
      %v2234 = vmul.f32 %v2170, %v2226
      %v2235 = vmul.f32 %v2171, %v2227
      %v2236 = vmul.f32 %v2172, %v2228
      %v2237 = vmul.f32 %v2173, %v2229
      %v2238 = vmul.f32 %v2174, %v2230
      %v2239 = vmul.f32 %v2175, %v2231
      %v2240 = vmul.f32 %v2176, %v2232
      %v2241 = vmul.f32 %v2177, %v2233
      %v2242 = vlaneseq
      %v2243 = vshrl.u32 %v2242, 7
      %v2244 = vsub.s32 6, %v2243
      %v2245 = vrot.slane %v560, %v2244
      %v2246 = vmul.f32 %v2234, %v2245
      %v2247 = vmul.f32 %v2235, %v2245
      %v2248 = vmul.f32 %v2236, %v2245
      %v2249 = vmul.f32 %v2237, %v2245
      %v2250 = vmul.f32 %v2238, %v2245
      %v2251 = vmul.f32 %v2239, %v2245
      %v2252 = vmul.f32 %v2240, %v2245
      %v2253 = vmul.f32 %v2241, %v2245
      %v2254 = vlaneseq
      %v2255 = vshrl.u32 %v2254, 7
      %v2256 = vsub.s32 7, %v2255
      %v2257 = vrot.slane %v560, %v2256
      %v2258 = vadd.f32 %v2246, %v2257
      %v2259 = vadd.f32 %v2247, %v2257
      %v2260 = vadd.f32 %v2248, %v2257
      %v2261 = vadd.f32 %v2249, %v2257
      %v2262 = vadd.f32 %v2250, %v2257
      %v2263 = vadd.f32 %v2251, %v2257
      %v2264 = vadd.f32 %v2252, %v2257
      %v2265 = vadd.f32 %v2253, %v2257
      %v2266 = vmul.f32 %v2258, %v515
      %v2267 = vmul.f32 %v2259, %v520
      %v2268 = vmul.f32 %v2260, %v525
      %v2269 = vmul.f32 %v2261, %v530
      %v2270 = vmul.f32 %v2262, %v535
      %v2271 = vmul.f32 %v2263, %v540
      %v2272 = vmul.f32 %v2264, %v545
      %v2273 = vmul.f32 %v2265, %v550
      %s2274 = scalar_lea.vmem %s483, 8
      %v2275 = vld [vmem:[%s2274] sm:$0xff]
      %s2276 = scalar_lea.vmem %s463, 32
      %v2277 = vld [vmem:[%s2276] sm:$0xff]
      %v2278 = vld [vmem:[%s2276 + $0x8] sm:$0xff]
      %v2279 = vld [vmem:[%s2276 + $0x10] sm:$0xff]
      %v2280 = vld [vmem:[%s2276 + $0x18] sm:$0xff]
      %v2281 = vlaneseq
      %v2282 = vshrl.u32 %v2281, 7
      %v2283 = vsub.s32 0, %v2282
      %v2284 = vrot.slane %v2275, %v2283
      %v2286 = vsel %vm569, %v2266, 0
      %v2289 = vsel %vm569, %v2267, 0
      %v2292 = vsel %vm569, %v2268, 0
      %v2295 = vsel %vm569, %v2269, 0
      %v2298 = vsel %vm569, %v2270, 0
      %v2301 = vsel %vm569, %v2271, 0
      %v2304 = vsel %vm569, %v2272, 0
      %v2307 = vsel %vm569, %v2273, 0
      %2309 = vmatprep.subr.mxu0 0.0
      %2310 = vmatpush1.msra.mxu0 %v2277
      %2311 = vmatprep.subr.mxu0 0.0
      %2312 = vmatpush1.msra.mxu0 %v2278
      %2313 = vmatprep.subr.mxu0 0.0
      %2314 = vmatpush1.msra.mxu0 %v2279
      %2315 = vmatprep.subr.mxu0 0.0
      %2316 = vmatpush1.msra.mxu0 %v2280
      %2317 = vmatprep.subr.mxu0 0.0
      %2318 = vmatpush1.msra.mxu0 0.0
      %2319 = vmatprep.subr.mxu0 0.0
      %2320 = vmatpush1.msra.mxu0 0.0
      %2321 = vmatprep.subr.mxu0 0.0
      %2322 = vmatpush1.msra.mxu0 0.0
      %2323 = vmatprep.subr.mxu0 0.0
      %2324 = vmatpush1.msra.mxu0 0.0
      %2325 = vmatprep.subr.mxu0 0.0
      %2326 = vmatpush1.msra.mxu0 0.0
      %2327 = vmatprep.subr.mxu0 0.0
      %2328 = vmatpush1.msra.mxu0 0.0
      %2329 = vmatprep.subr.mxu0 0.0
      %2330 = vmatpush1.msra.mxu0 0.0
      %2331 = vmatprep.subr.mxu0 0.0
      %2332 = vmatpush1.msra.mxu0 0.0
      %2333 = vmatprep.subr.mxu0 0.0
      %2334 = vmatpush1.msra.mxu0 0.0
      %2335 = vmatprep.subr.mxu0 0.0
      %2336 = vmatpush1.msra.mxu0 0.0
      %2337 = vmatprep.subr.mxu0 0.0
      %2338 = vmatpush1.msra.mxu0 0.0
      %2339 = vmatprep.subr.mxu0 0.0
      %2340 = vmatpush1.msra.mxu0 0.0
      %2341 = vmatprep.subr.mxu0 0.0
      %2342 = vmatpush1.msra.mxu0 0.0
      %2343 = vmatprep.subr.mxu0 0.0
      %2344 = vmatpush1.msra.mxu0 0.0
      %2345 = vmatprep.subr.mxu0 0.0
      %2346 = vmatpush1.msra.mxu0 0.0
      %2347 = vmatprep.subr.mxu0 0.0
      %2348 = vmatpush1.msra.mxu0 0.0
      %2349 = vmatprep.subr.mxu0 0.0
      %2350 = vmatpush1.msra.mxu0 0.0
      %2351 = vmatprep.subr.mxu0 0.0
      %2352 = vmatpush1.msra.mxu0 0.0
      %2353 = vmatprep.subr.mxu0 0.0
      %2354 = vmatpush1.msra.mxu0 0.0
      %2355 = vmatprep.subr.mxu0 0.0
      %2356 = vmatpush1.msra.mxu0 0.0
      %2357 = vmatprep.subr.mxu0 0.0
      %2358 = vmatpush1.msra.mxu0 0.0
      %2359 = vmatprep.subr.mxu0 0.0
      %2360 = vmatpush1.msra.mxu0 0.0
      %2361 = vmatprep.subr.mxu0 0.0
      %2362 = vmatpush1.msra.mxu0 0.0
      %2363 = vmatprep.subr.mxu0 0.0
      %2364 = vmatpush1.msra.mxu0 0.0
      %2365 = vmatprep.subr.mxu0 0.0
      %2366 = vmatpush1.msra.mxu0 0.0
      %2367 = vmatprep.subr.mxu0 0.0
      %2368 = vmatpush1.msra.mxu0 0.0
      %2369 = vmatprep.subr.mxu0 0.0
      %2370 = vmatpush1.msra.mxu0 0.0
      %2371 = vmatprep.subr.mxu0 0.0
      %2372 = vmatpush1.msra.mxu0 0.0
      %2373 = vmatprep.mubr.f32.mxu0 0.0
      %2374 = vmatmul.mubr.f32.gmra.mrb[0].mxu0 %v2286
      %v2375 = vpop.f32.mrb[0].mxu0
      %v2376 = vadd.f32 %v2284, %v2375
      %v2377 = vpop.f32.mrb[0].mxu0
      %2378 = vmatprep.mubr.f32.mxu0 0.0
      %2379 = vmatmul.mubr.f32.gmra.mrb[0].mxu0 %v2289
      %v2380 = vpop.f32.mrb[0].mxu0
      %v2381 = vadd.f32 %v2284, %v2380
      %v2382 = vpop.f32.mrb[0].mxu0
      %2383 = vmatprep.mubr.f32.mxu0 0.0
      %2384 = vmatmul.mubr.f32.gmra.mrb[0].mxu0 %v2292
      %v2385 = vpop.f32.mrb[0].mxu0
      %v2386 = vadd.f32 %v2284, %v2385
      %v2387 = vpop.f32.mrb[0].mxu0
      %2388 = vmatprep.mubr.f32.mxu0 0.0
      %2389 = vmatmul.mubr.f32.gmra.mrb[0].mxu0 %v2295
      %v2390 = vpop.f32.mrb[0].mxu0
      %v2391 = vadd.f32 %v2284, %v2390
      %v2392 = vpop.f32.mrb[0].mxu0
      %2393 = vmatprep.mubr.f32.mxu0 0.0
      %2394 = vmatmul.mubr.f32.gmra.mrb[0].mxu0 %v2298
      %v2395 = vpop.f32.mrb[0].mxu0
      %v2396 = vadd.f32 %v2284, %v2395
      %v2397 = vpop.f32.mrb[0].mxu0
      %2398 = vmatprep.mubr.f32.mxu0 0.0
      %2399 = vmatmul.mubr.f32.gmra.mrb[0].mxu0 %v2301
      %v2400 = vpop.f32.mrb[0].mxu0
      %v2401 = vadd.f32 %v2284, %v2400
      %v2402 = vpop.f32.mrb[0].mxu0
      %2403 = vmatprep.mubr.f32.mxu0 0.0
      %2404 = vmatmul.mubr.f32.gmra.mrb[0].mxu0 %v2304
      %v2405 = vpop.f32.mrb[0].mxu0
      %v2406 = vadd.f32 %v2284, %v2405
      %v2407 = vpop.f32.mrb[0].mxu0
      %2408 = vmatprep.mubr.f32.mxu0 0.0
      %2409 = vmatmul.mubr.f32.gmra.mrb[0].mxu0 %v2307
      %v2410 = vpop.f32.mrb[0].mxu0
      %v2411 = vadd.f32 %v2284, %v2410
      %v2412 = vpop.f32.mrb[0].mxu0
      %2413 = vdwg.mxu0
      %2422 = vrot.lane.b32.xlu0 %v2376, 96
      %v2423 = vpop.permute.xlu0 %2422
      %2424 = vrot.lane.b32.xlu0 %v2381, 96
      %v2425 = vpop.permute.xlu0 %2424
      %2426 = vrot.lane.b32.xlu0 %v2386, 96
      %v2427 = vpop.permute.xlu0 %2426
      %2428 = vrot.lane.b32.xlu0 %v2391, 96
      %v2429 = vpop.permute.xlu0 %2428
      %2430 = vrot.lane.b32.xlu0 %v2396, 96
      %v2431 = vpop.permute.xlu0 %2430
      %2432 = vrot.lane.b32.xlu0 %v2401, 96
      %v2433 = vpop.permute.xlu0 %2432
      %2434 = vrot.lane.b32.xlu0 %v2406, 96
      %v2435 = vpop.permute.xlu0 %2434
      %2436 = vrot.lane.b32.xlu0 %v2411, 96
      %v2437 = vpop.permute.xlu0 %2436
      %v2438 = vsel %vm723, %v2376, 0
      %v2440 = vsel %vm723, %v2381, 0
      %v2442 = vsel %vm723, %v2386, 0
      %v2444 = vsel %vm723, %v2391, 0
      %v2446 = vsel %vm723, %v2396, 0
      %v2448 = vsel %vm723, %v2401, 0
      %v2450 = vsel %vm723, %v2406, 0
      %v2452 = vsel %vm723, %v2411, 0
      %v2454 = vsel %vm723, %v2423, 0
      %v2456 = vsel %vm723, %v2425, 0
      %v2458 = vsel %vm723, %v2427, 0
      %v2460 = vsel %vm723, %v2429, 0
      %v2462 = vsel %vm723, %v2431, 0
      %v2464 = vsel %vm723, %v2433, 0
      %v2466 = vsel %vm723, %v2435, 0
      %v2468 = vsel %vm723, %v2437, 0
      %2470 = vmatprep.subr.mxu0 0.0
      %2471 = vmatpush1.xpose.msra.mxu0 %v2454
      %2472 = vmatprep.subr.mxu0 0.0
      %2473 = vmatpush1.xpose.msra.mxu0 %v2456
      %2474 = vmatprep.subr.mxu0 0.0
      %2475 = vmatpush1.xpose.msra.mxu0 %v2458
      %2476 = vmatprep.subr.mxu0 0.0
      %2477 = vmatpush1.xpose.msra.mxu0 %v2460
      %2478 = vmatprep.subr.mxu0 0.0
      %2479 = vmatpush1.xpose.msra.mxu0 %v2462
      %2480 = vmatprep.subr.mxu0 0.0
      %2481 = vmatpush1.xpose.msra.mxu0 %v2464
      %2482 = vmatprep.subr.mxu0 0.0
      %2483 = vmatpush1.xpose.msra.mxu0 %v2466
      %2484 = vmatprep.subr.mxu0 0.0
      %2485 = vmatpush1.xpose.msra.mxu0 %v2468
      %2486 = vmatprep.subr.mxu0 0.0
      %2487 = vmatpush1.xpose.msra.mxu0 0.0
      %2488 = vmatprep.subr.mxu0 0.0
      %2489 = vmatpush1.xpose.msra.mxu0 0.0
      %2490 = vmatprep.subr.mxu0 0.0
      %2491 = vmatpush1.xpose.msra.mxu0 0.0
      %2492 = vmatprep.subr.mxu0 0.0
      %2493 = vmatpush1.xpose.msra.mxu0 0.0
      %2494 = vmatprep.subr.mxu0 0.0
      %2495 = vmatpush1.xpose.msra.mxu0 0.0
      %2496 = vmatprep.subr.mxu0 0.0
      %2497 = vmatpush1.xpose.msra.mxu0 0.0
      %2498 = vmatprep.subr.mxu0 0.0
      %2499 = vmatpush1.xpose.msra.mxu0 0.0
      %2500 = vmatprep.subr.mxu0 0.0
      %2501 = vmatpush1.xpose.msra.mxu0 0.0
      %2502 = vmatprep.subr.mxu0 0.0
      %2503 = vmatpush1.xpose.msra.mxu0 0.0
      %2504 = vmatprep.subr.mxu0 0.0
      %2505 = vmatpush1.xpose.msra.mxu0 0.0
      %2506 = vmatprep.subr.mxu0 0.0
      %2507 = vmatpush1.xpose.msra.mxu0 0.0
      %2508 = vmatprep.subr.mxu0 0.0
      %2509 = vmatpush1.xpose.msra.mxu0 0.0
      %2510 = vmatprep.subr.mxu0 0.0
      %2511 = vmatpush1.xpose.msra.mxu0 0.0
      %2512 = vmatprep.subr.mxu0 0.0
      %2513 = vmatpush1.xpose.msra.mxu0 0.0
      %2514 = vmatprep.subr.mxu0 0.0
      %2515 = vmatpush1.xpose.msra.mxu0 0.0
      %2516 = vmatprep.subr.mxu0 0.0
      %2517 = vmatpush1.xpose.msra.mxu0 0.0
      %2518 = vmatprep.subr.mxu0 0.0
      %2519 = vmatpush1.xpose.msra.mxu0 0.0
      %2520 = vmatprep.subr.mxu0 0.0
      %2521 = vmatpush1.xpose.msra.mxu0 0.0
      %2522 = vmatprep.subr.mxu0 0.0
      %2523 = vmatpush1.xpose.msra.mxu0 0.0
      %2524 = vmatprep.subr.mxu0 0.0
      %2525 = vmatpush1.xpose.msra.mxu0 0.0
      %2526 = vmatprep.subr.mxu0 0.0
      %2527 = vmatpush1.xpose.msra.mxu0 0.0
      %2528 = vmatprep.subr.mxu0 0.0
      %2529 = vmatpush1.xpose.msra.mxu0 0.0
      %2530 = vmatprep.subr.mxu0 0.0
      %2531 = vmatpush1.xpose.msra.mxu0 0.0
      %2532 = vmatprep.subr.mxu0 0.0
      %2533 = vmatpush1.xpose.msra.mxu0 0.0
      %2534 = vmatprep.mubr.f32.mxu0 0.0
      %2535 = vmatmul.mubr.f32.gmra.mrb[0].mxu0 %v2438
      %v2536 = vpop.f32.mrb[0].mxu0
      %v2537 = vadd.f32 %v496, %v2536
      %v2538 = vpop.f32.mrb[0].mxu0
      %2539 = vmatprep.mubr.f32.mxu0 0.0
      %2540 = vmatmul.mubr.f32.gmra.mrb[0].mxu0 %v2440
      %v2541 = vpop.f32.mrb[0].mxu0
      %v2542 = vadd.f32 %v497, %v2541
      %v2543 = vpop.f32.mrb[0].mxu0
      %2544 = vmatprep.mubr.f32.mxu0 0.0
      %2545 = vmatmul.mubr.f32.gmra.mrb[0].mxu0 %v2442
      %v2546 = vpop.f32.mrb[0].mxu0
      %v2547 = vadd.f32 %v498, %v2546
      %v2548 = vpop.f32.mrb[0].mxu0
      %2549 = vmatprep.mubr.f32.mxu0 0.0
      %2550 = vmatmul.mubr.f32.gmra.mrb[0].mxu0 %v2444
      %v2551 = vpop.f32.mrb[0].mxu0
      %v2552 = vadd.f32 %v499, %v2551
      %v2553 = vpop.f32.mrb[0].mxu0
      %2554 = vmatprep.mubr.f32.mxu0 0.0
      %2555 = vmatmul.mubr.f32.gmra.mrb[0].mxu0 %v2446
      %v2556 = vpop.f32.mrb[0].mxu0
      %v2557 = vadd.f32 %v500, %v2556
      %v2558 = vpop.f32.mrb[0].mxu0
      %2559 = vmatprep.mubr.f32.mxu0 0.0
      %2560 = vmatmul.mubr.f32.gmra.mrb[0].mxu0 %v2448
      %v2561 = vpop.f32.mrb[0].mxu0
      %v2562 = vadd.f32 %v501, %v2561
      %v2563 = vpop.f32.mrb[0].mxu0
      %2564 = vmatprep.mubr.f32.mxu0 0.0
      %2565 = vmatmul.mubr.f32.gmra.mrb[0].mxu0 %v2450
      %v2566 = vpop.f32.mrb[0].mxu0
      %v2567 = vadd.f32 %v502, %v2566
      %v2568 = vpop.f32.mrb[0].mxu0
      %2569 = vmatprep.mubr.f32.mxu0 0.0
      %2570 = vmatmul.mubr.f32.gmra.mrb[0].mxu0 %v2452
      %v2571 = vpop.f32.mrb[0].mxu0
      %v2572 = vadd.f32 %v503, %v2571
      %v2573 = vpop.f32.mrb[0].mxu0
      %2574 = vdwg.mxu0
      %v2575 = vsel %vm861, %v2537, -inf
      %2576 = vmax.xlane.f32.xlu0 %v2575
      %v2577 = vpop.xlane.xlu0 %2576
      %v2578 = vsel %vm861, %v2542, -inf
      %2579 = vmax.xlane.f32.xlu0 %v2578
      %v2580 = vpop.xlane.xlu0 %2579
      %v2581 = vsel %vm861, %v2547, -inf
      %2582 = vmax.xlane.f32.xlu0 %v2581
      %v2583 = vpop.xlane.xlu0 %2582
      %v2584 = vsel %vm861, %v2552, -inf
      %2585 = vmax.xlane.f32.xlu0 %v2584
      %v2586 = vpop.xlane.xlu0 %2585
      %v2587 = vsel %vm861, %v2557, -inf
      %2588 = vmax.xlane.f32.xlu0 %v2587
      %v2589 = vpop.xlane.xlu0 %2588
      %v2590 = vsel %vm861, %v2562, -inf
      %2591 = vmax.xlane.f32.xlu0 %v2590
      %v2592 = vpop.xlane.xlu0 %2591
      %v2593 = vsel %vm861, %v2567, -inf
      %2594 = vmax.xlane.f32.xlu0 %v2593
      %v2595 = vpop.xlane.xlu0 %2594
      %v2596 = vsel %vm861, %v2572, -inf
      %2597 = vmax.xlane.f32.xlu0 %v2596
      %v2598 = vpop.xlane.xlu0 %2597
      %v2599 = vsub.f32 %v2537, %v2577
      %v2600 = vsub.f32 %v2542, %v2580
      %v2601 = vsub.f32 %v2547, %v2583
      %v2602 = vsub.f32 %v2552, %v2586
      %v2603 = vsub.f32 %v2557, %v2589
      %v2604 = vsub.f32 %v2562, %v2592
      %v2605 = vsub.f32 %v2567, %v2595
      %v2606 = vsub.f32 %v2572, %v2598
      %v2607 = vmul.f32 %v2599, 1.442695
      %v2608 = vpow.pop %v2607
      %v2609 = vmul.f32 %v2600, 1.442695
      %v2610 = vpow.pop %v2609
      %v2611 = vmul.f32 %v2601, 1.442695
      %v2612 = vpow.pop %v2611
      %v2613 = vmul.f32 %v2602, 1.442695
      %v2614 = vpow.pop %v2613
      %v2615 = vmul.f32 %v2603, 1.442695
      %v2616 = vpow.pop %v2615
      %v2617 = vmul.f32 %v2604, 1.442695
      %v2618 = vpow.pop %v2617
      %v2619 = vmul.f32 %v2605, 1.442695
      %v2620 = vpow.pop %v2619
      %v2621 = vmul.f32 %v2606, 1.442695
      %v2622 = vpow.pop %v2621
      %v2623 = vsel %vm861, %v2608, 0.0
      %2624 = vadd.xlane.f32.xlu0 %v2623
      %v2625 = vpop.xlane.xlu0 %2624
      %v2626 = vsel %vm861, %v2610, 0.0
      %2627 = vadd.xlane.f32.xlu0 %v2626
      %v2628 = vpop.xlane.xlu0 %2627
      %v2629 = vsel %vm861, %v2612, 0.0
      %2630 = vadd.xlane.f32.xlu0 %v2629
      %v2631 = vpop.xlane.xlu0 %2630
      %v2632 = vsel %vm861, %v2614, 0.0
      %2633 = vadd.xlane.f32.xlu0 %v2632
      %v2634 = vpop.xlane.xlu0 %2633
      %v2635 = vsel %vm861, %v2616, 0.0
      %2636 = vadd.xlane.f32.xlu0 %v2635
      %v2637 = vpop.xlane.xlu0 %2636
      %v2638 = vsel %vm861, %v2618, 0.0
      %2639 = vadd.xlane.f32.xlu0 %v2638
      %v2640 = vpop.xlane.xlu0 %2639
      %v2641 = vsel %vm861, %v2620, 0.0
      %2642 = vadd.xlane.f32.xlu0 %v2641
      %v2643 = vpop.xlane.xlu0 %2642
      %v2644 = vsel %vm861, %v2622, 0.0
      %2645 = vadd.xlane.f32.xlu0 %v2644
      %v2646 = vpop.xlane.xlu0 %2645
      %v2647 = vrcp.pop %v2625
      %v2648 = vrcp.pop %v2628
      %v2649 = vrcp.pop %v2631
      %v2650 = vrcp.pop %v2634
      %v2651 = vrcp.pop %v2637
      %v2652 = vrcp.pop %v2640
      %v2653 = vrcp.pop %v2643
      %v2654 = vrcp.pop %v2646
      %v2655 = vmul.f32 %v2608, %v2647
      %v2656 = vmul.f32 %v2610, %v2648
      %v2657 = vmul.f32 %v2612, %v2649
      %v2658 = vmul.f32 %v2614, %v2650
      %v2659 = vmul.f32 %v2616, %v2651
      %v2660 = vmul.f32 %v2618, %v2652
      %v2661 = vmul.f32 %v2620, %v2653
      %v2662 = vmul.f32 %v2622, %v2654
      %2663 = vrot.lane.b32.xlu0 %v2376, 64
      %v2664 = vpop.permute.xlu0 %2663
      %2665 = vrot.lane.b32.xlu0 %v2381, 64
      %v2666 = vpop.permute.xlu0 %2665
      %2667 = vrot.lane.b32.xlu0 %v2386, 64
      %v2668 = vpop.permute.xlu0 %2667
      %2669 = vrot.lane.b32.xlu0 %v2391, 64
      %v2670 = vpop.permute.xlu0 %2669
      %2671 = vrot.lane.b32.xlu0 %v2396, 64
      %v2672 = vpop.permute.xlu0 %2671
      %2673 = vrot.lane.b32.xlu0 %v2401, 64
      %v2674 = vpop.permute.xlu0 %2673
      %2675 = vrot.lane.b32.xlu0 %v2406, 64
      %v2676 = vpop.permute.xlu0 %2675
      %2677 = vrot.lane.b32.xlu0 %v2411, 64
      %v2678 = vpop.permute.xlu0 %2677
      %v2688 = vsel %vm861, %v2655, 0
      %v2691 = vsel %vm861, %v2656, 0
      %v2694 = vsel %vm861, %v2657, 0
      %v2697 = vsel %vm861, %v2658, 0
      %v2700 = vsel %vm861, %v2659, 0
      %v2703 = vsel %vm861, %v2660, 0
      %v2706 = vsel %vm861, %v2661, 0
      %v2709 = vsel %vm861, %v2662, 0
      %2711 = vmatprep.subr.mxu0 0.0
      %2712 = vmatpush1.msra.mxu0 %v2664
      %2713 = vmatprep.subr.mxu0 0.0
      %2714 = vmatpush1.msra.mxu0 %v2666
      %2715 = vmatprep.subr.mxu0 0.0
      %2716 = vmatpush1.msra.mxu0 %v2668
      %2717 = vmatprep.subr.mxu0 0.0
      %2718 = vmatpush1.msra.mxu0 %v2670
      %2719 = vmatprep.subr.mxu0 0.0
      %2720 = vmatpush1.msra.mxu0 %v2672
      %2721 = vmatprep.subr.mxu0 0.0
      %2722 = vmatpush1.msra.mxu0 %v2674
      %2723 = vmatprep.subr.mxu0 0.0
      %2724 = vmatpush1.msra.mxu0 %v2676
      %2725 = vmatprep.subr.mxu0 0.0
      %2726 = vmatpush1.msra.mxu0 %v2678
      %2727 = vmatprep.subr.mxu0 0.0
      %2728 = vmatpush1.msra.mxu0 0.0
      %2729 = vmatprep.subr.mxu0 0.0
      %2730 = vmatpush1.msra.mxu0 0.0
      %2731 = vmatprep.subr.mxu0 0.0
      %2732 = vmatpush1.msra.mxu0 0.0
      %2733 = vmatprep.subr.mxu0 0.0
      %2734 = vmatpush1.msra.mxu0 0.0
      %2735 = vmatprep.subr.mxu0 0.0
      %2736 = vmatpush1.msra.mxu0 0.0
      %2737 = vmatprep.subr.mxu0 0.0
      %2738 = vmatpush1.msra.mxu0 0.0
      %2739 = vmatprep.subr.mxu0 0.0
      %2740 = vmatpush1.msra.mxu0 0.0
      %2741 = vmatprep.subr.mxu0 0.0
      %2742 = vmatpush1.msra.mxu0 0.0
      %2743 = vmatprep.subr.mxu0 0.0
      %2744 = vmatpush1.msra.mxu0 0.0
      %2745 = vmatprep.subr.mxu0 0.0
      %2746 = vmatpush1.msra.mxu0 0.0
      %2747 = vmatprep.subr.mxu0 0.0
      %2748 = vmatpush1.msra.mxu0 0.0
      %2749 = vmatprep.subr.mxu0 0.0
      %2750 = vmatpush1.msra.mxu0 0.0
      %2751 = vmatprep.subr.mxu0 0.0
      %2752 = vmatpush1.msra.mxu0 0.0
      %2753 = vmatprep.subr.mxu0 0.0
      %2754 = vmatpush1.msra.mxu0 0.0
      %2755 = vmatprep.subr.mxu0 0.0
      %2756 = vmatpush1.msra.mxu0 0.0
      %2757 = vmatprep.subr.mxu0 0.0
      %2758 = vmatpush1.msra.mxu0 0.0
      %2759 = vmatprep.subr.mxu0 0.0
      %2760 = vmatpush1.msra.mxu0 0.0
      %2761 = vmatprep.subr.mxu0 0.0
      %2762 = vmatpush1.msra.mxu0 0.0
      %2763 = vmatprep.subr.mxu0 0.0
      %2764 = vmatpush1.msra.mxu0 0.0
      %2765 = vmatprep.subr.mxu0 0.0
      %2766 = vmatpush1.msra.mxu0 0.0
      %2767 = vmatprep.subr.mxu0 0.0
      %2768 = vmatpush1.msra.mxu0 0.0
      %2769 = vmatprep.subr.mxu0 0.0
      %2770 = vmatpush1.msra.mxu0 0.0
      %2771 = vmatprep.subr.mxu0 0.0
      %2772 = vmatpush1.msra.mxu0 0.0
      %2773 = vmatprep.subr.mxu0 0.0
      %2774 = vmatpush1.msra.mxu0 0.0
      %2775 = vmatprep.mubr.f32.mxu0 0.0
      %2776 = vmatmul.mubr.f32.gmra.mrb[0].mxu0 %v2688
      %v2777 = vpop.f32.mrb[0].mxu0
      %v2778 = vadd.f32 0.0, %v2777
      %v2779 = vpop.f32.mrb[0].mxu0
      %2780 = vmatprep.mubr.f32.mxu0 0.0
      %2781 = vmatmul.mubr.f32.gmra.mrb[0].mxu0 %v2691
      %v2782 = vpop.f32.mrb[0].mxu0
      %v2783 = vadd.f32 0.0, %v2782
      %v2784 = vpop.f32.mrb[0].mxu0
      %2785 = vmatprep.mubr.f32.mxu0 0.0
      %2786 = vmatmul.mubr.f32.gmra.mrb[0].mxu0 %v2694
      %v2787 = vpop.f32.mrb[0].mxu0
      %v2788 = vadd.f32 0.0, %v2787
      %v2789 = vpop.f32.mrb[0].mxu0
      %2790 = vmatprep.mubr.f32.mxu0 0.0
      %2791 = vmatmul.mubr.f32.gmra.mrb[0].mxu0 %v2697
      %v2792 = vpop.f32.mrb[0].mxu0
      %v2793 = vadd.f32 0.0, %v2792
      %v2794 = vpop.f32.mrb[0].mxu0
      %2795 = vmatprep.mubr.f32.mxu0 0.0
      %2796 = vmatmul.mubr.f32.gmra.mrb[0].mxu0 %v2700
      %v2797 = vpop.f32.mrb[0].mxu0
      %v2798 = vadd.f32 0.0, %v2797
      %v2799 = vpop.f32.mrb[0].mxu0
      %2800 = vmatprep.mubr.f32.mxu0 0.0
      %2801 = vmatmul.mubr.f32.gmra.mrb[0].mxu0 %v2703
      %v2802 = vpop.f32.mrb[0].mxu0
      %v2803 = vadd.f32 0.0, %v2802
      %v2804 = vpop.f32.mrb[0].mxu0
      %2805 = vmatprep.mubr.f32.mxu0 0.0
      %2806 = vmatmul.mubr.f32.gmra.mrb[0].mxu0 %v2706
      %v2807 = vpop.f32.mrb[0].mxu0
      %v2808 = vadd.f32 0.0, %v2807
      %v2809 = vpop.f32.mrb[0].mxu0
      %2810 = vmatprep.mubr.f32.mxu0 0.0
      %2811 = vmatmul.mubr.f32.gmra.mrb[0].mxu0 %v2709
      %v2812 = vpop.f32.mrb[0].mxu0
      %v2813 = vadd.f32 0.0, %v2812
      %v2814 = vpop.f32.mrb[0].mxu0
      %2815 = vdwg.mxu0
      %2816 = vst.msk [vmem:[#allocation2] sm:$0xff] %vm723, %v2778
      %2817 = vst.msk [vmem:[#allocation2 + $0x8] sm:$0xff] %vm723, %v2783
      %2818 = vst.msk [vmem:[#allocation2 + $0x10] sm:$0xff] %vm723, %v2788
      %2819 = vst.msk [vmem:[#allocation2 + $0x18] sm:$0xff] %vm723, %v2793
      %2820 = vst.msk [vmem:[#allocation2 + $0x20] sm:$0xff] %vm723, %v2798
      %2821 = vst.msk [vmem:[#allocation2 + $0x28] sm:$0xff] %vm723, %v2803
      %2822 = vst.msk [vmem:[#allocation2 + $0x30] sm:$0xff] %vm723, %v2808
      %2823 = vst.msk [vmem:[#allocation2 + $0x38] sm:$0xff] %vm723, %v2813
      %2824 = vrot.lane.b32.xlu0 %v2376, 112
      %v2825 = vpop.permute.xlu0 %2824
      %2826 = vrot.lane.b32.xlu0 %v2381, 112
      %v2827 = vpop.permute.xlu0 %2826
      %2828 = vrot.lane.b32.xlu0 %v2386, 112
      %v2829 = vpop.permute.xlu0 %2828
      %2830 = vrot.lane.b32.xlu0 %v2391, 112
      %v2831 = vpop.permute.xlu0 %2830
      %2832 = vrot.lane.b32.xlu0 %v2396, 112
      %v2833 = vpop.permute.xlu0 %2832
      %2834 = vrot.lane.b32.xlu0 %v2401, 112
      %v2835 = vpop.permute.xlu0 %2834
      %2836 = vrot.lane.b32.xlu0 %v2406, 112
      %v2837 = vpop.permute.xlu0 %2836
      %2838 = vrot.lane.b32.xlu0 %v2411, 112
      %v2839 = vpop.permute.xlu0 %2838
      %2840 = vrot.lane.b32.xlu0 %v2376, 80
      %v2841 = vpop.permute.xlu0 %2840
      %2842 = vrot.lane.b32.xlu0 %v2381, 80
      %v2843 = vpop.permute.xlu0 %2842
      %2844 = vrot.lane.b32.xlu0 %v2386, 80
      %v2845 = vpop.permute.xlu0 %2844
      %2846 = vrot.lane.b32.xlu0 %v2391, 80
      %v2847 = vpop.permute.xlu0 %2846
      %2848 = vrot.lane.b32.xlu0 %v2396, 80
      %v2849 = vpop.permute.xlu0 %2848
      %2850 = vrot.lane.b32.xlu0 %v2401, 80
      %v2851 = vpop.permute.xlu0 %2850
      %2852 = vrot.lane.b32.xlu0 %v2406, 80
      %v2853 = vpop.permute.xlu0 %2852
      %2854 = vrot.lane.b32.xlu0 %v2411, 80
      %v2855 = vpop.permute.xlu0 %2854
      %v2856 = vsel %vm723, %v2825, 0
      %v2858 = vsel %vm723, %v2827, 0
      %v2860 = vsel %vm723, %v2829, 0
      %v2862 = vsel %vm723, %v2831, 0
      %v2864 = vsel %vm723, %v2833, 0
      %v2866 = vsel %vm723, %v2835, 0
      %v2868 = vsel %vm723, %v2837, 0
      %v2870 = vsel %vm723, %v2839, 0
      %v2872 = vsel %vm723, %v2841, 0
      %v2874 = vsel %vm723, %v2843, 0
      %v2876 = vsel %vm723, %v2845, 0
      %v2878 = vsel %vm723, %v2847, 0
      %v2880 = vsel %vm723, %v2849, 0
      %v2882 = vsel %vm723, %v2851, 0
      %v2884 = vsel %vm723, %v2853, 0
      %v2886 = vsel %vm723, %v2855, 0
      %2888 = vmatprep.subr.mxu0 0.0
      %2889 = vmatpush1.xpose.msra.mxu0 %v2872
      %2890 = vmatprep.subr.mxu0 0.0
      %2891 = vmatpush1.xpose.msra.mxu0 %v2874
      %2892 = vmatprep.subr.mxu0 0.0
      %2893 = vmatpush1.xpose.msra.mxu0 %v2876
      %2894 = vmatprep.subr.mxu0 0.0
      %2895 = vmatpush1.xpose.msra.mxu0 %v2878
      %2896 = vmatprep.subr.mxu0 0.0
      %2897 = vmatpush1.xpose.msra.mxu0 %v2880
      %2898 = vmatprep.subr.mxu0 0.0
      %2899 = vmatpush1.xpose.msra.mxu0 %v2882
      %2900 = vmatprep.subr.mxu0 0.0
      %2901 = vmatpush1.xpose.msra.mxu0 %v2884
      %2902 = vmatprep.subr.mxu0 0.0
      %2903 = vmatpush1.xpose.msra.mxu0 %v2886
      %2904 = vmatprep.subr.mxu0 0.0
      %2905 = vmatpush1.xpose.msra.mxu0 0.0
      %2906 = vmatprep.subr.mxu0 0.0
      %2907 = vmatpush1.xpose.msra.mxu0 0.0
      %2908 = vmatprep.subr.mxu0 0.0
      %2909 = vmatpush1.xpose.msra.mxu0 0.0
      %2910 = vmatprep.subr.mxu0 0.0
      %2911 = vmatpush1.xpose.msra.mxu0 0.0
      %2912 = vmatprep.subr.mxu0 0.0
      %2913 = vmatpush1.xpose.msra.mxu0 0.0
      %2914 = vmatprep.subr.mxu0 0.0
      %2915 = vmatpush1.xpose.msra.mxu0 0.0
      %2916 = vmatprep.subr.mxu0 0.0
      %2917 = vmatpush1.xpose.msra.mxu0 0.0
      %2918 = vmatprep.subr.mxu0 0.0
      %2919 = vmatpush1.xpose.msra.mxu0 0.0
      %2920 = vmatprep.subr.mxu0 0.0
      %2921 = vmatpush1.xpose.msra.mxu0 0.0
      %2922 = vmatprep.subr.mxu0 0.0
      %2923 = vmatpush1.xpose.msra.mxu0 0.0
      %2924 = vmatprep.subr.mxu0 0.0
      %2925 = vmatpush1.xpose.msra.mxu0 0.0
      %2926 = vmatprep.subr.mxu0 0.0
      %2927 = vmatpush1.xpose.msra.mxu0 0.0
      %2928 = vmatprep.subr.mxu0 0.0
      %2929 = vmatpush1.xpose.msra.mxu0 0.0
      %2930 = vmatprep.subr.mxu0 0.0
      %2931 = vmatpush1.xpose.msra.mxu0 0.0
      %2932 = vmatprep.subr.mxu0 0.0
      %2933 = vmatpush1.xpose.msra.mxu0 0.0
      %2934 = vmatprep.subr.mxu0 0.0
      %2935 = vmatpush1.xpose.msra.mxu0 0.0
      %2936 = vmatprep.subr.mxu0 0.0
      %2937 = vmatpush1.xpose.msra.mxu0 0.0
      %2938 = vmatprep.subr.mxu0 0.0
      %2939 = vmatpush1.xpose.msra.mxu0 0.0
      %2940 = vmatprep.subr.mxu0 0.0
      %2941 = vmatpush1.xpose.msra.mxu0 0.0
      %2942 = vmatprep.subr.mxu0 0.0
      %2943 = vmatpush1.xpose.msra.mxu0 0.0
      %2944 = vmatprep.subr.mxu0 0.0
      %2945 = vmatpush1.xpose.msra.mxu0 0.0
      %2946 = vmatprep.subr.mxu0 0.0
      %2947 = vmatpush1.xpose.msra.mxu0 0.0
      %2948 = vmatprep.subr.mxu0 0.0
      %2949 = vmatpush1.xpose.msra.mxu0 0.0
      %2950 = vmatprep.subr.mxu0 0.0
      %2951 = vmatpush1.xpose.msra.mxu0 0.0
      %2952 = vmatprep.mubr.f32.mxu0 0.0
      %2953 = vmatmul.mubr.f32.gmra.mrb[0].mxu0 %v2856
      %v2954 = vpop.f32.mrb[0].mxu0
      %v2955 = vadd.f32 %v496, %v2954
      %v2956 = vpop.f32.mrb[0].mxu0
      %2957 = vmatprep.mubr.f32.mxu0 0.0
      %2958 = vmatmul.mubr.f32.gmra.mrb[0].mxu0 %v2858
      %v2959 = vpop.f32.mrb[0].mxu0
      %v2960 = vadd.f32 %v497, %v2959
      %v2961 = vpop.f32.mrb[0].mxu0
      %2962 = vmatprep.mubr.f32.mxu0 0.0
      %2963 = vmatmul.mubr.f32.gmra.mrb[0].mxu0 %v2860
      %v2964 = vpop.f32.mrb[0].mxu0
      %v2965 = vadd.f32 %v498, %v2964
      %v2966 = vpop.f32.mrb[0].mxu0
      %2967 = vmatprep.mubr.f32.mxu0 0.0
      %2968 = vmatmul.mubr.f32.gmra.mrb[0].mxu0 %v2862
      %v2969 = vpop.f32.mrb[0].mxu0
      %v2970 = vadd.f32 %v499, %v2969
      %v2971 = vpop.f32.mrb[0].mxu0
      %2972 = vmatprep.mubr.f32.mxu0 0.0
      %2973 = vmatmul.mubr.f32.gmra.mrb[0].mxu0 %v2864
      %v2974 = vpop.f32.mrb[0].mxu0
      %v2975 = vadd.f32 %v500, %v2974
      %v2976 = vpop.f32.mrb[0].mxu0
      %2977 = vmatprep.mubr.f32.mxu0 0.0
      %2978 = vmatmul.mubr.f32.gmra.mrb[0].mxu0 %v2866
      %v2979 = vpop.f32.mrb[0].mxu0
      %v2980 = vadd.f32 %v501, %v2979
      %v2981 = vpop.f32.mrb[0].mxu0
      %2982 = vmatprep.mubr.f32.mxu0 0.0
      %2983 = vmatmul.mubr.f32.gmra.mrb[0].mxu0 %v2868
      %v2984 = vpop.f32.mrb[0].mxu0
      %v2985 = vadd.f32 %v502, %v2984
      %v2986 = vpop.f32.mrb[0].mxu0
      %2987 = vmatprep.mubr.f32.mxu0 0.0
      %2988 = vmatmul.mubr.f32.gmra.mrb[0].mxu0 %v2870
      %v2989 = vpop.f32.mrb[0].mxu0
      %v2990 = vadd.f32 %v503, %v2989
      %v2991 = vpop.f32.mrb[0].mxu0
      %2992 = vdwg.mxu0
      %v2993 = vsel %vm861, %v2955, -inf
      %2994 = vmax.xlane.f32.xlu0 %v2993
      %v2995 = vpop.xlane.xlu0 %2994
      %v2996 = vsel %vm861, %v2960, -inf
      %2997 = vmax.xlane.f32.xlu0 %v2996
      %v2998 = vpop.xlane.xlu0 %2997
      %v2999 = vsel %vm861, %v2965, -inf
      %3000 = vmax.xlane.f32.xlu0 %v2999
      %v3001 = vpop.xlane.xlu0 %3000
      %v3002 = vsel %vm861, %v2970, -inf
      %3003 = vmax.xlane.f32.xlu0 %v3002
      %v3004 = vpop.xlane.xlu0 %3003
      %v3005 = vsel %vm861, %v2975, -inf
      %3006 = vmax.xlane.f32.xlu0 %v3005
      %v3007 = vpop.xlane.xlu0 %3006
      %v3008 = vsel %vm861, %v2980, -inf
      %3009 = vmax.xlane.f32.xlu0 %v3008
      %v3010 = vpop.xlane.xlu0 %3009
      %v3011 = vsel %vm861, %v2985, -inf
      %3012 = vmax.xlane.f32.xlu0 %v3011
      %v3013 = vpop.xlane.xlu0 %3012
      %v3014 = vsel %vm861, %v2990, -inf
      %3015 = vmax.xlane.f32.xlu0 %v3014
      %v3016 = vpop.xlane.xlu0 %3015
      %v3017 = vsub.f32 %v2955, %v2995
      %v3018 = vsub.f32 %v2960, %v2998
      %v3019 = vsub.f32 %v2965, %v3001
      %v3020 = vsub.f32 %v2970, %v3004
      %v3021 = vsub.f32 %v2975, %v3007
      %v3022 = vsub.f32 %v2980, %v3010
      %v3023 = vsub.f32 %v2985, %v3013
      %v3024 = vsub.f32 %v2990, %v3016
      %v3025 = vmul.f32 %v3017, 1.442695
      %v3026 = vpow.pop %v3025
      %v3027 = vmul.f32 %v3018, 1.442695
      %v3028 = vpow.pop %v3027
      %v3029 = vmul.f32 %v3019, 1.442695
      %v3030 = vpow.pop %v3029
      %v3031 = vmul.f32 %v3020, 1.442695
      %v3032 = vpow.pop %v3031
      %v3033 = vmul.f32 %v3021, 1.442695
      %v3034 = vpow.pop %v3033
      %v3035 = vmul.f32 %v3022, 1.442695
      %v3036 = vpow.pop %v3035
      %v3037 = vmul.f32 %v3023, 1.442695
      %v3038 = vpow.pop %v3037
      %v3039 = vmul.f32 %v3024, 1.442695
      %v3040 = vpow.pop %v3039
      %v3041 = vsel %vm861, %v3026, 0.0
      %3042 = vadd.xlane.f32.xlu0 %v3041
      %v3043 = vpop.xlane.xlu0 %3042
      %v3044 = vsel %vm861, %v3028, 0.0
      %3045 = vadd.xlane.f32.xlu0 %v3044
      %v3046 = vpop.xlane.xlu0 %3045
      %v3047 = vsel %vm861, %v3030, 0.0
      %3048 = vadd.xlane.f32.xlu0 %v3047
      %v3049 = vpop.xlane.xlu0 %3048
      %v3050 = vsel %vm861, %v3032, 0.0
      %3051 = vadd.xlane.f32.xlu0 %v3050
      %v3052 = vpop.xlane.xlu0 %3051
      %v3053 = vsel %vm861, %v3034, 0.0
      %3054 = vadd.xlane.f32.xlu0 %v3053
      %v3055 = vpop.xlane.xlu0 %3054
      %v3056 = vsel %vm861, %v3036, 0.0
      %3057 = vadd.xlane.f32.xlu0 %v3056
      %v3058 = vpop.xlane.xlu0 %3057
      %v3059 = vsel %vm861, %v3038, 0.0
      %3060 = vadd.xlane.f32.xlu0 %v3059
      %v3061 = vpop.xlane.xlu0 %3060
      %v3062 = vsel %vm861, %v3040, 0.0
      %3063 = vadd.xlane.f32.xlu0 %v3062
      %v3064 = vpop.xlane.xlu0 %3063
      %v3065 = vrcp.pop %v3043
      %v3066 = vrcp.pop %v3046
      %v3067 = vrcp.pop %v3049
      %v3068 = vrcp.pop %v3052
      %v3069 = vrcp.pop %v3055
      %v3070 = vrcp.pop %v3058
      %v3071 = vrcp.pop %v3061
      %v3072 = vrcp.pop %v3064
      %v3073 = vmul.f32 %v3026, %v3065
      %v3074 = vmul.f32 %v3028, %v3066
      %v3075 = vmul.f32 %v3030, %v3067
      %v3076 = vmul.f32 %v3032, %v3068
      %v3077 = vmul.f32 %v3034, %v3069
      %v3078 = vmul.f32 %v3036, %v3070
      %v3079 = vmul.f32 %v3038, %v3071
      %v3080 = vmul.f32 %v3040, %v3072
      %3081 = vrot.lane.b32.xlu0 %v2376, 48
      %v3082 = vpop.permute.xlu0 %3081
      %3083 = vrot.lane.b32.xlu0 %v2381, 48
      %v3084 = vpop.permute.xlu0 %3083
      %3085 = vrot.lane.b32.xlu0 %v2386, 48
      %v3086 = vpop.permute.xlu0 %3085
      %3087 = vrot.lane.b32.xlu0 %v2391, 48
      %v3088 = vpop.permute.xlu0 %3087
      %3089 = vrot.lane.b32.xlu0 %v2396, 48
      %v3090 = vpop.permute.xlu0 %3089
      %3091 = vrot.lane.b32.xlu0 %v2401, 48
      %v3092 = vpop.permute.xlu0 %3091
      %3093 = vrot.lane.b32.xlu0 %v2406, 48
      %v3094 = vpop.permute.xlu0 %3093
      %3095 = vrot.lane.b32.xlu0 %v2411, 48
      %v3096 = vpop.permute.xlu0 %3095
      %v3106 = vsel %vm861, %v3073, 0
      %v3109 = vsel %vm861, %v3074, 0
      %v3112 = vsel %vm861, %v3075, 0
      %v3115 = vsel %vm861, %v3076, 0
      %v3118 = vsel %vm861, %v3077, 0
      %v3121 = vsel %vm861, %v3078, 0
      %v3124 = vsel %vm861, %v3079, 0
      %v3127 = vsel %vm861, %v3080, 0
      %3129 = vmatprep.subr.mxu0 0.0
      %3130 = vmatpush1.msra.mxu0 %v3082
      %3131 = vmatprep.subr.mxu0 0.0
      %3132 = vmatpush1.msra.mxu0 %v3084
      %3133 = vmatprep.subr.mxu0 0.0
      %3134 = vmatpush1.msra.mxu0 %v3086
      %3135 = vmatprep.subr.mxu0 0.0
      %3136 = vmatpush1.msra.mxu0 %v3088
      %3137 = vmatprep.subr.mxu0 0.0
      %3138 = vmatpush1.msra.mxu0 %v3090
      %3139 = vmatprep.subr.mxu0 0.0
      %3140 = vmatpush1.msra.mxu0 %v3092
      %3141 = vmatprep.subr.mxu0 0.0
      %3142 = vmatpush1.msra.mxu0 %v3094
      %3143 = vmatprep.subr.mxu0 0.0
      %3144 = vmatpush1.msra.mxu0 %v3096
      %3145 = vmatprep.subr.mxu0 0.0
      %3146 = vmatpush1.msra.mxu0 0.0
      %3147 = vmatprep.subr.mxu0 0.0
      %3148 = vmatpush1.msra.mxu0 0.0
      %3149 = vmatprep.subr.mxu0 0.0
      %3150 = vmatpush1.msra.mxu0 0.0
      %3151 = vmatprep.subr.mxu0 0.0
      %3152 = vmatpush1.msra.mxu0 0.0
      %3153 = vmatprep.subr.mxu0 0.0
      %3154 = vmatpush1.msra.mxu0 0.0
      %3155 = vmatprep.subr.mxu0 0.0
      %3156 = vmatpush1.msra.mxu0 0.0
      %3157 = vmatprep.subr.mxu0 0.0
      %3158 = vmatpush1.msra.mxu0 0.0
      %3159 = vmatprep.subr.mxu0 0.0
      %3160 = vmatpush1.msra.mxu0 0.0
      %3161 = vmatprep.subr.mxu0 0.0
      %3162 = vmatpush1.msra.mxu0 0.0
      %3163 = vmatprep.subr.mxu0 0.0
      %3164 = vmatpush1.msra.mxu0 0.0
      %3165 = vmatprep.subr.mxu0 0.0
      %3166 = vmatpush1.msra.mxu0 0.0
      %3167 = vmatprep.subr.mxu0 0.0
      %3168 = vmatpush1.msra.mxu0 0.0
      %3169 = vmatprep.subr.mxu0 0.0
      %3170 = vmatpush1.msra.mxu0 0.0
      %3171 = vmatprep.subr.mxu0 0.0
      %3172 = vmatpush1.msra.mxu0 0.0
      %3173 = vmatprep.subr.mxu0 0.0
      %3174 = vmatpush1.msra.mxu0 0.0
      %3175 = vmatprep.subr.mxu0 0.0
      %3176 = vmatpush1.msra.mxu0 0.0
      %3177 = vmatprep.subr.mxu0 0.0
      %3178 = vmatpush1.msra.mxu0 0.0
      %3179 = vmatprep.subr.mxu0 0.0
      %3180 = vmatpush1.msra.mxu0 0.0
      %3181 = vmatprep.subr.mxu0 0.0
      %3182 = vmatpush1.msra.mxu0 0.0
      %3183 = vmatprep.subr.mxu0 0.0
      %3184 = vmatpush1.msra.mxu0 0.0
      %3185 = vmatprep.subr.mxu0 0.0
      %3186 = vmatpush1.msra.mxu0 0.0
      %3187 = vmatprep.subr.mxu0 0.0
      %3188 = vmatpush1.msra.mxu0 0.0
      %3189 = vmatprep.subr.mxu0 0.0
      %3190 = vmatpush1.msra.mxu0 0.0
      %3191 = vmatprep.subr.mxu0 0.0
      %3192 = vmatpush1.msra.mxu0 0.0
      %3193 = vmatprep.mubr.f32.mxu0 0.0
      %3194 = vmatmul.mubr.f32.gmra.mrb[0].mxu0 %v3106
      %v3195 = vpop.f32.mrb[0].mxu0
      %v3196 = vadd.f32 0.0, %v3195
      %v3197 = vpop.f32.mrb[0].mxu0
      %3198 = vmatprep.mubr.f32.mxu0 0.0
      %3199 = vmatmul.mubr.f32.gmra.mrb[0].mxu0 %v3109
      %v3200 = vpop.f32.mrb[0].mxu0
      %v3201 = vadd.f32 0.0, %v3200
      %v3202 = vpop.f32.mrb[0].mxu0
      %3203 = vmatprep.mubr.f32.mxu0 0.0
      %3204 = vmatmul.mubr.f32.gmra.mrb[0].mxu0 %v3112
      %v3205 = vpop.f32.mrb[0].mxu0
      %v3206 = vadd.f32 0.0, %v3205
      %v3207 = vpop.f32.mrb[0].mxu0
      %3208 = vmatprep.mubr.f32.mxu0 0.0
      %3209 = vmatmul.mubr.f32.gmra.mrb[0].mxu0 %v3115
      %v3210 = vpop.f32.mrb[0].mxu0
      %v3211 = vadd.f32 0.0, %v3210
      %v3212 = vpop.f32.mrb[0].mxu0
      %3213 = vmatprep.mubr.f32.mxu0 0.0
      %3214 = vmatmul.mubr.f32.gmra.mrb[0].mxu0 %v3118
      %v3215 = vpop.f32.mrb[0].mxu0
      %v3216 = vadd.f32 0.0, %v3215
      %v3217 = vpop.f32.mrb[0].mxu0
      %3218 = vmatprep.mubr.f32.mxu0 0.0
      %3219 = vmatmul.mubr.f32.gmra.mrb[0].mxu0 %v3121
      %v3220 = vpop.f32.mrb[0].mxu0
      %v3221 = vadd.f32 0.0, %v3220
      %v3222 = vpop.f32.mrb[0].mxu0
      %3223 = vmatprep.mubr.f32.mxu0 0.0
      %3224 = vmatmul.mubr.f32.gmra.mrb[0].mxu0 %v3124
      %v3225 = vpop.f32.mrb[0].mxu0
      %v3226 = vadd.f32 0.0, %v3225
      %v3227 = vpop.f32.mrb[0].mxu0
      %3228 = vmatprep.mubr.f32.mxu0 0.0
      %3229 = vmatmul.mubr.f32.gmra.mrb[0].mxu0 %v3127
      %v3230 = vpop.f32.mrb[0].mxu0
      %v3231 = vadd.f32 0.0, %v3230
      %v3232 = vpop.f32.mrb[0].mxu0
      %3233 = vdwg.mxu0
      %3242 = vrot.lane.b32.xlu0 %v3196, 16
      %v3243 = vpop.permute.xlu0 %3242
      %3244 = vrot.lane.b32.xlu0 %v3201, 16
      %v3245 = vpop.permute.xlu0 %3244
      %3246 = vrot.lane.b32.xlu0 %v3206, 16
      %v3247 = vpop.permute.xlu0 %3246
      %3248 = vrot.lane.b32.xlu0 %v3211, 16
      %v3249 = vpop.permute.xlu0 %3248
      %3250 = vrot.lane.b32.xlu0 %v3216, 16
      %v3251 = vpop.permute.xlu0 %3250
      %3252 = vrot.lane.b32.xlu0 %v3221, 16
      %v3253 = vpop.permute.xlu0 %3252
      %3254 = vrot.lane.b32.xlu0 %v3226, 16
      %v3255 = vpop.permute.xlu0 %3254
      %3256 = vrot.lane.b32.xlu0 %v3231, 16
      %v3257 = vpop.permute.xlu0 %3256
      %3266 = vst.msk [vmem:[#allocation2] sm:$0xff] %vm1553, %v3243
      %3267 = vst.msk [vmem:[#allocation2 + $0x8] sm:$0xff] %vm1553, %v3245
      %3268 = vst.msk [vmem:[#allocation2 + $0x10] sm:$0xff] %vm1553, %v3247
      %3269 = vst.msk [vmem:[#allocation2 + $0x18] sm:$0xff] %vm1553, %v3249
      %3270 = vst.msk [vmem:[#allocation2 + $0x20] sm:$0xff] %vm1553, %v3251
      %3271 = vst.msk [vmem:[#allocation2 + $0x28] sm:$0xff] %vm1553, %v3253
      %3272 = vst.msk [vmem:[#allocation2 + $0x30] sm:$0xff] %vm1553, %v3255
      %3273 = vst.msk [vmem:[#allocation2 + $0x38] sm:$0xff] %vm1553, %v3257
      %v3274 = vld [vmem:[#allocation2] sm:$0xff]
      %v3275 = vld [vmem:[#allocation2 + $0x8] sm:$0xff]
      %v3276 = vld [vmem:[#allocation2 + $0x10] sm:$0xff]
      %v3277 = vld [vmem:[#allocation2 + $0x18] sm:$0xff]
      %v3278 = vld [vmem:[#allocation2 + $0x20] sm:$0xff]
      %v3279 = vld [vmem:[#allocation2 + $0x28] sm:$0xff]
      %v3280 = vld [vmem:[#allocation2 + $0x30] sm:$0xff]
      %v3281 = vld [vmem:[#allocation2 + $0x38] sm:$0xff]
      %s3282 = scalar_lea.vmem %s468, 32
      %v3283 = vld [vmem:[%s3282] sm:$0xff]
      %v3284 = vld [vmem:[%s3282 + $0x8] sm:$0xff]
      %v3285 = vld [vmem:[%s3282 + $0x10] sm:$0xff]
      %v3286 = vld [vmem:[%s3282 + $0x18] sm:$0xff]
      %v3287 = vlaneseq
      %v3288 = vshrl.u32 %v3287, 7
      %v3289 = vsub.s32 1, %v3288
      %v3290 = vrot.slane %v2275, %v3289
      %v3292 = vsel %vm569, %v3274, 0
      %v3295 = vsel %vm569, %v3275, 0
      %v3298 = vsel %vm569, %v3276, 0
      %v3301 = vsel %vm569, %v3277, 0
      %v3304 = vsel %vm569, %v3278, 0
      %v3307 = vsel %vm569, %v3279, 0
      %v3310 = vsel %vm569, %v3280, 0
      %v3313 = vsel %vm569, %v3281, 0
      %3315 = vmatprep.subr.mxu0 0.0
      %3316 = vmatpush1.msra.mxu0 %v3283
      %3317 = vmatprep.subr.mxu0 0.0
      %3318 = vmatpush1.msra.mxu0 %v3284
      %3319 = vmatprep.subr.mxu0 0.0
      %3320 = vmatpush1.msra.mxu0 %v3285
      %3321 = vmatprep.subr.mxu0 0.0
      %3322 = vmatpush1.msra.mxu0 %v3286
      %3323 = vmatprep.subr.mxu0 0.0
      %3324 = vmatpush1.msra.mxu0 0.0
      %3325 = vmatprep.subr.mxu0 0.0
      %3326 = vmatpush1.msra.mxu0 0.0
      %3327 = vmatprep.subr.mxu0 0.0
      %3328 = vmatpush1.msra.mxu0 0.0
      %3329 = vmatprep.subr.mxu0 0.0
      %3330 = vmatpush1.msra.mxu0 0.0
      %3331 = vmatprep.subr.mxu0 0.0
      %3332 = vmatpush1.msra.mxu0 0.0
      %3333 = vmatprep.subr.mxu0 0.0
      %3334 = vmatpush1.msra.mxu0 0.0
      %3335 = vmatprep.subr.mxu0 0.0
      %3336 = vmatpush1.msra.mxu0 0.0
      %3337 = vmatprep.subr.mxu0 0.0
      %3338 = vmatpush1.msra.mxu0 0.0
      %3339 = vmatprep.subr.mxu0 0.0
      %3340 = vmatpush1.msra.mxu0 0.0
      %3341 = vmatprep.subr.mxu0 0.0
      %3342 = vmatpush1.msra.mxu0 0.0
      %3343 = vmatprep.subr.mxu0 0.0
      %3344 = vmatpush1.msra.mxu0 0.0
      %3345 = vmatprep.subr.mxu0 0.0
      %3346 = vmatpush1.msra.mxu0 0.0
      %3347 = vmatprep.subr.mxu0 0.0
      %3348 = vmatpush1.msra.mxu0 0.0
      %3349 = vmatprep.subr.mxu0 0.0
      %3350 = vmatpush1.msra.mxu0 0.0
      %3351 = vmatprep.subr.mxu0 0.0
      %3352 = vmatpush1.msra.mxu0 0.0
      %3353 = vmatprep.subr.mxu0 0.0
      %3354 = vmatpush1.msra.mxu0 0.0
      %3355 = vmatprep.subr.mxu0 0.0
      %3356 = vmatpush1.msra.mxu0 0.0
      %3357 = vmatprep.subr.mxu0 0.0
      %3358 = vmatpush1.msra.mxu0 0.0
      %3359 = vmatprep.subr.mxu0 0.0
      %3360 = vmatpush1.msra.mxu0 0.0
      %3361 = vmatprep.subr.mxu0 0.0
      %3362 = vmatpush1.msra.mxu0 0.0
      %3363 = vmatprep.subr.mxu0 0.0
      %3364 = vmatpush1.msra.mxu0 0.0
      %3365 = vmatprep.subr.mxu0 0.0
      %3366 = vmatpush1.msra.mxu0 0.0
      %3367 = vmatprep.subr.mxu0 0.0
      %3368 = vmatpush1.msra.mxu0 0.0
      %3369 = vmatprep.subr.mxu0 0.0
      %3370 = vmatpush1.msra.mxu0 0.0
      %3371 = vmatprep.subr.mxu0 0.0
      %3372 = vmatpush1.msra.mxu0 0.0
      %3373 = vmatprep.subr.mxu0 0.0
      %3374 = vmatpush1.msra.mxu0 0.0
      %3375 = vmatprep.subr.mxu0 0.0
      %3376 = vmatpush1.msra.mxu0 0.0
      %3377 = vmatprep.subr.mxu0 0.0
      %3378 = vmatpush1.msra.mxu0 0.0
      %3379 = vmatprep.mubr.f32.mxu0 0.0
      %3380 = vmatmul.mubr.f32.gmra.mrb[0].mxu0 %v3292
      %v3381 = vpop.f32.mrb[0].mxu0
      %v3382 = vadd.f32 %v3290, %v3381
      %v3383 = vpop.f32.mrb[0].mxu0
      %3384 = vmatprep.mubr.f32.mxu0 0.0
      %3385 = vmatmul.mubr.f32.gmra.mrb[0].mxu0 %v3295
      %v3386 = vpop.f32.mrb[0].mxu0
      %v3387 = vadd.f32 %v3290, %v3386
      %v3388 = vpop.f32.mrb[0].mxu0
      %3389 = vmatprep.mubr.f32.mxu0 0.0
      %3390 = vmatmul.mubr.f32.gmra.mrb[0].mxu0 %v3298
      %v3391 = vpop.f32.mrb[0].mxu0
      %v3392 = vadd.f32 %v3290, %v3391
      %v3393 = vpop.f32.mrb[0].mxu0
      %3394 = vmatprep.mubr.f32.mxu0 0.0
      %3395 = vmatmul.mubr.f32.gmra.mrb[0].mxu0 %v3301
      %v3396 = vpop.f32.mrb[0].mxu0
      %v3397 = vadd.f32 %v3290, %v3396
      %v3398 = vpop.f32.mrb[0].mxu0
      %3399 = vmatprep.mubr.f32.mxu0 0.0
      %3400 = vmatmul.mubr.f32.gmra.mrb[0].mxu0 %v3304
      %v3401 = vpop.f32.mrb[0].mxu0
      %v3402 = vadd.f32 %v3290, %v3401
      %v3403 = vpop.f32.mrb[0].mxu0
      %3404 = vmatprep.mubr.f32.mxu0 0.0
      %3405 = vmatmul.mubr.f32.gmra.mrb[0].mxu0 %v3307
      %v3406 = vpop.f32.mrb[0].mxu0
      %v3407 = vadd.f32 %v3290, %v3406
      %v3408 = vpop.f32.mrb[0].mxu0
      %3409 = vmatprep.mubr.f32.mxu0 0.0
      %3410 = vmatmul.mubr.f32.gmra.mrb[0].mxu0 %v3310
      %v3411 = vpop.f32.mrb[0].mxu0
      %v3412 = vadd.f32 %v3290, %v3411
      %v3413 = vpop.f32.mrb[0].mxu0
      %3414 = vmatprep.mubr.f32.mxu0 0.0
      %3415 = vmatmul.mubr.f32.gmra.mrb[0].mxu0 %v3313
      %v3416 = vpop.f32.mrb[0].mxu0
      %v3417 = vadd.f32 %v3290, %v3416
      %v3418 = vpop.f32.mrb[0].mxu0
      %3419 = vdwg.mxu0
      %v3420 = vadd.f32 %v2266, %v3382
      %v3421 = vadd.f32 %v2267, %v3387
      %v3422 = vadd.f32 %v2268, %v3392
      %v3423 = vadd.f32 %v2269, %v3397
      %v3424 = vadd.f32 %v2270, %v3402
      %v3425 = vadd.f32 %v2271, %v3407
      %v3426 = vadd.f32 %v2272, %v3412
      %v3427 = vadd.f32 %v2273, %v3417
      %v3428 = vsel %vm569, %v3420, 0.0
      %3429 = vadd.xlane.f32.xlu0 %v3428
      %v3430 = vpop.xlane.xlu0 %3429
      %v3431 = vsel %vm569, %v3421, 0.0
      %3432 = vadd.xlane.f32.xlu0 %v3431
      %v3433 = vpop.xlane.xlu0 %3432
      %v3434 = vsel %vm569, %v3422, 0.0
      %3435 = vadd.xlane.f32.xlu0 %v3434
      %v3436 = vpop.xlane.xlu0 %3435
      %v3437 = vsel %vm569, %v3423, 0.0
      %3438 = vadd.xlane.f32.xlu0 %v3437
      %v3439 = vpop.xlane.xlu0 %3438
      %v3440 = vsel %vm569, %v3424, 0.0
      %3441 = vadd.xlane.f32.xlu0 %v3440
      %v3442 = vpop.xlane.xlu0 %3441
      %v3443 = vsel %vm569, %v3425, 0.0
      %3444 = vadd.xlane.f32.xlu0 %v3443
      %v3445 = vpop.xlane.xlu0 %3444
      %v3446 = vsel %vm569, %v3426, 0.0
      %3447 = vadd.xlane.f32.xlu0 %v3446
      %v3448 = vpop.xlane.xlu0 %3447
      %v3449 = vsel %vm569, %v3427, 0.0
      %3450 = vadd.xlane.f32.xlu0 %v3449
      %v3451 = vpop.xlane.xlu0 %3450
      %v3452 = vmul.f32 %v3430, %v1739
      %v3453 = vmul.f32 %v3433, %v1739
      %v3454 = vmul.f32 %v3436, %v1739
      %v3455 = vmul.f32 %v3439, %v1739
      %v3456 = vmul.f32 %v3442, %v1739
      %v3457 = vmul.f32 %v3445, %v1739
      %v3458 = vmul.f32 %v3448, %v1739
      %v3459 = vmul.f32 %v3451, %v1739
      %v3460 = vsub.f32 %v3420, %v3452
      %v3461 = vsub.f32 %v3421, %v3453
      %v3462 = vsub.f32 %v3422, %v3454
      %v3463 = vsub.f32 %v3423, %v3455
      %v3464 = vsub.f32 %v3424, %v3456
      %v3465 = vsub.f32 %v3425, %v3457
      %v3466 = vsub.f32 %v3426, %v3458
      %v3467 = vsub.f32 %v3427, %v3459
      %v3468 = vmul.f32 %v3460, %v3460
      %v3469 = vmul.f32 %v3461, %v3461
      %v3470 = vmul.f32 %v3462, %v3462
      %v3471 = vmul.f32 %v3463, %v3463
      %v3472 = vmul.f32 %v3464, %v3464
      %v3473 = vmul.f32 %v3465, %v3465
      %v3474 = vmul.f32 %v3466, %v3466
      %v3475 = vmul.f32 %v3467, %v3467
      %v3476 = vsel %vm569, %v3468, 0.0
      %3477 = vadd.xlane.f32.xlu0 %v3476
      %v3478 = vpop.xlane.xlu0 %3477
      %v3479 = vsel %vm569, %v3469, 0.0
      %3480 = vadd.xlane.f32.xlu0 %v3479
      %v3481 = vpop.xlane.xlu0 %3480
      %v3482 = vsel %vm569, %v3470, 0.0
      %3483 = vadd.xlane.f32.xlu0 %v3482
      %v3484 = vpop.xlane.xlu0 %3483
      %v3485 = vsel %vm569, %v3471, 0.0
      %3486 = vadd.xlane.f32.xlu0 %v3485
      %v3487 = vpop.xlane.xlu0 %3486
      %v3488 = vsel %vm569, %v3472, 0.0
      %3489 = vadd.xlane.f32.xlu0 %v3488
      %v3490 = vpop.xlane.xlu0 %3489
      %v3491 = vsel %vm569, %v3473, 0.0
      %3492 = vadd.xlane.f32.xlu0 %v3491
      %v3493 = vpop.xlane.xlu0 %3492
      %v3494 = vsel %vm569, %v3474, 0.0
      %3495 = vadd.xlane.f32.xlu0 %v3494
      %v3496 = vpop.xlane.xlu0 %3495
      %v3497 = vsel %vm569, %v3475, 0.0
      %3498 = vadd.xlane.f32.xlu0 %v3497
      %v3499 = vpop.xlane.xlu0 %3498
      %v3500 = vmul.f32 %v3478, %v1739
      %v3501 = vmul.f32 %v3481, %v1739
      %v3502 = vmul.f32 %v3484, %v1739
      %v3503 = vmul.f32 %v3487, %v1739
      %v3504 = vmul.f32 %v3490, %v1739
      %v3505 = vmul.f32 %v3493, %v1739
      %v3506 = vmul.f32 %v3496, %v1739
      %v3507 = vmul.f32 %v3499, %v1739
      %v3508 = vadd.f32 %v3500, 1e-05
      %v3509 = vadd.f32 %v3501, 1e-05
      %v3510 = vadd.f32 %v3502, 1e-05
      %v3511 = vadd.f32 %v3503, 1e-05
      %v3512 = vadd.f32 %v3504, 1e-05
      %v3513 = vadd.f32 %v3505, 1e-05
      %v3514 = vadd.f32 %v3506, 1e-05
      %v3515 = vadd.f32 %v3507, 1e-05
      %v3516 = vrsqrt.pop %v3508
      %v3517 = vrsqrt.pop %v3509
      %v3518 = vrsqrt.pop %v3510
      %v3519 = vrsqrt.pop %v3511
      %v3520 = vrsqrt.pop %v3512
      %v3521 = vrsqrt.pop %v3513
      %v3522 = vrsqrt.pop %v3514
      %v3523 = vrsqrt.pop %v3515
      %v3524 = vmul.f32 %v3460, %v3516
      %v3525 = vmul.f32 %v3461, %v3517
      %v3526 = vmul.f32 %v3462, %v3518
      %v3527 = vmul.f32 %v3463, %v3519
      %v3528 = vmul.f32 %v3464, %v3520
      %v3529 = vmul.f32 %v3465, %v3521
      %v3530 = vmul.f32 %v3466, %v3522
      %v3531 = vmul.f32 %v3467, %v3523
      %v3532 = vlaneseq
      %v3533 = vshrl.u32 %v3532, 7
      %v3534 = vsub.s32 2, %v3533
      %v3535 = vrot.slane %v2275, %v3534
      %v3536 = vmul.f32 %v3524, %v3535
      %v3537 = vmul.f32 %v3525, %v3535
      %v3538 = vmul.f32 %v3526, %v3535
      %v3539 = vmul.f32 %v3527, %v3535
      %v3540 = vmul.f32 %v3528, %v3535
      %v3541 = vmul.f32 %v3529, %v3535
      %v3542 = vmul.f32 %v3530, %v3535
      %v3543 = vmul.f32 %v3531, %v3535
      %v3544 = vlaneseq
      %v3545 = vshrl.u32 %v3544, 7
      %v3546 = vsub.s32 3, %v3545
      %v3547 = vrot.slane %v2275, %v3546
      %v3548 = vadd.f32 %v3536, %v3547
      %v3549 = vadd.f32 %v3537, %v3547
      %v3550 = vadd.f32 %v3538, %v3547
      %v3551 = vadd.f32 %v3539, %v3547
      %v3552 = vadd.f32 %v3540, %v3547
      %v3553 = vadd.f32 %v3541, %v3547
      %v3554 = vadd.f32 %v3542, %v3547
      %v3555 = vadd.f32 %v3543, %v3547
      %s3556 = scalar_lea.vmem %s473, 32
      %v3557 = vld [vmem:[%s3556] sm:$0xff]
      %v3558 = vld [vmem:[%s3556 + $0x8] sm:$0xff]
      %v3559 = vld [vmem:[%s3556 + $0x10] sm:$0xff]
      %v3560 = vld [vmem:[%s3556 + $0x18] sm:$0xff]
      %v3561 = vlaneseq
      %v3562 = vshrl.u32 %v3561, 7
      %v3563 = vsub.s32 4, %v3562
      %v3564 = vrot.slane %v2275, %v3563
      %v3566 = vsel %vm569, %v3548, 0
      %v3569 = vsel %vm569, %v3549, 0
      %v3572 = vsel %vm569, %v3550, 0
      %v3575 = vsel %vm569, %v3551, 0
      %v3578 = vsel %vm569, %v3552, 0
      %v3581 = vsel %vm569, %v3553, 0
      %v3584 = vsel %vm569, %v3554, 0
      %v3587 = vsel %vm569, %v3555, 0
      %3589 = vmatprep.subr.mxu0 0.0
      %3590 = vmatpush1.msra.mxu0 %v3557
      %3591 = vmatprep.subr.mxu0 0.0
      %3592 = vmatpush1.msra.mxu0 %v3558
      %3593 = vmatprep.subr.mxu0 0.0
      %3594 = vmatpush1.msra.mxu0 %v3559
      %3595 = vmatprep.subr.mxu0 0.0
      %3596 = vmatpush1.msra.mxu0 %v3560
      %3597 = vmatprep.subr.mxu0 0.0
      %3598 = vmatpush1.msra.mxu0 0.0
      %3599 = vmatprep.subr.mxu0 0.0
      %3600 = vmatpush1.msra.mxu0 0.0
      %3601 = vmatprep.subr.mxu0 0.0
      %3602 = vmatpush1.msra.mxu0 0.0
      %3603 = vmatprep.subr.mxu0 0.0
      %3604 = vmatpush1.msra.mxu0 0.0
      %3605 = vmatprep.subr.mxu0 0.0
      %3606 = vmatpush1.msra.mxu0 0.0
      %3607 = vmatprep.subr.mxu0 0.0
      %3608 = vmatpush1.msra.mxu0 0.0
      %3609 = vmatprep.subr.mxu0 0.0
      %3610 = vmatpush1.msra.mxu0 0.0
      %3611 = vmatprep.subr.mxu0 0.0
      %3612 = vmatpush1.msra.mxu0 0.0
      %3613 = vmatprep.subr.mxu0 0.0
      %3614 = vmatpush1.msra.mxu0 0.0
      %3615 = vmatprep.subr.mxu0 0.0
      %3616 = vmatpush1.msra.mxu0 0.0
      %3617 = vmatprep.subr.mxu0 0.0
      %3618 = vmatpush1.msra.mxu0 0.0
      %3619 = vmatprep.subr.mxu0 0.0
      %3620 = vmatpush1.msra.mxu0 0.0
      %3621 = vmatprep.subr.mxu0 0.0
      %3622 = vmatpush1.msra.mxu0 0.0
      %3623 = vmatprep.subr.mxu0 0.0
      %3624 = vmatpush1.msra.mxu0 0.0
      %3625 = vmatprep.subr.mxu0 0.0
      %3626 = vmatpush1.msra.mxu0 0.0
      %3627 = vmatprep.subr.mxu0 0.0
      %3628 = vmatpush1.msra.mxu0 0.0
      %3629 = vmatprep.subr.mxu0 0.0
      %3630 = vmatpush1.msra.mxu0 0.0
      %3631 = vmatprep.subr.mxu0 0.0
      %3632 = vmatpush1.msra.mxu0 0.0
      %3633 = vmatprep.subr.mxu0 0.0
      %3634 = vmatpush1.msra.mxu0 0.0
      %3635 = vmatprep.subr.mxu0 0.0
      %3636 = vmatpush1.msra.mxu0 0.0
      %3637 = vmatprep.subr.mxu0 0.0
      %3638 = vmatpush1.msra.mxu0 0.0
      %3639 = vmatprep.subr.mxu0 0.0
      %3640 = vmatpush1.msra.mxu0 0.0
      %3641 = vmatprep.subr.mxu0 0.0
      %3642 = vmatpush1.msra.mxu0 0.0
      %3643 = vmatprep.subr.mxu0 0.0
      %3644 = vmatpush1.msra.mxu0 0.0
      %3645 = vmatprep.subr.mxu0 0.0
      %3646 = vmatpush1.msra.mxu0 0.0
      %3647 = vmatprep.subr.mxu0 0.0
      %3648 = vmatpush1.msra.mxu0 0.0
      %3649 = vmatprep.subr.mxu0 0.0
      %3650 = vmatpush1.msra.mxu0 0.0
      %3651 = vmatprep.subr.mxu0 0.0
      %3652 = vmatpush1.msra.mxu0 0.0
      %3653 = vmatprep.mubr.f32.mxu0 0.0
      %3654 = vmatmul.mubr.f32.gmra.mrb[0].mxu0 %v3566
      %v3655 = vpop.f32.mrb[0].mxu0
      %v3656 = vadd.f32 %v3564, %v3655
      %v3657 = vpop.f32.mrb[0].mxu0
      %3658 = vmatprep.mubr.f32.mxu0 0.0
      %3659 = vmatmul.mubr.f32.gmra.mrb[0].mxu0 %v3569
      %v3660 = vpop.f32.mrb[0].mxu0
      %v3661 = vadd.f32 %v3564, %v3660
      %v3662 = vpop.f32.mrb[0].mxu0
      %3663 = vmatprep.mubr.f32.mxu0 0.0
      %3664 = vmatmul.mubr.f32.gmra.mrb[0].mxu0 %v3572
      %v3665 = vpop.f32.mrb[0].mxu0
      %v3666 = vadd.f32 %v3564, %v3665
      %v3667 = vpop.f32.mrb[0].mxu0
      %3668 = vmatprep.mubr.f32.mxu0 0.0
      %3669 = vmatmul.mubr.f32.gmra.mrb[0].mxu0 %v3575
      %v3670 = vpop.f32.mrb[0].mxu0
      %v3671 = vadd.f32 %v3564, %v3670
      %v3672 = vpop.f32.mrb[0].mxu0
      %3673 = vmatprep.mubr.f32.mxu0 0.0
      %3674 = vmatmul.mubr.f32.gmra.mrb[0].mxu0 %v3578
      %v3675 = vpop.f32.mrb[0].mxu0
      %v3676 = vadd.f32 %v3564, %v3675
      %v3677 = vpop.f32.mrb[0].mxu0
      %3678 = vmatprep.mubr.f32.mxu0 0.0
      %3679 = vmatmul.mubr.f32.gmra.mrb[0].mxu0 %v3581
      %v3680 = vpop.f32.mrb[0].mxu0
      %v3681 = vadd.f32 %v3564, %v3680
      %v3682 = vpop.f32.mrb[0].mxu0
      %3683 = vmatprep.mubr.f32.mxu0 0.0
      %3684 = vmatmul.mubr.f32.gmra.mrb[0].mxu0 %v3584
      %v3685 = vpop.f32.mrb[0].mxu0
      %v3686 = vadd.f32 %v3564, %v3685
      %v3687 = vpop.f32.mrb[0].mxu0
      %3688 = vmatprep.mubr.f32.mxu0 0.0
      %3689 = vmatmul.mubr.f32.gmra.mrb[0].mxu0 %v3587
      %v3690 = vpop.f32.mrb[0].mxu0
      %v3691 = vadd.f32 %v3564, %v3690
      %v3692 = vpop.f32.mrb[0].mxu0
      %3693 = vdwg.mxu0
      %v3694 = vmax.f32 %v3656, 0.0
      %v3695 = vmax.f32 %v3661, 0.0
      %v3696 = vmax.f32 %v3666, 0.0
      %v3697 = vmax.f32 %v3671, 0.0
      %v3698 = vmax.f32 %v3676, 0.0
      %v3699 = vmax.f32 %v3681, 0.0
      %v3700 = vmax.f32 %v3686, 0.0
      %v3701 = vmax.f32 %v3691, 0.0
      %s3702 = scalar_lea.vmem %s478, 64
      %v3703 = vld [vmem:[%s3702] sm:$0xff]
      %v3704 = vld [vmem:[%s3702 + $0x8] sm:$0xff]
      %v3705 = vld [vmem:[%s3702 + $0x10] sm:$0xff]
      %v3706 = vld [vmem:[%s3702 + $0x18] sm:$0xff]
      %v3707 = vld [vmem:[%s3702 + $0x20] sm:$0xff]
      %v3708 = vld [vmem:[%s3702 + $0x28] sm:$0xff]
      %v3709 = vld [vmem:[%s3702 + $0x30] sm:$0xff]
      %v3710 = vld [vmem:[%s3702 + $0x38] sm:$0xff]
      %v3711 = vlaneseq
      %v3712 = vshrl.u32 %v3711, 7
      %v3713 = vsub.s32 5, %v3712
      %v3714 = vrot.slane %v2275, %v3713
      %v3716 = vsel %vm861, %v3694, 0
      %v3719 = vsel %vm861, %v3695, 0
      %v3722 = vsel %vm861, %v3696, 0
      %v3725 = vsel %vm861, %v3697, 0
      %v3728 = vsel %vm861, %v3698, 0
      %v3731 = vsel %vm861, %v3699, 0
      %v3734 = vsel %vm861, %v3700, 0
      %v3737 = vsel %vm861, %v3701, 0
      %3739 = vmatprep.subr.mxu0 0.0
      %3740 = vmatpush1.msra.mxu0 %v3703
      %3741 = vmatprep.subr.mxu0 0.0
      %3742 = vmatpush1.msra.mxu0 %v3704
      %3743 = vmatprep.subr.mxu0 0.0
      %3744 = vmatpush1.msra.mxu0 %v3705
      %3745 = vmatprep.subr.mxu0 0.0
      %3746 = vmatpush1.msra.mxu0 %v3706
      %3747 = vmatprep.subr.mxu0 0.0
      %3748 = vmatpush1.msra.mxu0 %v3707
      %3749 = vmatprep.subr.mxu0 0.0
      %3750 = vmatpush1.msra.mxu0 %v3708
      %3751 = vmatprep.subr.mxu0 0.0
      %3752 = vmatpush1.msra.mxu0 %v3709
      %3753 = vmatprep.subr.mxu0 0.0
      %3754 = vmatpush1.msra.mxu0 %v3710
      %3755 = vmatprep.subr.mxu0 0.0
      %3756 = vmatpush1.msra.mxu0 0.0
      %3757 = vmatprep.subr.mxu0 0.0
      %3758 = vmatpush1.msra.mxu0 0.0
      %3759 = vmatprep.subr.mxu0 0.0
      %3760 = vmatpush1.msra.mxu0 0.0
      %3761 = vmatprep.subr.mxu0 0.0
      %3762 = vmatpush1.msra.mxu0 0.0
      %3763 = vmatprep.subr.mxu0 0.0
      %3764 = vmatpush1.msra.mxu0 0.0
      %3765 = vmatprep.subr.mxu0 0.0
      %3766 = vmatpush1.msra.mxu0 0.0
      %3767 = vmatprep.subr.mxu0 0.0
      %3768 = vmatpush1.msra.mxu0 0.0
      %3769 = vmatprep.subr.mxu0 0.0
      %3770 = vmatpush1.msra.mxu0 0.0
      %3771 = vmatprep.subr.mxu0 0.0
      %3772 = vmatpush1.msra.mxu0 0.0
      %3773 = vmatprep.subr.mxu0 0.0
      %3774 = vmatpush1.msra.mxu0 0.0
      %3775 = vmatprep.subr.mxu0 0.0
      %3776 = vmatpush1.msra.mxu0 0.0
      %3777 = vmatprep.subr.mxu0 0.0
      %3778 = vmatpush1.msra.mxu0 0.0
      %3779 = vmatprep.subr.mxu0 0.0
      %3780 = vmatpush1.msra.mxu0 0.0
      %3781 = vmatprep.subr.mxu0 0.0
      %3782 = vmatpush1.msra.mxu0 0.0
      %3783 = vmatprep.subr.mxu0 0.0
      %3784 = vmatpush1.msra.mxu0 0.0
      %3785 = vmatprep.subr.mxu0 0.0
      %3786 = vmatpush1.msra.mxu0 0.0
      %3787 = vmatprep.subr.mxu0 0.0
      %3788 = vmatpush1.msra.mxu0 0.0
      %3789 = vmatprep.subr.mxu0 0.0
      %3790 = vmatpush1.msra.mxu0 0.0
      %3791 = vmatprep.subr.mxu0 0.0
      %3792 = vmatpush1.msra.mxu0 0.0
      %3793 = vmatprep.subr.mxu0 0.0
      %3794 = vmatpush1.msra.mxu0 0.0
      %3795 = vmatprep.subr.mxu0 0.0
      %3796 = vmatpush1.msra.mxu0 0.0
      %3797 = vmatprep.subr.mxu0 0.0
      %3798 = vmatpush1.msra.mxu0 0.0
      %3799 = vmatprep.subr.mxu0 0.0
      %3800 = vmatpush1.msra.mxu0 0.0
      %3801 = vmatprep.subr.mxu0 0.0
      %3802 = vmatpush1.msra.mxu0 0.0
      %3803 = vmatprep.mubr.f32.mxu0 0.0
      %3804 = vmatmul.mubr.f32.gmra.mrb[0].mxu0 %v3716
      %v3805 = vpop.f32.mrb[0].mxu0
      %v3806 = vadd.f32 %v3714, %v3805
      %v3807 = vpop.f32.mrb[0].mxu0
      %3808 = vmatprep.mubr.f32.mxu0 0.0
      %3809 = vmatmul.mubr.f32.gmra.mrb[0].mxu0 %v3719
      %v3810 = vpop.f32.mrb[0].mxu0
      %v3811 = vadd.f32 %v3714, %v3810
      %v3812 = vpop.f32.mrb[0].mxu0
      %3813 = vmatprep.mubr.f32.mxu0 0.0
      %3814 = vmatmul.mubr.f32.gmra.mrb[0].mxu0 %v3722
      %v3815 = vpop.f32.mrb[0].mxu0
      %v3816 = vadd.f32 %v3714, %v3815
      %v3817 = vpop.f32.mrb[0].mxu0
      %3818 = vmatprep.mubr.f32.mxu0 0.0
      %3819 = vmatmul.mubr.f32.gmra.mrb[0].mxu0 %v3725
      %v3820 = vpop.f32.mrb[0].mxu0
      %v3821 = vadd.f32 %v3714, %v3820
      %v3822 = vpop.f32.mrb[0].mxu0
      %3823 = vmatprep.mubr.f32.mxu0 0.0
      %3824 = vmatmul.mubr.f32.gmra.mrb[0].mxu0 %v3728
      %v3825 = vpop.f32.mrb[0].mxu0
      %v3826 = vadd.f32 %v3714, %v3825
      %v3827 = vpop.f32.mrb[0].mxu0
      %3828 = vmatprep.mubr.f32.mxu0 0.0
      %3829 = vmatmul.mubr.f32.gmra.mrb[0].mxu0 %v3731
      %v3830 = vpop.f32.mrb[0].mxu0
      %v3831 = vadd.f32 %v3714, %v3830
      %v3832 = vpop.f32.mrb[0].mxu0
      %3833 = vmatprep.mubr.f32.mxu0 0.0
      %3834 = vmatmul.mubr.f32.gmra.mrb[0].mxu0 %v3734
      %v3835 = vpop.f32.mrb[0].mxu0
      %v3836 = vadd.f32 %v3714, %v3835
      %v3837 = vpop.f32.mrb[0].mxu0
      %3838 = vmatprep.mubr.f32.mxu0 0.0
      %3839 = vmatmul.mubr.f32.gmra.mrb[0].mxu0 %v3737
      %v3840 = vpop.f32.mrb[0].mxu0
      %v3841 = vadd.f32 %v3714, %v3840
      %v3842 = vpop.f32.mrb[0].mxu0
      %3843 = vdwg.mxu0
      %v3844 = vadd.f32 %v3548, %v3806
      %v3845 = vadd.f32 %v3549, %v3811
      %v3846 = vadd.f32 %v3550, %v3816
      %v3847 = vadd.f32 %v3551, %v3821
      %v3848 = vadd.f32 %v3552, %v3826
      %v3849 = vadd.f32 %v3553, %v3831
      %v3850 = vadd.f32 %v3554, %v3836
      %v3851 = vadd.f32 %v3555, %v3841
      %v3852 = vsel %vm569, %v3844, 0.0
      %3853 = vadd.xlane.f32.xlu0 %v3852
      %v3854 = vpop.xlane.xlu0 %3853
      %v3855 = vsel %vm569, %v3845, 0.0
      %3856 = vadd.xlane.f32.xlu0 %v3855
      %v3857 = vpop.xlane.xlu0 %3856
      %v3858 = vsel %vm569, %v3846, 0.0
      %3859 = vadd.xlane.f32.xlu0 %v3858
      %v3860 = vpop.xlane.xlu0 %3859
      %v3861 = vsel %vm569, %v3847, 0.0
      %3862 = vadd.xlane.f32.xlu0 %v3861
      %v3863 = vpop.xlane.xlu0 %3862
      %v3864 = vsel %vm569, %v3848, 0.0
      %3865 = vadd.xlane.f32.xlu0 %v3864
      %v3866 = vpop.xlane.xlu0 %3865
      %v3867 = vsel %vm569, %v3849, 0.0
      %3868 = vadd.xlane.f32.xlu0 %v3867
      %v3869 = vpop.xlane.xlu0 %3868
      %v3870 = vsel %vm569, %v3850, 0.0
      %3871 = vadd.xlane.f32.xlu0 %v3870
      %v3872 = vpop.xlane.xlu0 %3871
      %v3873 = vsel %vm569, %v3851, 0.0
      %3874 = vadd.xlane.f32.xlu0 %v3873
      %v3875 = vpop.xlane.xlu0 %3874
      %v3876 = vmul.f32 %v3854, %v1739
      %v3877 = vmul.f32 %v3857, %v1739
      %v3878 = vmul.f32 %v3860, %v1739
      %v3879 = vmul.f32 %v3863, %v1739
      %v3880 = vmul.f32 %v3866, %v1739
      %v3881 = vmul.f32 %v3869, %v1739
      %v3882 = vmul.f32 %v3872, %v1739
      %v3883 = vmul.f32 %v3875, %v1739
      %v3884 = vsub.f32 %v3844, %v3876
      %v3885 = vsub.f32 %v3845, %v3877
      %v3886 = vsub.f32 %v3846, %v3878
      %v3887 = vsub.f32 %v3847, %v3879
      %v3888 = vsub.f32 %v3848, %v3880
      %v3889 = vsub.f32 %v3849, %v3881
      %v3890 = vsub.f32 %v3850, %v3882
      %v3891 = vsub.f32 %v3851, %v3883
      %v3892 = vmul.f32 %v3884, %v3884
      %v3893 = vmul.f32 %v3885, %v3885
      %v3894 = vmul.f32 %v3886, %v3886
      %v3895 = vmul.f32 %v3887, %v3887
      %v3896 = vmul.f32 %v3888, %v3888
      %v3897 = vmul.f32 %v3889, %v3889
      %v3898 = vmul.f32 %v3890, %v3890
      %v3899 = vmul.f32 %v3891, %v3891
      %v3900 = vsel %vm569, %v3892, 0.0
      %3901 = vadd.xlane.f32.xlu0 %v3900
      %v3902 = vpop.xlane.xlu0 %3901
      %v3903 = vsel %vm569, %v3893, 0.0
      %3904 = vadd.xlane.f32.xlu0 %v3903
      %v3905 = vpop.xlane.xlu0 %3904
      %v3906 = vsel %vm569, %v3894, 0.0
      %3907 = vadd.xlane.f32.xlu0 %v3906
      %v3908 = vpop.xlane.xlu0 %3907
      %v3909 = vsel %vm569, %v3895, 0.0
      %3910 = vadd.xlane.f32.xlu0 %v3909
      %v3911 = vpop.xlane.xlu0 %3910
      %v3912 = vsel %vm569, %v3896, 0.0
      %3913 = vadd.xlane.f32.xlu0 %v3912
      %v3914 = vpop.xlane.xlu0 %3913
      %v3915 = vsel %vm569, %v3897, 0.0
      %3916 = vadd.xlane.f32.xlu0 %v3915
      %v3917 = vpop.xlane.xlu0 %3916
      %v3918 = vsel %vm569, %v3898, 0.0
      %3919 = vadd.xlane.f32.xlu0 %v3918
      %v3920 = vpop.xlane.xlu0 %3919
      %v3921 = vsel %vm569, %v3899, 0.0
      %3922 = vadd.xlane.f32.xlu0 %v3921
      %v3923 = vpop.xlane.xlu0 %3922
      %v3924 = vmul.f32 %v3902, %v1739
      %v3925 = vmul.f32 %v3905, %v1739
      %v3926 = vmul.f32 %v3908, %v1739
      %v3927 = vmul.f32 %v3911, %v1739
      %v3928 = vmul.f32 %v3914, %v1739
      %v3929 = vmul.f32 %v3917, %v1739
      %v3930 = vmul.f32 %v3920, %v1739
      %v3931 = vmul.f32 %v3923, %v1739
      %v3932 = vadd.f32 %v3924, 1e-05
      %v3933 = vadd.f32 %v3925, 1e-05
      %v3934 = vadd.f32 %v3926, 1e-05
      %v3935 = vadd.f32 %v3927, 1e-05
      %v3936 = vadd.f32 %v3928, 1e-05
      %v3937 = vadd.f32 %v3929, 1e-05
      %v3938 = vadd.f32 %v3930, 1e-05
      %v3939 = vadd.f32 %v3931, 1e-05
      %v3940 = vrsqrt.pop %v3932
      %v3941 = vrsqrt.pop %v3933
      %v3942 = vrsqrt.pop %v3934
      %v3943 = vrsqrt.pop %v3935
      %v3944 = vrsqrt.pop %v3936
      %v3945 = vrsqrt.pop %v3937
      %v3946 = vrsqrt.pop %v3938
      %v3947 = vrsqrt.pop %v3939
      %v3948 = vmul.f32 %v3884, %v3940
      %v3949 = vmul.f32 %v3885, %v3941
      %v3950 = vmul.f32 %v3886, %v3942
      %v3951 = vmul.f32 %v3887, %v3943
      %v3952 = vmul.f32 %v3888, %v3944
      %v3953 = vmul.f32 %v3889, %v3945
      %v3954 = vmul.f32 %v3890, %v3946
      %v3955 = vmul.f32 %v3891, %v3947
      %v3956 = vlaneseq
      %v3957 = vshrl.u32 %v3956, 7
      %v3958 = vsub.s32 6, %v3957
      %v3959 = vrot.slane %v2275, %v3958
      %v3960 = vmul.f32 %v3948, %v3959
      %v3961 = vmul.f32 %v3949, %v3959
      %v3962 = vmul.f32 %v3950, %v3959
      %v3963 = vmul.f32 %v3951, %v3959
      %v3964 = vmul.f32 %v3952, %v3959
      %v3965 = vmul.f32 %v3953, %v3959
      %v3966 = vmul.f32 %v3954, %v3959
      %v3967 = vmul.f32 %v3955, %v3959
      %v3968 = vlaneseq
      %v3969 = vshrl.u32 %v3968, 7
      %v3970 = vsub.s32 7, %v3969
      %v3971 = vrot.slane %v2275, %v3970
      %v3972 = vadd.f32 %v3960, %v3971
      %v3973 = vadd.f32 %v3961, %v3971
      %v3974 = vadd.f32 %v3962, %v3971
      %v3975 = vadd.f32 %v3963, %v3971
      %v3976 = vadd.f32 %v3964, %v3971
      %v3977 = vadd.f32 %v3965, %v3971
      %v3978 = vadd.f32 %v3966, %v3971
      %v3979 = vadd.f32 %v3967, %v3971
      %v3980 = vmul.f32 %v3972, %v515
      %v3981 = vmul.f32 %v3973, %v520
      %v3982 = vmul.f32 %v3974, %v525
      %v3983 = vmul.f32 %v3975, %v530
      %v3984 = vmul.f32 %v3976, %v535
      %v3985 = vmul.f32 %v3977, %v540
      %v3986 = vmul.f32 %v3978, %v545
      %v3987 = vmul.f32 %v3979, %v550
      %v3988 = vld [vmem:[%s458] sm:$0xff]
      %v3990 = vsel %vm861, %v3988, 0
      %3992 = vmatprep.subr.mxu0 0.0
      %3993 = vmatpush1.msra.mxu0 %v3980
      %3994 = vmatprep.subr.mxu0 0.0
      %3995 = vmatpush1.msra.mxu0 %v3981
      %3996 = vmatprep.subr.mxu0 0.0
      %3997 = vmatpush1.msra.mxu0 %v3982
      %3998 = vmatprep.subr.mxu0 0.0
      %3999 = vmatpush1.msra.mxu0 %v3983
      %4000 = vmatprep.subr.mxu0 0.0
      %4001 = vmatpush1.msra.mxu0 %v3984
      %4002 = vmatprep.subr.mxu0 0.0
      %4003 = vmatpush1.msra.mxu0 %v3985
      %4004 = vmatprep.subr.mxu0 0.0
      %4005 = vmatpush1.msra.mxu0 %v3986
      %4006 = vmatprep.subr.mxu0 0.0
      %4007 = vmatpush1.msra.mxu0 %v3987
      %4008 = vmatprep.subr.mxu0 0.0
      %4009 = vmatpush1.msra.mxu0 0.0
      %4010 = vmatprep.subr.mxu0 0.0
      %4011 = vmatpush1.msra.mxu0 0.0
      %4012 = vmatprep.subr.mxu0 0.0
      %4013 = vmatpush1.msra.mxu0 0.0
      %4014 = vmatprep.subr.mxu0 0.0
      %4015 = vmatpush1.msra.mxu0 0.0
      %4016 = vmatprep.subr.mxu0 0.0
      %4017 = vmatpush1.msra.mxu0 0.0
      %4018 = vmatprep.subr.mxu0 0.0
      %4019 = vmatpush1.msra.mxu0 0.0
      %4020 = vmatprep.subr.mxu0 0.0
      %4021 = vmatpush1.msra.mxu0 0.0
      %4022 = vmatprep.subr.mxu0 0.0
      %4023 = vmatpush1.msra.mxu0 0.0
      %4024 = vmatprep.subr.mxu0 0.0
      %4025 = vmatpush1.msra.mxu0 0.0
      %4026 = vmatprep.subr.mxu0 0.0
      %4027 = vmatpush1.msra.mxu0 0.0
      %4028 = vmatprep.subr.mxu0 0.0
      %4029 = vmatpush1.msra.mxu0 0.0
      %4030 = vmatprep.subr.mxu0 0.0
      %4031 = vmatpush1.msra.mxu0 0.0
      %4032 = vmatprep.subr.mxu0 0.0
      %4033 = vmatpush1.msra.mxu0 0.0
      %4034 = vmatprep.subr.mxu0 0.0
      %4035 = vmatpush1.msra.mxu0 0.0
      %4036 = vmatprep.subr.mxu0 0.0
      %4037 = vmatpush1.msra.mxu0 0.0
      %4038 = vmatprep.subr.mxu0 0.0
      %4039 = vmatpush1.msra.mxu0 0.0
      %4040 = vmatprep.subr.mxu0 0.0
      %4041 = vmatpush1.msra.mxu0 0.0
      %4042 = vmatprep.subr.mxu0 0.0
      %4043 = vmatpush1.msra.mxu0 0.0
      %4044 = vmatprep.subr.mxu0 0.0
      %4045 = vmatpush1.msra.mxu0 0.0
      %4046 = vmatprep.subr.mxu0 0.0
      %4047 = vmatpush1.msra.mxu0 0.0
      %4048 = vmatprep.subr.mxu0 0.0
      %4049 = vmatpush1.msra.mxu0 0.0
      %4050 = vmatprep.subr.mxu0 0.0
      %4051 = vmatpush1.msra.mxu0 0.0
      %4052 = vmatprep.subr.mxu0 0.0
      %4053 = vmatpush1.msra.mxu0 0.0
      %4054 = vmatprep.subr.mxu0 0.0
      %4055 = vmatpush1.msra.mxu0 0.0
      %4056 = vmatprep.mubr.f32.mxu0 0.0
      %4057 = vmatmul.mubr.f32.gmra.mrb[0].mxu0 %v3990
      %v4058 = vpop.f32.mrb[0].mxu0
      %v4059 = vadd.f32 0.0, %v4058
      %v4060 = vpop.f32.mrb[0].mxu0
      %4061 = vdwg.mxu0
      %4062 = vst.msk [vmem:[%s487] sm:$0xff] %vm569, %v4059
      %p4063 = scmp.lt.s32.totalorder %s20, 1
      %s4064 = scalar_select %p4063, %s20, 1
      %s4065 = smul.addr %s4064, 8
      %s4066 = scalar_lea.vmem %s9, %s4065
      // Predicated region
      $region57: #{transformer_memnet_forward.1} parent=55 // pred_check
        %p4067 = pneg %p272
      $region58: #{transformer_memnet_forward.1} parent=55 // pred_check_branch
        %4069 = sbr.rel (%p4067) target = $region60
      $region59: #{transformer_memnet_forward.1} parent=55 // pred_region
        _
      $region60: #{transformer_memnet_forward.1} parent=55 // pred_fallthru
        _
    $region56: #{transformer_memnet_forward.1} parent=5 // pred_fallthru
      _
    %p4070 = scmp.le.s32.totalorder 2, %s15
    // Predicated region
    $region61: #{transformer_memnet_forward.1} parent=5 // pred_check
      %p4071 = pneg %p4070
    $region62: #{transformer_memnet_forward.1} parent=5 // pred_check_branch
      %4073 = sbr.rel (%p4071) target = $region64
    $region63: #{transformer_memnet_forward.1} parent=5 // pred_region
      %s4074 = ssub.s32 %s15, 2
      // Predicated region
      $region65: #{transformer_memnet_forward.1} parent=63 // pred_check
        %p4075 = pneg %p278
      $region66: #{transformer_memnet_forward.1} parent=63 // pred_check_branch
        %4077 = sbr.rel (%p4075) target = $region68
      $region67: #{transformer_memnet_forward.1} parent=63 // pred_region
        %p4078 = scmp.lt.s32.totalorder %s21, 1
        %s4079 = scalar_select %p4078, %s21, 1
        %s4080 = smul.addr %s4079, 8
        %s4081 = scalar_lea.vmem %s9, %s4080
      $region68: #{transformer_memnet_forward.1} parent=63 // pred_fallthru
        _
    $region64: #{transformer_memnet_forward.1} parent=5 // pred_fallthru
      _
  $region6: #{transformer_memnet_forward.1} parent=0 // loop_footer
    %s19 = sadd.s32 1, %s15
  $region7: #{transformer_memnet_forward.1} parent=0 // loop_footer_branch
    %14 = sbr.rel target = $region3
  $region8: #{transformer_memnet_forward.1} parent=0 // loop_exit
    _

</llo_original>
